<compile_context>
chip_gen: v5e
topology: v5e:2x2
jax: 0.10.0
libtpu: 0.0.40
codegen_flags: <defaults>
</compile_context>

<pallas_src>
import jax
import jax.numpy as jnp
from jax.experimental import pallas as pl
from jax.experimental.pallas import tpu as pltpu


_VMEM_LIMIT_BYTES = 32 * 1024 * 1024   # ample for these block sizes, safe on all chips


# ----------------------------------------------------------------------------
# Helpers
# ----------------------------------------------------------------------------
def _sigmoid(x):
    # sigmoid(x) == 0.5 * tanh(0.5 * x) + 0.5 : one EUP tanh per gate instead of
    # exp + reciprocal -> shorter serial critical path in the recurrence.
    return 0.5 * jnp.tanh(0.5 * x) + 0.5


def _pick_time_block(T):
    # Largest divisor of T from the candidate list.  For arbitrary production
    # lengths, pad T / add pl.when tail masking instead of falling back to 1.
    return next(c for c in (64, 32, 16, 8, 4, 2, 1) if c <= T and T % c == 0)


# ----------------------------------------------------------------------------
# Input projection: bulk matmul over T_BLK*Bp rows, both directions fused.
# Emits direction-major (2, T, Bp, 4H) bf16 gates.
# ----------------------------------------------------------------------------
def _proj_kernel(x_ref, w_ref, b_ref, o_ref):
    # x_ref: (T_BLK, Bp, F) bf16  (raw features, or previous layer's [fwd|bwd] output)
    # w_ref: (F, 8H) bf16         columns = [fwd i|f|g|o , bwd i|f|g|o]
    # b_ref: (1, 8H) f32          fused b_ih + b_hh for both directions
    # o_ref: (2, T_BLK, Bp, 4H) bf16
    tb, bp, f = x_ref.shape
    g4 = o_ref.shape[-1]
    x = x_ref[...].reshape(tb * bp, f)
    g = jnp.dot(x, w_ref[...], preferred_element_type=jnp.float32) + b_ref[...]
    o_ref[0] = g[:, :g4].reshape(tb, bp, g4).astype(o_ref.dtype)
    o_ref[1] = g[:, g4:].reshape(tb, bp, g4).astype(o_ref.dtype)


def _input_projection(x_tbf, w_in, bias, t_blk):
    T, Bp, F = x_tbf.shape
    G = w_in.shape[1]                       # 8H
    H4 = G // 2
    nb = T // t_blk
    return pl.pallas_call(
        _proj_kernel,
        out_shape=jax.ShapeDtypeStruct((2, T, Bp, H4), jnp.bfloat16),
        grid_spec=pltpu.PrefetchScalarGridSpec(
            num_scalar_prefetch=0,
            grid=(nb,),
            in_specs=[
                pl.BlockSpec((t_blk, Bp, F), lambda j: (j, 0, 0)),
                pl.BlockSpec((F, G), lambda j: (0, 0)),
                pl.BlockSpec((1, G), lambda j: (0, 0)),
            ],
            out_specs=pl.BlockSpec((2, t_blk, Bp, H4), lambda j: (0, j, 0, 0)),
        ),
        compiler_params=pltpu.CompilerParams(
            dimension_semantics=("parallel",),
            vmem_limit_bytes=_VMEM_LIMIT_BYTES,
        ),
    )(x_tbf, w_in, bias)


# ----------------------------------------------------------------------------
# Bidirectional LSTM recurrence.
#   grid = (2, T // T_BLK): axis 0 = direction ("parallel"), axis 1 = time
#   blocks ("arbitrary", sequential).  Output is a single (T, Bp, 2H) tensor;
#   the fwd/bwd halves are selected by the out index_map (free concat).
#   Gate order follows PyTorch: i, f, g, o.
# ----------------------------------------------------------------------------
def _bilstm_kernel(gx_ref, whh_ref, out_ref, h_ref, c_ref):
    # gx_ref:  (T_BLK, Bp, 4H) bf16   precomputed x-gates for this direction/block
    # whh_ref: (H, 4H) bf16           recurrent weights for this direction
    # out_ref: (T_BLK, Bp, H)  bf16   lane-half (fwd or bwd) of the (T, Bp, 2H) output
    # h_ref, c_ref: (Bp, H) f32       carried state (VMEM scratch)
    d = pl.program_id(0)                # 0 = forward sweep, 1 = backward sweep

    # Re-zero at the start of every direction's time sweep (covers both the
    # single-core sequential case and the per-core split on v7x).
    @pl.when(pl.program_id(1) == 0)
    def _():
        h_ref[...] = jnp.zeros_like(h_ref)
        c_ref[...] = jnp.zeros_like(c_ref)

    t_blk = gx_ref.shape[0]
    H = h_ref.shape[-1]
    whh = whh_ref[...]                  # hoist the weight load out of the loop

    def sweep(time_order):
        # Fully static per-step indices: contiguous loads/stores, no scalar
        # address math on the serial path.  At production T_BLK, replace the
        # full unroll with a tuned partial unroll to avoid vreg spills.
        h = h_ref[...]
        c = c_ref[...]
        for t in time_order:
            gates = gx_ref[t].astype(jnp.float32) + jnp.dot(
                h.astype(whh.dtype), whh, preferred_element_type=jnp.float32)
            i_g = _sigmoid(gates[:, 0 * H:1 * H])
            f_g = _sigmoid(gates[:, 1 * H:2 * H])
            g_g = jnp.tanh(gates[:, 2 * H:3 * H])
            o_g = _sigmoid(gates[:, 3 * H:4 * H])
            c = f_g * c + i_g * g_g
            h = o_g * jnp.tanh(c)
            out_ref[t] = h.astype(out_ref.dtype)
        h_ref[...] = h
        c_ref[...] = c

    @pl.when(d == 0)
    def _():
        sweep(range(t_blk))

    @pl.when(d == 1)
    def _():
        sweep(range(t_blk - 1, -1, -1))

    # NOTE: on single-TC v5e/v6e a further win is fusing both direction chains
    # into one interleaved loop (grid=(nb,)) for ~2x ILP on the serial phase.


def _bilstm_layer(gx, whh_stacked, t_blk):
    # gx: (2, T, Bp, 4H) bf16 precomputed gates; whh_stacked: (2, H, 4H) bf16
    _, T, Bp, H4 = gx.shape
    H = H4 // 4
    nb = T // t_blk

    def gx_map(d, j):
        # fwd reads time blocks 0..nb-1; bwd reads nb-1..0 (processed in reverse
        # inside the kernel).
        return (d, j + d * (nb - 1 - 2 * j), 0, 0)

    def out_map(d, j):
        # Last-axis block index d places fwd in lanes [0:H), bwd in [H:2H).
        return (j + d * (nb - 1 - 2 * j), 0, d)

    return pl.pallas_call(
        _bilstm_kernel,
        out_shape=jax.ShapeDtypeStruct((T, Bp, 2 * H), jnp.bfloat16),
        grid_spec=pltpu.PrefetchScalarGridSpec(
            num_scalar_prefetch=0,
            grid=(2, nb),
            in_specs=[
                pl.BlockSpec((None, t_blk, Bp, H4), gx_map),
                pl.BlockSpec((None, H, H4), lambda d, j: (d, 0, 0)),
            ],
            out_specs=pl.BlockSpec((t_blk, Bp, H), out_map),
            scratch_shapes=[
                pltpu.VMEM((Bp, H), jnp.float32),   # h
                pltpu.VMEM((Bp, H), jnp.float32),   # c
            ],
        ),
        compiler_params=pltpu.CompilerParams(
            dimension_semantics=("parallel", "arbitrary"),
            vmem_limit_bytes=_VMEM_LIMIT_BYTES,
        ),
    )(gx, whh_stacked)


# ----------------------------------------------------------------------------
# Parameter init (raw PyTorch LSTM shapes) + packing into kernel layout.
# ----------------------------------------------------------------------------
def init_raw_params(key, input_size, hidden_size, num_layers, num_classes):
    layers = []
    for layer in range(num_layers):
        in_sz = input_size if layer == 0 else 2 * hidden_size
        lp = {}
        for direction in ("fwd", "bwd"):
            key, k1, k2, k3, k4 = jax.random.split(key, 5)
            lp[direction] = (
                0.1 * jax.random.normal(k1, (4 * hidden_size, in_sz), jnp.float32),
                0.1 * jax.random.normal(k2, (4 * hidden_size, hidden_size), jnp.float32),
                0.1 * jax.random.normal(k3, (4 * hidden_size,), jnp.float32),
                0.1 * jax.random.normal(k4, (4 * hidden_size,), jnp.float32),
            )
        layers.append(lp)
    key, k1, k2 = jax.random.split(key, 3)
    fc_w = 0.1 * jax.random.normal(k1, (num_classes, 2 * hidden_size), jnp.float32)
    fc_b = 0.1 * jax.random.normal(k2, (num_classes,), jnp.float32)
    return {"layers": layers, "fc": (fc_w, fc_b)}


def pack_params(raw, hidden_size):
    H = hidden_size
    packed = []
    for lp in raw["layers"]:
        wf_ih, wf_hh, bf_ih, bf_hh = lp["fwd"]
        wb_ih, wb_hh, bb_ih, bb_hh = lp["bwd"]
        # (F, 8H): columns [fwd 4H | bwd 4H]; bf16 for MXU + HBM/VMEM savings.
        w_in = jnp.concatenate([wf_ih.T, wb_ih.T], axis=1).astype(jnp.bfloat16)
        w_hh = jnp.stack([wf_hh.T, wb_hh.T]).astype(jnp.bfloat16)        # (2, H, 4H)
        bias = jnp.concatenate([bf_ih + bf_hh, bb_ih + bb_hh]).reshape(1, 8 * H)
        packed.append({"w_in": w_in, "w_hh": w_hh, "b": bias.astype(jnp.float32)})
    fc_w, fc_b = raw["fc"]
    return {"layers": packed, "fc": (fc_w.T.astype(jnp.float32), fc_b)}


# ----------------------------------------------------------------------------
# Full forward, matching AudioLSTM.forward: out = fc(lstm(x)[0][:, -1, :])
# ----------------------------------------------------------------------------
def audio_lstm_forward(x_btf, params):
    B, T, _ = x_btf.shape
    Bp = ((B + 7) // 8) * 8                 # pad batch to full f32 sublanes
    t_blk = _pick_time_block(T)

    # One-time transpose of the raw input; every later activation is produced
    # directly in (T, Bp, .) layout by the kernels.
    x = jnp.transpose(x_btf, (1, 0, 2)).astype(jnp.bfloat16)      # (T, B, D)
    if Bp != B:
        x = jnp.pad(x, ((0, 0), (0, Bp - B), (0, 0)))             # zero pad -> finite

    feats = x
    h_cat = None
    for lp in params["layers"]:
        gx = _input_projection(feats, lp["w_in"], lp["b"], t_blk)  # (2, T, Bp, 4H) bf16
        h_cat = _bilstm_layer(gx, lp["w_hh"], t_blk)               # (T, Bp, 2H) bf16
        feats = h_cat
    # TODO(synk): skip the full last-layer HBM writeback and emit only the
    # t = T-1 fwd/bwd slices (pure bandwidth saving at production scale).

    # Classifier head on out[:, -1, :] = [h_fwd(T-1) | h_bwd(T-1)]: with the
    # concatenated layout this is simply the last time slice.  Tiny matmul ->
    # left to XLA (a standalone pallas_call would cost more in launch/DMA).
    fc_w_t, fc_b = params["fc"]
    h_last = h_cat[T - 1, :B].astype(jnp.float32)                  # (B, 2H)
    return h_last @ fc_w_t + fc_b


# ----------------------------------------------------------------------------
# Pure-JAX f32 reference (PyTorch nn.LSTM semantics) for correctness checking.
# ----------------------------------------------------------------------------
def _ref_lstm_dir(x_tbf, w_ih, w_hh, b_ih, b_hh, reverse):
    T, B, _ = x_tbf.shape
    H = w_hh.shape[1]
    h = jnp.zeros((B, H), jnp.float32)
    c = jnp.zeros((B, H), jnp.float32)
    outs = [None] * T
    order = range(T - 1, -1, -1) if reverse else range(T)
    for t in order:
        gates = x_tbf[t] @ w_ih.T + h @ w_hh.T + b_ih + b_hh
        i_g = jax.nn.sigmoid(gates[:, 0 * H:1 * H])
        f_g = jax.nn.sigmoid(gates[:, 1 * H:2 * H])
        g_g = jnp.tanh(gates[:, 2 * H:3 * H])
        o_g = jax.nn.sigmoid(gates[:, 3 * H:4 * H])
        c = f_g * c + i_g * g_g
        h = o_g * jnp.tanh(c)
        outs[t] = h
    return jnp.stack(outs, axis=0)


def _ref_forward(x_btf, raw):
    h = jnp.transpose(x_btf, (1, 0, 2)).astype(jnp.float32)
    for lp in raw["layers"]:
        fwd = _ref_lstm_dir(h, *lp["fwd"], reverse=False)
        bwd = _ref_lstm_dir(h, *lp["bwd"], reverse=True)
        h = jnp.concatenate([fwd, bwd], axis=-1)
    fc_w, fc_b = raw["fc"]
    return h[-1] @ fc_w.T + fc_b


if __name__ == "__main__":
    # Small demo shapes.  hidden_size is kept a multiple of 128 so gate slices
    # and the recurrence output block are lane-aligned (per the perf review);
    # the module default is 256.
    B, T = 2, 8
    input_size, hidden_size, num_layers, num_classes = 16, 128, 2, 8

    key = jax.random.PRNGKey(0)
    key, kx, kp = jax.random.split(key, 3)
    x = jax.random.normal(kx, (B, T, input_size), jnp.float32)

    raw = init_raw_params(kp, input_size, hidden_size, num_layers, num_classes)
    params = pack_params(raw, hidden_size)

    fwd_fn = jax.jit(audio_lstm_forward)
    out = jax.block_until_ready(fwd_fn(x, params))
    assert out.shape == (B, num_classes), out.shape

    # bf16 weight/activation storage loosens the tolerance vs the f32 reference.
    ref = _ref_forward(x, raw)
    assert jnp.allclose(out.astype(jnp.float32), ref, rtol=5e-2, atol=5e-2), (out, ref)

    print("KERNEL_OK")
</pallas_src>

<mosaic_0001>
module attributes {stable_mosaic.version = 11 : i64} {
  func.func @_proj_kernel(%arg0: i32, %arg1: memref<8x8x16xbf16, #tpu.memory_space<vmem>>, %arg2: memref<16x1024xbf16, #tpu.memory_space<vmem>>, %arg3: memref<1x1024xf32, #tpu.memory_space<vmem>>, %arg4: memref<2x8x8x512xbf16, #tpu.memory_space<vmem>>) attributes {dimension_semantics = [#tpu.dimension_semantics<parallel>], iteration_bounds = array<i64: 1>, scalar_prefetch = 0 : i64, scratch_operands = 0 : i64, tpu.core_type = #tpu.core_type<tc>, window_params = [{transform_indices = @transform_0, window_bounds = array<i64: 8, 8, 16>}, {pipeline_mode = #tpu.pipeline_mode<synchronous>, transform_indices = @transform_1, window_bounds = array<i64: 16, 1024>}, {pipeline_mode = #tpu.pipeline_mode<synchronous>, transform_indices = @transform_2, window_bounds = array<i64: 1, 1024>}, {transform_indices = @transform_3, window_bounds = array<i64: 2, 8, 8, 512>}]} {
    %c0 = arith.constant 0 : index
    %c0_0 = arith.constant 0 : index
    %c0_1 = arith.constant 0 : index
    %0 = vector.load %arg1[%c0, %c0_0, %c0_1] : memref<8x8x16xbf16, #tpu.memory_space<vmem>>, vector<8x8x16xbf16>
    %1 = vector.shape_cast %0 : vector<8x8x16xbf16> to vector<64x16xbf16>
    %c0_2 = arith.constant 0 : index
    %c0_3 = arith.constant 0 : index
    %2 = vector.load %arg2[%c0_2, %c0_3] : memref<16x1024xbf16, #tpu.memory_space<vmem>>, vector<16x1024xbf16>
    %cst = arith.constant dense<0.000000e+00> : vector<64x1024xf32>
    %3 = tpu.matmul %1, %2, %cst {dimension_numbers = #tpu.dot_dimension_numbers<[1], [0], [0], [1], [0, 0, 1, 1], [], []>} : vector<64x16xbf16>, vector<16x1024xbf16>, vector<64x1024xf32> -> vector<64x1024xf32>
    %c0_4 = arith.constant 0 : index
    %c0_5 = arith.constant 0 : index
    %4 = vector.load %arg3[%c0_4, %c0_5] : memref<1x1024xf32, #tpu.memory_space<vmem>>, vector<1x1024xf32>
    %5 = vector.broadcast %4 : vector<1x1024xf32> to vector<64x1024xf32>
    %6 = arith.addf %3, %5 : vector<64x1024xf32>
    %7 = vector.extract_strided_slice %6 {offsets = [0, 0], sizes = [64, 512], strides = [1, 1]} : vector<64x1024xf32> to vector<64x512xf32>
    %8 = vector.shape_cast %7 : vector<64x512xf32> to vector<8x8x512xf32>
    %9 = arith.truncf %8 : vector<8x8x512xf32> to vector<8x8x512xbf16>
    %c0_6 = arith.constant 0 : index
    %c0_7 = arith.constant 0 : index
    %c0_8 = arith.constant 0 : index
    %c0_9 = arith.constant 0 : index
    %10 = vector.load %arg4[%c0_6, %c0_7, %c0_8, %c0_9] : memref<2x8x8x512xbf16, #tpu.memory_space<vmem>>, vector<1x8x8x512xbf16>
    %11 = vector.shape_cast %10 : vector<1x8x8x512xbf16> to vector<8x8x512xbf16>
    %12 = vector.shape_cast %9 : vector<8x8x512xbf16> to vector<1x8x8x512xbf16>
    tpu.vector_store %arg4[%c0_6, %c0_7, %c0_8, %c0_9], %12 {strides = array<i32>} : memref<2x8x8x512xbf16, #tpu.memory_space<vmem>>, vector<1x8x8x512xbf16>,
    %13 = vector.extract_strided_slice %6 {offsets = [0, 512], sizes = [64, 512], strides = [1, 1]} : vector<64x1024xf32> to vector<64x512xf32>
    %14 = vector.shape_cast %13 : vector<64x512xf32> to vector<8x8x512xf32>
    %15 = arith.truncf %14 : vector<8x8x512xf32> to vector<8x8x512xbf16>
    %c1 = arith.constant 1 : index
    %c0_10 = arith.constant 0 : index
    %c0_11 = arith.constant 0 : index
    %c0_12 = arith.constant 0 : index
    %16 = vector.load %arg4[%c1, %c0_10, %c0_11, %c0_12] : memref<2x8x8x512xbf16, #tpu.memory_space<vmem>>, vector<1x8x8x512xbf16>
    %17 = vector.shape_cast %16 : vector<1x8x8x512xbf16> to vector<8x8x512xbf16>
    %18 = vector.shape_cast %15 : vector<8x8x512xbf16> to vector<1x8x8x512xbf16>
    tpu.vector_store %arg4[%c1, %c0_10, %c0_11, %c0_12], %18 {strides = array<i32>} : memref<2x8x8x512xbf16, #tpu.memory_space<vmem>>, vector<1x8x8x512xbf16>,
    return
  }
  func.func @transform_0(%arg0: i32) -> (i32, i32, i32) {
    %c0_i32 = arith.constant 0 : i32
    %c0_i32_0 = arith.constant 0 : i32
    %c0_i32_1 = arith.constant 0 : i32
    return %arg0, %c0_i32, %c0_i32_0 : i32, i32, i32
  }
  func.func @transform_1(%arg0: i32) -> (i32, i32) {
    %c0_i32 = arith.constant 0 : i32
    %c0_i32_0 = arith.constant 0 : i32
    %c0_i32_1 = arith.constant 0 : i32
    return %c0_i32, %c0_i32_0 : i32, i32
  }
  func.func @transform_2(%arg0: i32) -> (i32, i32) {
    %c0_i32 = arith.constant 0 : i32
    %c0_i32_0 = arith.constant 0 : i32
    %c0_i32_1 = arith.constant 0 : i32
    return %c0_i32, %c0_i32_0 : i32, i32
  }
  func.func @transform_3(%arg0: i32) -> (i32, i32, i32, i32) {
    %c0_i32 = arith.constant 0 : i32
    %c0_i32_0 = arith.constant 0 : i32
    %c0_i32_1 = arith.constant 0 : i32
    %c0_i32_2 = arith.constant 0 : i32
    return %c0_i32, %arg0, %c0_i32_0, %c0_i32_1 : i32, i32, i32, i32
  }
}

module attributes {stable_mosaic.version = 11 : i64} {
  func.func @_bilstm_kernel(%arg0: i32, %arg1: i32, %arg2: memref<1x8x8x512xbf16, #tpu.memory_space<vmem>>, %arg3: memref<1x128x512xbf16, #tpu.memory_space<vmem>>, %arg4: memref<8x8x128xbf16, #tpu.memory_space<vmem>>, %arg5: memref<8x128xf32, #tpu.memory_space<vmem>>, %arg6: memref<8x128xf32, #tpu.memory_space<vmem>>) attributes {dimension_semantics = [#tpu.dimension_semantics<parallel>, #tpu.dimension_semantics<arbitrary>], iteration_bounds = array<i64: 2, 1>, scalar_prefetch = 0 : i64, scratch_operands = 2 : i64, tpu.core_type = #tpu.core_type<tc>, window_params = [{transform_indices = @transform_0, window_bounds = array<i64: 1, 8, 8, 512>}, {transform_indices = @transform_1, window_bounds = array<i64: 1, 128, 512>}, {transform_indices = @transform_2, window_bounds = array<i64: 8, 8, 128>}]} {
    %c0_i32 = arith.constant 0 : i32
    %0 = arith.cmpi eq, %arg1, %c0_i32 : i32
    %1 = arith.extui %0 : i1 to i32
    %c0_i32_0 = arith.constant 0 : i32
    %2 = arith.cmpi ne, %1, %c0_i32_0 : i32
    scf.if %2 {
      %cst = arith.constant 0.000000e+00 : f32
      %11 = vector.broadcast %cst : f32 to vector<8x128xf32>
      %c0_6 = arith.constant 0 : index
      %c0_7 = arith.constant 0 : index
      %12 = vector.load %arg5[%c0_6, %c0_7] : memref<8x128xf32, #tpu.memory_space<vmem>>, vector<8x128xf32>
      tpu.vector_store %arg5[%c0_6, %c0_7], %11 {strides = array<i32>} : memref<8x128xf32, #tpu.memory_space<vmem>>, vector<8x128xf32>,
      %cst_8 = arith.constant 0.000000e+00 : f32
      %13 = vector.broadcast %cst_8 : f32 to vector<8x128xf32>
      %c0_9 = arith.constant 0 : index
      %c0_10 = arith.constant 0 : index
      %14 = vector.load %arg6[%c0_9, %c0_10] : memref<8x128xf32, #tpu.memory_space<vmem>>, vector<8x128xf32>
      tpu.vector_store %arg6[%c0_9, %c0_10], %13 {strides = array<i32>} : memref<8x128xf32, #tpu.memory_space<vmem>>, vector<8x128xf32>,
    } else {
    }
    %c0 = arith.constant 0 : index
    %c0_1 = arith.constant 0 : index
    %c0_2 = arith.constant 0 : index
    %3 = vector.load %arg3[%c0, %c0_1, %c0_2] : memref<1x128x512xbf16, #tpu.memory_space<vmem>>, vector<1x128x512xbf16>
    %4 = vector.shape_cast %3 : vector<1x128x512xbf16> to vector<128x512xbf16>
    %c0_i32_3 = arith.constant 0 : i32
    %5 = arith.cmpi eq, %arg0, %c0_i32_3 : i32
    %6 = arith.extui %5 : i1 to i32
    %c0_i32_4 = arith.constant 0 : i32
    %7 = arith.cmpi ne, %6, %c0_i32_4 : i32
    scf.if %7 {
      %c0_6 = arith.constant 0 : index
      %c0_7 = arith.constant 0 : index
      %11 = vector.load %arg5[%c0_6, %c0_7] : memref<8x128xf32, #tpu.memory_space<vmem>>, vector<8x128xf32>
      %c0_8 = arith.constant 0 : index
      %c0_9 = arith.constant 0 : index
      %12 = vector.load %arg6[%c0_8, %c0_9] : memref<8x128xf32, #tpu.memory_space<vmem>>, vector<8x128xf32>
      %c0_10 = arith.constant 0 : index
      %c0_11 = arith.constant 0 : index
      %c0_12 = arith.constant 0 : index
      %c0_13 = arith.constant 0 : index
      %13 = vector.load %arg2[%c0_10, %c0_11, %c0_12, %c0_13] : memref<1x8x8x512xbf16, #tpu.memory_space<vmem>>, vector<1x1x8x512xbf16>
      %14 = vector.shape_cast %13 : vector<1x1x8x512xbf16> to vector<8x512xbf16>
      %15 = arith.extf %14 : vector<8x512xbf16> to vector<8x512xf32>
      %16 = arith.truncf %11 : vector<8x128xf32> to vector<8x128xbf16>
      %cst = arith.constant dense<0.000000e+00> : vector<8x512xf32>
      %17 = tpu.matmul %16, %4, %cst {dimension_numbers = #tpu.dot_dimension_numbers<[1], [0], [0], [1], [0, 0, 1, 1], [], []>} : vector<8x128xbf16>, vector<128x512xbf16>, vector<8x512xf32> -> vector<8x512xf32>
      %18 = arith.addf %15, %17 : vector<8x512xf32>
      %19 = vector.extract_strided_slice %18 {offsets = [0, 0], sizes = [8, 128], strides = [1, 1]} : vector<8x512xf32> to vector<8x128xf32>
      %cst_14 = arith.constant 5.000000e-01 : f32
      %20 = vector.broadcast %cst_14 : f32 to vector<8x128xf32>
      %21 = arith.mulf %20, %19 : vector<8x128xf32>
      %22 = math.tanh %21 : vector<8x128xf32>
      %cst_15 = arith.constant 5.000000e-01 : f32
      %23 = vector.broadcast %cst_15 : f32 to vector<8x128xf32>
      %24 = arith.mulf %23, %22 : vector<8x128xf32>
      %cst_16 = arith.constant 5.000000e-01 : f32
      %25 = vector.broadcast %cst_16 : f32 to vector<8x128xf32>
      %26 = arith.addf %24, %25 : vector<8x128xf32>
      %27 = vector.extract_strided_slice %18 {offsets = [0, 128], sizes = [8, 128], strides = [1, 1]} : vector<8x512xf32> to vector<8x128xf32>
      %cst_17 = arith.constant 5.000000e-01 : f32
      %28 = vector.broadcast %cst_17 : f32 to vector<8x128xf32>
      %29 = arith.mulf %28, %27 : vector<8x128xf32>
      %30 = math.tanh %29 : vector<8x128xf32>
      %cst_18 = arith.constant 5.000000e-01 : f32
      %31 = vector.broadcast %cst_18 : f32 to vector<8x128xf32>
      %32 = arith.mulf %31, %30 : vector<8x128xf32>
      %cst_19 = arith.constant 5.000000e-01 : f32
      %33 = vector.broadcast %cst_19 : f32 to vector<8x128xf32>
      %34 = arith.addf %32, %33 : vector<8x128xf32>
      %35 = vector.extract_strided_slice %18 {offsets = [0, 256], sizes = [8, 128], strides = [1, 1]} : vector<8x512xf32> to vector<8x128xf32>
      %36 = math.tanh %35 : vector<8x128xf32>
      %37 = vector.extract_strided_slice %18 {offsets = [0, 384], sizes = [8, 128], strides = [1, 1]} : vector<8x512xf32> to vector<8x128xf32>
      %cst_20 = arith.constant 5.000000e-01 : f32
      %38 = vector.broadcast %cst_20 : f32 to vector<8x128xf32>
      %39 = arith.mulf %38, %37 : vector<8x128xf32>
      %40 = math.tanh %39 : vector<8x128xf32>
      %cst_21 = arith.constant 5.000000e-01 : f32
      %41 = vector.broadcast %cst_21 : f32 to vector<8x128xf32>
      %42 = arith.mulf %41, %40 : vector<8x128xf32>
      %cst_22 = arith.constant 5.000000e-01 : f32
      %43 = vector.broadcast %cst_22 : f32 to vector<8x128xf32>
      %44 = arith.addf %42, %43 : vector<8x128xf32>
      %45 = arith.mulf %34, %12 : vector<8x128xf32>
      %46 = arith.mulf %26, %36 : vector<8x128xf32>
      %47 = arith.addf %45, %46 : vector<8x128xf32>
      %48 = math.tanh %47 : vector<8x128xf32>
      %49 = arith.mulf %44, %48 : vector<8x128xf32>
      %50 = arith.truncf %49 : vector<8x128xf32> to vector<8x128xbf16>
      %c0_23 = arith.constant 0 : index
      %c0_24 = arith.constant 0 : index
      %c0_25 = arith.constant 0 : index
      %51 = vector.load %arg4[%c0_23, %c0_24, %c0_25] : memref<8x8x128xbf16, #tpu.memory_space<vmem>>, vector<1x8x128xbf16>
      %52 = vector.shape_cast %51 : vector<1x8x128xbf16> to vector<8x128xbf16>
      %53 = vector.shape_cast %50 : vector<8x128xbf16> to vector<1x8x128xbf16>
      tpu.vector_store %arg4[%c0_23, %c0_24, %c0_25], %53 {strides = array<i32>} : memref<8x8x128xbf16, #tpu.memory_space<vmem>>, vector<1x8x128xbf16>,
      %c0_26 = arith.constant 0 : index
      %c1 = arith.constant 1 : index
      %c0_27 = arith.constant 0 : index
      %c0_28 = arith.constant 0 : index
      %54 = vector.load %arg2[%c0_26, %c1, %c0_27, %c0_28] : memref<1x8x8x512xbf16, #tpu.memory_space<vmem>>, vector<1x1x8x512xbf16>
      %55 = vector.shape_cast %54 : vector<1x1x8x512xbf16> to vector<8x512xbf16>
      %56 = arith.extf %55 : vector<8x512xbf16> to vector<8x512xf32>
      %57 = arith.truncf %49 : vector<8x128xf32> to vector<8x128xbf16>
      %cst_29 = arith.constant dense<0.000000e+00> : vector<8x512xf32>
      %58 = tpu.matmul %57, %4, %cst_29 {dimension_numbers = #tpu.dot_dimension_numbers<[1], [0], [0], [1], [0, 0, 1, 1], [], []>} : vector<8x128xbf16>, vector<128x512xbf16>, vector<8x512xf32> -> vector<8x512xf32>
      %59 = arith.addf %56, %58 : vector<8x512xf32>
      %60 = vector.extract_strided_slice %59 {offsets = [0, 0], sizes = [8, 128], strides = [1, 1]} : vector<8x512xf32> to vector<8x128xf32>
      %cst_30 = arith.constant 5.000000e-01 : f32
      %61 = vector.broadcast %cst_30 : f32 to vector<8x128xf32>
      %62 = arith.mulf %61, %60 : vector<8x128xf32>
      %63 = math.tanh %62 : vector<8x128xf32>
      %cst_31 = arith.constant 5.000000e-01 : f32
      %64 = vector.broadcast %cst_31 : f32 to vector<8x128xf32>
      %65 = arith.mulf %64, %63 : vector<8x128xf32>
      %cst_32 = arith.constant 5.000000e-01 : f32
      %66 = vector.broadcast %cst_32 : f32 to vector<8x128xf32>
      %67 = arith.addf %65, %66 : vector<8x128xf32>
      %68 = vector.extract_strided_slice %59 {offsets = [0, 128], sizes = [8, 128], strides = [1, 1]} : vector<8x512xf32> to vector<8x128xf32>
      %cst_33 = arith.constant 5.000000e-01 : f32
      %69 = vector.broadcast %cst_33 : f32 to vector<8x128xf32>
      %70 = arith.mulf %69, %68 : vector<8x128xf32>
      %71 = math.tanh %70 : vector<8x128xf32>
      %cst_34 = arith.constant 5.000000e-01 : f32
      %72 = vector.broadcast %cst_34 : f32 to vector<8x128xf32>
      %73 = arith.mulf %72, %71 : vector<8x128xf32>
      %cst_35 = arith.constant 5.000000e-01 : f32
      %74 = vector.broadcast %cst_35 : f32 to vector<8x128xf32>
      %75 = arith.addf %73, %74 : vector<8x128xf32>
      %76 = vector.extract_strided_slice %59 {offsets = [0, 256], sizes = [8, 128], strides = [1, 1]} : vector<8x512xf32> to vector<8x128xf32>
      %77 = math.tanh %76 : vector<8x128xf32>
      %78 = vector.extract_strided_slice %59 {offsets = [0, 384], sizes = [8, 128], strides = [1, 1]} : vector<8x512xf32> to vector<8x128xf32>
      %cst_36 = arith.constant 5.000000e-01 : f32
      %79 = vector.broadcast %cst_36 : f32 to vector<8x128xf32>
      %80 = arith.mulf %79, %78 : vector<8x128xf32>
      %81 = math.tanh %80 : vector<8x128xf32>
      %cst_37 = arith.constant 5.000000e-01 : f32
      %82 = vector.broadcast %cst_37 : f32 to vector<8x128xf32>
      %83 = arith.mulf %82, %81 : vector<8x128xf32>
      %cst_38 = arith.constant 5.000000e-01 : f32
      %84 = vector.broadcast %cst_38 : f32 to vector<8x128xf32>
      %85 = arith.addf %83, %84 : vector<8x128xf32>
      %86 = arith.mulf %75, %47 : vector<8x128xf32>
      %87 = arith.mulf %67, %77 : vector<8x128xf32>
      %88 = arith.addf %86, %87 : vector<8x128xf32>
      %89 = math.tanh %88 : vector<8x128xf32>
      %90 = arith.mulf %85, %89 : vector<8x128xf32>
      %91 = arith.truncf %90 : vector<8x128xf32> to vector<8x128xbf16>
      %c1_39 = arith.constant 1 : index
      %c0_40 = arith.constant 0 : index
      %c0_41 = arith.constant 0 : index
      %92 = vector.load %arg4[%c1_39, %c0_40, %c0_41] : memref<8x8x128xbf16, #tpu.memory_space<vmem>>, vector<1x8x128xbf16>
      %93 = vector.shape_cast %92 : vector<1x8x128xbf16> to vector<8x128xbf16>
      %94 = vector.shape_cast %91 : vector<8x128xbf16> to vector<1x8x128xbf16>
      tpu.vector_store %arg4[%c1_39, %c0_40, %c0_41], %94 {strides = array<i32>} : memref<8x8x128xbf16, #tpu.memory_space<vmem>>, vector<1x8x128xbf16>,
      %c0_42 = arith.constant 0 : index
      %c2 = arith.constant 2 : index
      %c0_43 = arith.constant 0 : index
      %c0_44 = arith.constant 0 : index
      %95 = vector.load %arg2[%c0_42, %c2, %c0_43, %c0_44] : memref<1x8x8x512xbf16, #tpu.memory_space<vmem>>, vector<1x1x8x512xbf16>
      %96 = vector.shape_cast %95 : vector<1x1x8x512xbf16> to vector<8x512xbf16>
      %97 = arith.extf %96 : vector<8x512xbf16> to vector<8x512xf32>
      %98 = arith.truncf %90 : vector<8x128xf32> to vector<8x128xbf16>
      %cst_45 = arith.constant dense<0.000000e+00> : vector<8x512xf32>
      %99 = tpu.matmul %98, %4, %cst_45 {dimension_numbers = #tpu.dot_dimension_numbers<[1], [0], [0], [1], [0, 0, 1, 1], [], []>} : vector<8x128xbf16>, vector<128x512xbf16>, vector<8x512xf32> -> vector<8x512xf32>
      %100 = arith.addf %97, %99 : vector<8x512xf32>
      %101 = vector.extract_strided_slice %100 {offsets = [0, 0], sizes = [8, 128], strides = [1, 1]} : vector<8x512xf32> to vector<8x128xf32>
      %cst_46 = arith.constant 5.000000e-01 : f32
      %102 = vector.broadcast %cst_46 : f32 to vector<8x128xf32>
      %103 = arith.mulf %102, %101 : vector<8x128xf32>
      %104 = math.tanh %103 : vector<8x128xf32>
      %cst_47 = arith.constant 5.000000e-01 : f32
      %105 = vector.broadcast %cst_47 : f32 to vector<8x128xf32>
      %106 = arith.mulf %105, %104 : vector<8x128xf32>
      %cst_48 = arith.constant 5.000000e-01 : f32
      %107 = vector.broadcast %cst_48 : f32 to vector<8x128xf32>
      %108 = arith.addf %106, %107 : vector<8x128xf32>
      %109 = vector.extract_strided_slice %100 {offsets = [0, 128], sizes = [8, 128], strides = [1, 1]} : vector<8x512xf32> to vector<8x128xf32>
      %cst_49 = arith.constant 5.000000e-01 : f32
      %110 = vector.broadcast %cst_49 : f32 to vector<8x128xf32>
      %111 = arith.mulf %110, %109 : vector<8x128xf32>
      %112 = math.tanh %111 : vector<8x128xf32>
      %cst_50 = arith.constant 5.000000e-01 : f32
      %113 = vector.broadcast %cst_50 : f32 to vector<8x128xf32>
      %114 = arith.mulf %113, %112 : vector<8x128xf32>
      %cst_51 = arith.constant 5.000000e-01 : f32
      %115 = vector.broadcast %cst_51 : f32 to vector<8x128xf32>
      %116 = arith.addf %114, %115 : vector<8x128xf32>
      %117 = vector.extract_strided_slice %100 {offsets = [0, 256], sizes = [8, 128], strides = [1, 1]} : vector<8x512xf32> to vector<8x128xf32>
      %118 = math.tanh %117 : vector<8x128xf32>
      %119 = vector.extract_strided_slice %100 {offsets = [0, 384], sizes = [8, 128], strides = [1, 1]} : vector<8x512xf32> to vector<8x128xf32>
      %cst_52 = arith.constant 5.000000e-01 : f32
      %120 = vector.broadcast %cst_52 : f32 to vector<8x128xf32>
      %121 = arith.mulf %120, %119 : vector<8x128xf32>
      %122 = math.tanh %121 : vector<8x128xf32>
      %cst_53 = arith.constant 5.000000e-01 : f32
      %123 = vector.broadcast %cst_53 : f32 to vector<8x128xf32>
      %124 = arith.mulf %123, %122 : vector<8x128xf32>
      %cst_54 = arith.constant 5.000000e-01 : f32
      %125 = vector.broadcast %cst_54 : f32 to vector<8x128xf32>
      %126 = arith.addf %124, %125 : vector<8x128xf32>
      %127 = arith.mulf %116, %88 : vector<8x128xf32>
      %128 = arith.mulf %108, %118 : vector<8x128xf32>
      %129 = arith.addf %127, %128 : vector<8x128xf32>
      %130 = math.tanh %129 : vector<8x128xf32>
      %131 = arith.mulf %126, %130 : vector<8x128xf32>
      %132 = arith.truncf %131 : vector<8x128xf32> to vector<8x128xbf16>
      %c2_55 = arith.constant 2 : index
      %c0_56 = arith.constant 0 : index
      %c0_57 = arith.constant 0 : index
      %133 = vector.load %arg4[%c2_55, %c0_56, %c0_57] : memref<8x8x128xbf16, #tpu.memory_space<vmem>>, vector<1x8x128xbf16>
      %134 = vector.shape_cast %133 : vector<1x8x128xbf16> to vector<8x128xbf16>
      %135 = vector.shape_cast %132 : vector<8x128xbf16> to vector<1x8x128xbf16>
      tpu.vector_store %arg4[%c2_55, %c0_56, %c0_57], %135 {strides = array<i32>} : memref<8x8x128xbf16, #tpu.memory_space<vmem>>, vector<1x8x128xbf16>,
      %c0_58 = arith.constant 0 : index
      %c3 = arith.constant 3 : index
      %c0_59 = arith.constant 0 : index
      %c0_60 = arith.constant 0 : index
      %136 = vector.load %arg2[%c0_58, %c3, %c0_59, %c0_60] : memref<1x8x8x512xbf16, #tpu.memory_space<vmem>>, vector<1x1x8x512xbf16>
      %137 = vector.shape_cast %136 : vector<1x1x8x512xbf16> to vector<8x512xbf16>
      %138 = arith.extf %137 : vector<8x512xbf16> to vector<8x512xf32>
      %139 = arith.truncf %131 : vector<8x128xf32> to vector<8x128xbf16>
      %cst_61 = arith.constant dense<0.000000e+00> : vector<8x512xf32>
      %140 = tpu.matmul %139, %4, %cst_61 {dimension_numbers = #tpu.dot_dimension_numbers<[1], [0], [0], [1], [0, 0, 1, 1], [], []>} : vector<8x128xbf16>, vector<128x512xbf16>, vector<8x512xf32> -> vector<8x512xf32>
      %141 = arith.addf %138, %140 : vector<8x512xf32>
      %142 = vector.extract_strided_slice %141 {offsets = [0, 0], sizes = [8, 128], strides = [1, 1]} : vector<8x512xf32> to vector<8x128xf32>
      %cst_62 = arith.constant 5.000000e-01 : f32
      %143 = vector.broadcast %cst_62 : f32 to vector<8x128xf32>
      %144 = arith.mulf %143, %142 : vector<8x128xf32>
      %145 = math.tanh %144 : vector<8x128xf32>
      %cst_63 = arith.constant 5.000000e-01 : f32
      %146 = vector.broadcast %cst_63 : f32 to vector<8x128xf32>
      %147 = arith.mulf %146, %145 : vector<8x128xf32>
      %cst_64 = arith.constant 5.000000e-01 : f32
      %148 = vector.broadcast %cst_64 : f32 to vector<8x128xf32>
      %149 = arith.addf %147, %148 : vector<8x128xf32>
      %150 = vector.extract_strided_slice %141 {offsets = [0, 128], sizes = [8, 128], strides = [1, 1]} : vector<8x512xf32> to vector<8x128xf32>
      %cst_65 = arith.constant 5.000000e-01 : f32
      %151 = vector.broadcast %cst_65 : f32 to vector<8x128xf32>
      %152 = arith.mulf %151, %150 : vector<8x128xf32>
      %153 = math.tanh %152 : vector<8x128xf32>
      %cst_66 = arith.constant 5.000000e-01 : f32
      %154 = vector.broadcast %cst_66 : f32 to vector<8x128xf32>
      %155 = arith.mulf %154, %153 : vector<8x128xf32>
      %cst_67 = arith.constant 5.000000e-01 : f32
      %156 = vector.broadcast %cst_67 : f32 to vector<8x128xf32>
      %157 = arith.addf %155, %156 : vector<8x128xf32>
      %158 = vector.extract_strided_slice %141 {offsets = [0, 256], sizes = [8, 128], strides = [1, 1]} : vector<8x512xf32> to vector<8x128xf32>
      %159 = math.tanh %158 : vector<8x128xf32>
      %160 = vector.extract_strided_slice %141 {offsets = [0, 384], sizes = [8, 128], strides = [1, 1]} : vector<8x512xf32> to vector<8x128xf32>
      %cst_68 = arith.constant 5.000000e-01 : f32
      %161 = vector.broadcast %cst_68 : f32 to vector<8x128xf32>
      %162 = arith.mulf %161, %160 : vector<8x128xf32>
      %163 = math.tanh %162 : vector<8x128xf32>
      %cst_69 = arith.constant 5.000000e-01 : f32
      %164 = vector.broadcast %cst_69 : f32 to vector<8x128xf32>
      %165 = arith.mulf %164, %163 : vector<8x128xf32>
      %cst_70 = arith.constant 5.000000e-01 : f32
      %166 = vector.broadcast %cst_70 : f32 to vector<8x128xf32>
      %167 = arith.addf %165, %166 : vector<8x128xf32>
      %168 = arith.mulf %157, %129 : vector<8x128xf32>
      %169 = arith.mulf %149, %159 : vector<8x128xf32>
      %170 = arith.addf %168, %169 : vector<8x128xf32>
      %171 = math.tanh %170 : vector<8x128xf32>
      %172 = arith.mulf %167, %171 : vector<8x128xf32>
      %173 = arith.truncf %172 : vector<8x128xf32> to vector<8x128xbf16>
      %c3_71 = arith.constant 3 : index
      %c0_72 = arith.constant 0 : index
      %c0_73 = arith.constant 0 : index
      %174 = vector.load %arg4[%c3_71, %c0_72, %c0_73] : memref<8x8x128xbf16, #tpu.memory_space<vmem>>, vector<1x8x128xbf16>
      %175 = vector.shape_cast %174 : vector<1x8x128xbf16> to vector<8x128xbf16>
      %176 = vector.shape_cast %173 : vector<8x128xbf16> to vector<1x8x128xbf16>
      tpu.vector_store %arg4[%c3_71, %c0_72, %c0_73], %176 {strides = array<i32>} : memref<8x8x128xbf16, #tpu.memory_space<vmem>>, vector<1x8x128xbf16>,
      %c0_74 = arith.constant 0 : index
      %c4 = arith.constant 4 : index
      %c0_75 = arith.constant 0 : index
      %c0_76 = arith.constant 0 : index
      %177 = vector.load %arg2[%c0_74, %c4, %c0_75, %c0_76] : memref<1x8x8x512xbf16, #tpu.memory_space<vmem>>, vector<1x1x8x512xbf16>
      %178 = vector.shape_cast %177 : vector<1x1x8x512xbf16> to vector<8x512xbf16>
      %179 = arith.extf %178 : vector<8x512xbf16> to vector<8x512xf32>
      %180 = arith.truncf %172 : vector<8x128xf32> to vector<8x128xbf16>
      %cst_77 = arith.constant dense<0.000000e+00> : vector<8x512xf32>
      %181 = tpu.matmul %180, %4, %cst_77 {dimension_numbers = #tpu.dot_dimension_numbers<[1], [0], [0], [1], [0, 0, 1, 1], [], []>} : vector<8x128xbf16>, vector<128x512xbf16>, vector<8x512xf32> -> vector<8x512xf32>
      %182 = arith.addf %179, %181 : vector<8x512xf32>
      %183 = vector.extract_strided_slice %182 {offsets = [0, 0], sizes = [8, 128], strides = [1, 1]} : vector<8x512xf32> to vector<8x128xf32>
      %cst_78 = arith.constant 5.000000e-01 : f32
      %184 = vector.broadcast %cst_78 : f32 to vector<8x128xf32>
      %185 = arith.mulf %184, %183 : vector<8x128xf32>
      %186 = math.tanh %185 : vector<8x128xf32>
      %cst_79 = arith.constant 5.000000e-01 : f32
      %187 = vector.broadcast %cst_79 : f32 to vector<8x128xf32>
      %188 = arith.mulf %187, %186 : vector<8x128xf32>
      %cst_80 = arith.constant 5.000000e-01 : f32
      %189 = vector.broadcast %cst_80 : f32 to vector<8x128xf32>
      %190 = arith.addf %188, %189 : vector<8x128xf32>
      %191 = vector.extract_strided_slice %182 {offsets = [0, 128], sizes = [8, 128], strides = [1, 1]} : vector<8x512xf32> to vector<8x128xf32>
      %cst_81 = arith.constant 5.000000e-01 : f32
      %192 = vector.broadcast %cst_81 : f32 to vector<8x128xf32>
      %193 = arith.mulf %192, %191 : vector<8x128xf32>
      %194 = math.tanh %193 : vector<8x128xf32>
      %cst_82 = arith.constant 5.000000e-01 : f32
      %195 = vector.broadcast %cst_82 : f32 to vector<8x128xf32>
      %196 = arith.mulf %195, %194 : vector<8x128xf32>
      %cst_83 = arith.constant 5.000000e-01 : f32
      %197 = vector.broadcast %cst_83 : f32 to vector<8x128xf32>
      %198 = arith.addf %196, %197 : vector<8x128xf32>
      %199 = vector.extract_strided_slice %182 {offsets = [0, 256], sizes = [8, 128], strides = [1, 1]} : vector<8x512xf32> to vector<8x128xf32>
      %200 = math.tanh %199 : vector<8x128xf32>
      %201 = vector.extract_strided_slice %182 {offsets = [0, 384], sizes = [8, 128], strides = [1, 1]} : vector<8x512xf32> to vector<8x128xf32>
      %cst_84 = arith.constant 5.000000e-01 : f32
      %202 = vector.broadcast %cst_84 : f32 to vector<8x128xf32>
      %203 = arith.mulf %202, %201 : vector<8x128xf32>
      %204 = math.tanh %203 : vector<8x128xf32>
      %cst_85 = arith.constant 5.000000e-01 : f32
      %205 = vector.broadcast %cst_85 : f32 to vector<8x128xf32>
      %206 = arith.mulf %205, %204 : vector<8x128xf32>
      %cst_86 = arith.constant 5.000000e-01 : f32
      %207 = vector.broadcast %cst_86 : f32 to vector<8x128xf32>
      %208 = arith.addf %206, %207 : vector<8x128xf32>
      %209 = arith.mulf %198, %170 : vector<8x128xf32>
      %210 = arith.mulf %190, %200 : vector<8x128xf32>
      %211 = arith.addf %209, %210 : vector<8x128xf32>
      %212 = math.tanh %211 : vector<8x128xf32>
      %213 = arith.mulf %208, %212 : vector<8x128xf32>
      %214 = arith.truncf %213 : vector<8x128xf32> to vector<8x128xbf16>
      %c4_87 = arith.constant 4 : index
      %c0_88 = arith.constant 0 : index
      %c0_89 = arith.constant 0 : index
      %215 = vector.load %arg4[%c4_87, %c0_88, %c0_89] : memref<8x8x128xbf16, #tpu.memory_space<vmem>>, vector<1x8x128xbf16>
      %216 = vector.shape_cast %215 : vector<1x8x128xbf16> to vector<8x128xbf16>
      %217 = vector.shape_cast %214 : vector<8x128xbf16> to vector<1x8x128xbf16>
      tpu.vector_store %arg4[%c4_87, %c0_88, %c0_89], %217 {strides = array<i32>} : memref<8x8x128xbf16, #tpu.memory_space<vmem>>, vector<1x8x128xbf16>,
      %c0_90 = arith.constant 0 : index
      %c5 = arith.constant 5 : index
      %c0_91 = arith.constant 0 : index
      %c0_92 = arith.constant 0 : index
      %218 = vector.load %arg2[%c0_90, %c5, %c0_91, %c0_92] : memref<1x8x8x512xbf16, #tpu.memory_space<vmem>>, vector<1x1x8x512xbf16>
      %219 = vector.shape_cast %218 : vector<1x1x8x512xbf16> to vector<8x512xbf16>
      %220 = arith.extf %219 : vector<8x512xbf16> to vector<8x512xf32>
      %221 = arith.truncf %213 : vector<8x128xf32> to vector<8x128xbf16>
      %cst_93 = arith.constant dense<0.000000e+00> : vector<8x512xf32>
      %222 = tpu.matmul %221, %4, %cst_93 {dimension_numbers = #tpu.dot_dimension_numbers<[1], [0], [0], [1], [0, 0, 1, 1], [], []>} : vector<8x128xbf16>, vector<128x512xbf16>, vector<8x512xf32> -> vector<8x512xf32>
      %223 = arith.addf %220, %222 : vector<8x512xf32>
      %224 = vector.extract_strided_slice %223 {offsets = [0, 0], sizes = [8, 128], strides = [1, 1]} : vector<8x512xf32> to vector<8x128xf32>
      %cst_94 = arith.constant 5.000000e-01 : f32
      %225 = vector.broadcast %cst_94 : f32 to vector<8x128xf32>
      %226 = arith.mulf %225, %224 : vector<8x128xf32>
      %227 = math.tanh %226 : vector<8x128xf32>
      %cst_95 = arith.constant 5.000000e-01 : f32
      %228 = vector.broadcast %cst_95 : f32 to vector<8x128xf32>
      %229 = arith.mulf %228, %227 : vector<8x128xf32>
      %cst_96 = arith.constant 5.000000e-01 : f32
      %230 = vector.broadcast %cst_96 : f32 to vector<8x128xf32>
      %231 = arith.addf %229, %230 : vector<8x128xf32>
      %232 = vector.extract_strided_slice %223 {offsets = [0, 128], sizes = [8, 128], strides = [1, 1]} : vector<8x512xf32> to vector<8x128xf32>
      %cst_97 = arith.constant 5.000000e-01 : f32
      %233 = vector.broadcast %cst_97 : f32 to vector<8x128xf32>
      %234 = arith.mulf %233, %232 : vector<8x128xf32>
      %235 = math.tanh %234 : vector<8x128xf32>
      %cst_98 = arith.constant 5.000000e-01 : f32
      %236 = vector.broadcast %cst_98 : f32 to vector<8x128xf32>
      %237 = arith.mulf %236, %235 : vector<8x128xf32>
      %cst_99 = arith.constant 5.000000e-01 : f32
      %238 = vector.broadcast %cst_99 : f32 to vector<8x128xf32>
      %239 = arith.addf %237, %238 : vector<8x128xf32>
      %240 = vector.extract_strided_slice %223 {offsets = [0, 256], sizes = [8, 128], strides = [1, 1]} : vector<8x512xf32> to vector<8x128xf32>
      %241 = math.tanh %240 : vector<8x128xf32>
      %242 = vector.extract_strided_slice %223 {offsets = [0, 384], sizes = [8, 128], strides = [1, 1]} : vector<8x512xf32> to vector<8x128xf32>
      %cst_100 = arith.constant 5.000000e-01 : f32
      %243 = vector.broadcast %cst_100 : f32 to vector<8x128xf32>
      %244 = arith.mulf %243, %242 : vector<8x128xf32>
      %245 = math.tanh %244 : vector<8x128xf32>
      %cst_101 = arith.constant 5.000000e-01 : f32
      %246 = vector.broadcast %cst_101 : f32 to vector<8x128xf32>
      %247 = arith.mulf %246, %245 : vector<8x128xf32>
      %cst_102 = arith.constant 5.000000e-01 : f32
      %248 = vector.broadcast %cst_102 : f32 to vector<8x128xf32>
      %249 = arith.addf %247, %248 : vector<8x128xf32>
      %250 = arith.mulf %239, %211 : vector<8x128xf32>
      %251 = arith.mulf %231, %241 : vector<8x128xf32>
      %252 = arith.addf %250, %251 : vector<8x128xf32>
      %253 = math.tanh %252 : vector<8x128xf32>
      %254 = arith.mulf %249, %253 : vector<8x128xf32>
      %255 = arith.truncf %254 : vector<8x128xf32> to vector<8x128xbf16>
      %c5_103 = arith.constant 5 : index
      %c0_104 = arith.constant 0 : index
      %c0_105 = arith.constant 0 : index
      %256 = vector.load %arg4[%c5_103, %c0_104, %c0_105] : memref<8x8x128xbf16, #tpu.memory_space<vmem>>, vector<1x8x128xbf16>
      %257 = vector.shape_cast %256 : vector<1x8x128xbf16> to vector<8x128xbf16>
      %258 = vector.shape_cast %255 : vector<8x128xbf16> to vector<1x8x128xbf16>
      tpu.vector_store %arg4[%c5_103, %c0_104, %c0_105], %258 {strides = array<i32>} : memref<8x8x128xbf16, #tpu.memory_space<vmem>>, vector<1x8x128xbf16>,
      %c0_106 = arith.constant 0 : index
      %c6 = arith.constant 6 : index
      %c0_107 = arith.constant 0 : index
      %c0_108 = arith.constant 0 : index
      %259 = vector.load %arg2[%c0_106, %c6, %c0_107, %c0_108] : memref<1x8x8x512xbf16, #tpu.memory_space<vmem>>, vector<1x1x8x512xbf16>
      %260 = vector.shape_cast %259 : vector<1x1x8x512xbf16> to vector<8x512xbf16>
      %261 = arith.extf %260 : vector<8x512xbf16> to vector<8x512xf32>
      %262 = arith.truncf %254 : vector<8x128xf32> to vector<8x128xbf16>
      %cst_109 = arith.constant dense<0.000000e+00> : vector<8x512xf32>
      %263 = tpu.matmul %262, %4, %cst_109 {dimension_numbers = #tpu.dot_dimension_numbers<[1], [0], [0], [1], [0, 0, 1, 1], [], []>} : vector<8x128xbf16>, vector<128x512xbf16>, vector<8x512xf32> -> vector<8x512xf32>
      %264 = arith.addf %261, %263 : vector<8x512xf32>
      %265 = vector.extract_strided_slice %264 {offsets = [0, 0], sizes = [8, 128], strides = [1, 1]} : vector<8x512xf32> to vector<8x128xf32>
      %cst_110 = arith.constant 5.000000e-01 : f32
      %266 = vector.broadcast %cst_110 : f32 to vector<8x128xf32>
      %267 = arith.mulf %266, %265 : vector<8x128xf32>
      %268 = math.tanh %267 : vector<8x128xf32>
      %cst_111 = arith.constant 5.000000e-01 : f32
      %269 = vector.broadcast %cst_111 : f32 to vector<8x128xf32>
      %270 = arith.mulf %269, %268 : vector<8x128xf32>
      %cst_112 = arith.constant 5.000000e-01 : f32
      %271 = vector.broadcast %cst_112 : f32 to vector<8x128xf32>
      %272 = arith.addf %270, %271 : vector<8x128xf32>
      %273 = vector.extract_strided_slice %264 {offsets = [0, 128], sizes = [8, 128], strides = [1, 1]} : vector<8x512xf32> to vector<8x128xf32>
      %cst_113 = arith.constant 5.000000e-01 : f32
      %274 = vector.broadcast %cst_113 : f32 to vector<8x128xf32>
      %275 = arith.mulf %274, %273 : vector<8x128xf32>
      %276 = math.tanh %275 : vector<8x128xf32>
      %cst_114 = arith.constant 5.000000e-01 : f32
      %277 = vector.broadcast %cst_114 : f32 to vector<8x128xf32>
      %278 = arith.mulf %277, %276 : vector<8x128xf32>
      %cst_115 = arith.constant 5.000000e-01 : f32
      %279 = vector.broadcast %cst_115 : f32 to vector<8x128xf32>
      %280 = arith.addf %278, %279 : vector<8x128xf32>
      %281 = vector.extract_strided_slice %264 {offsets = [0, 256], sizes = [8, 128], strides = [1, 1]} : vector<8x512xf32> to vector<8x128xf32>
      %282 = math.tanh %281 : vector<8x128xf32>
      %283 = vector.extract_strided_slice %264 {offsets = [0, 384], sizes = [8, 128], strides = [1, 1]} : vector<8x512xf32> to vector<8x128xf32>
      %cst_116 = arith.constant 5.000000e-01 : f32
      %284 = vector.broadcast %cst_116 : f32 to vector<8x128xf32>
      %285 = arith.mulf %284, %283 : vector<8x128xf32>
      %286 = math.tanh %285 : vector<8x128xf32>
      %cst_117 = arith.constant 5.000000e-01 : f32
      %287 = vector.broadcast %cst_117 : f32 to vector<8x128xf32>
      %288 = arith.mulf %287, %286 : vector<8x128xf32>
      %cst_118 = arith.constant 5.000000e-01 : f32
      %289 = vector.broadcast %cst_118 : f32 to vector<8x128xf32>
      %290 = arith.addf %288, %289 : vector<8x128xf32>
      %291 = arith.mulf %280, %252 : vector<8x128xf32>
      %292 = arith.mulf %272, %282 : vector<8x128xf32>
      %293 = arith.addf %291, %292 : vector<8x128xf32>
      %294 = math.tanh %293 : vector<8x128xf32>
      %295 = arith.mulf %290, %294 : vector<8x128xf32>
      %296 = arith.truncf %295 : vector<8x128xf32> to vector<8x128xbf16>
      %c6_119 = arith.constant 6 : index
      %c0_120 = arith.constant 0 : index
      %c0_121 = arith.constant 0 : index
      %297 = vector.load %arg4[%c6_119, %c0_120, %c0_121] : memref<8x8x128xbf16, #tpu.memory_space<vmem>>, vector<1x8x128xbf16>
      %298 = vector.shape_cast %297 : vector<1x8x128xbf16> to vector<8x128xbf16>
      %299 = vector.shape_cast %296 : vector<8x128xbf16> to vector<1x8x128xbf16>
      tpu.vector_store %arg4[%c6_119, %c0_120, %c0_121], %299 {strides = array<i32>} : memref<8x8x128xbf16, #tpu.memory_space<vmem>>, vector<1x8x128xbf16>,
      %c0_122 = arith.constant 0 : index
      %c7 = arith.constant 7 : index
      %c0_123 = arith.constant 0 : index
      %c0_124 = arith.constant 0 : index
      %300 = vector.load %arg2[%c0_122, %c7, %c0_123, %c0_124] : memref<1x8x8x512xbf16, #tpu.memory_space<vmem>>, vector<1x1x8x512xbf16>
      %301 = vector.shape_cast %300 : vector<1x1x8x512xbf16> to vector<8x512xbf16>
      %302 = arith.extf %301 : vector<8x512xbf16> to vector<8x512xf32>
      %303 = arith.truncf %295 : vector<8x128xf32> to vector<8x128xbf16>
      %cst_125 = arith.constant dense<0.000000e+00> : vector<8x512xf32>
      %304 = tpu.matmul %303, %4, %cst_125 {dimension_numbers = #tpu.dot_dimension_numbers<[1], [0], [0], [1], [0, 0, 1, 1], [], []>} : vector<8x128xbf16>, vector<128x512xbf16>, vector<8x512xf32> -> vector<8x512xf32>
      %305 = arith.addf %302, %304 : vector<8x512xf32>
      %306 = vector.extract_strided_slice %305 {offsets = [0, 0], sizes = [8, 128], strides = [1, 1]} : vector<8x512xf32> to vector<8x128xf32>
      %cst_126 = arith.constant 5.000000e-01 : f32
      %307 = vector.broadcast %cst_126 : f32 to vector<8x128xf32>
      %308 = arith.mulf %307, %306 : vector<8x128xf32>
      %309 = math.tanh %308 : vector<8x128xf32>
      %cst_127 = arith.constant 5.000000e-01 : f32
      %310 = vector.broadcast %cst_127 : f32 to vector<8x128xf32>
      %311 = arith.mulf %310, %309 : vector<8x128xf32>
      %cst_128 = arith.constant 5.000000e-01 : f32
      %312 = vector.broadcast %cst_128 : f32 to vector<8x128xf32>
      %313 = arith.addf %311, %312 : vector<8x128xf32>
      %314 = vector.extract_strided_slice %305 {offsets = [0, 128], sizes = [8, 128], strides = [1, 1]} : vector<8x512xf32> to vector<8x128xf32>
      %cst_129 = arith.constant 5.000000e-01 : f32
      %315 = vector.broadcast %cst_129 : f32 to vector<8x128xf32>
      %316 = arith.mulf %315, %314 : vector<8x128xf32>
      %317 = math.tanh %316 : vector<8x128xf32>
      %cst_130 = arith.constant 5.000000e-01 : f32
      %318 = vector.broadcast %cst_130 : f32 to vector<8x128xf32>
      %319 = arith.mulf %318, %317 : vector<8x128xf32>
      %cst_131 = arith.constant 5.000000e-01 : f32
      %320 = vector.broadcast %cst_131 : f32 to vector<8x128xf32>
      %321 = arith.addf %319, %320 : vector<8x128xf32>
      %322 = vector.extract_strided_slice %305 {offsets = [0, 256], sizes = [8, 128], strides = [1, 1]} : vector<8x512xf32> to vector<8x128xf32>
      %323 = math.tanh %322 : vector<8x128xf32>
      %324 = vector.extract_strided_slice %305 {offsets = [0, 384], sizes = [8, 128], strides = [1, 1]} : vector<8x512xf32> to vector<8x128xf32>
      %cst_132 = arith.constant 5.000000e-01 : f32
      %325 = vector.broadcast %cst_132 : f32 to vector<8x128xf32>
      %326 = arith.mulf %325, %324 : vector<8x128xf32>
      %327 = math.tanh %326 : vector<8x128xf32>
      %cst_133 = arith.constant 5.000000e-01 : f32
      %328 = vector.broadcast %cst_133 : f32 to vector<8x128xf32>
      %329 = arith.mulf %328, %327 : vector<8x128xf32>
      %cst_134 = arith.constant 5.000000e-01 : f32
      %330 = vector.broadcast %cst_134 : f32 to vector<8x128xf32>
      %331 = arith.addf %329, %330 : vector<8x128xf32>
      %332 = arith.mulf %321, %293 : vector<8x128xf32>
      %333 = arith.mulf %313, %323 : vector<8x128xf32>
      %334 = arith.addf %332, %333 : vector<8x128xf32>
      %335 = math.tanh %334 : vector<8x128xf32>
      %336 = arith.mulf %331, %335 : vector<8x128xf32>
      %337 = arith.truncf %336 : vector<8x128xf32> to vector<8x128xbf16>
      %c7_135 = arith.constant 7 : index
      %c0_136 = arith.constant 0 : index
      %c0_137 = arith.constant 0 : index
      %338 = vector.load %arg4[%c7_135, %c0_136, %c0_137] : memref<8x8x128xbf16, #tpu.memory_space<vmem>>, vector<1x8x128xbf16>
      %339 = vector.shape_cast %338 : vector<1x8x128xbf16> to vector<8x128xbf16>
      %340 = vector.shape_cast %337 : vector<8x128xbf16> to vector<1x8x128xbf16>
      tpu.vector_store %arg4[%c7_135, %c0_136, %c0_137], %340 {strides = array<i32>} : memref<8x8x128xbf16, #tpu.memory_space<vmem>>, vector<1x8x128xbf16>,
      %c0_138 = arith.constant 0 : index
      %c0_139 = arith.constant 0 : index
      %341 = vector.load %arg5[%c0_138, %c0_139] : memref<8x128xf32, #tpu.memory_space<vmem>>, vector<8x128xf32>
      tpu.vector_store %arg5[%c0_138, %c0_139], %336 {strides = array<i32>} : memref<8x128xf32, #tpu.memory_space<vmem>>, vector<8x128xf32>,
      %c0_140 = arith.constant 0 : index
      %c0_141 = arith.constant 0 : index
      %342 = vector.load %arg6[%c0_140, %c0_141] : memref<8x128xf32, #tpu.memory_space<vmem>>, vector<8x128xf32>
      tpu.vector_store %arg6[%c0_140, %c0_141], %334 {strides = array<i32>} : memref<8x128xf32, #tpu.memory_space<vmem>>, vector<8x128xf32>,
    } else {
    }
    %c1_i32 = arith.constant 1 : i32
    %8 = arith.cmpi eq, %arg0, %c1_i32 : i32
    %9 = arith.extui %8 : i1 to i32
    %c0_i32_5 = arith.constant 0 : i32
    %10 = arith.cmpi ne, %9, %c0_i32_5 : i32
    scf.if %10 {
      %c0_6 = arith.constant 0 : index
      %c0_7 = arith.constant 0 : index
      %11 = vector.load %arg5[%c0_6, %c0_7] : memref<8x128xf32, #tpu.memory_space<vmem>>, vector<8x128xf32>
      %c0_8 = arith.constant 0 : index
      %c0_9 = arith.constant 0 : index
      %12 = vector.load %arg6[%c0_8, %c0_9] : memref<8x128xf32, #tpu.memory_space<vmem>>, vector<8x128xf32>
      %c0_10 = arith.constant 0 : index
      %c7 = arith.constant 7 : index
      %c0_11 = arith.constant 0 : index
      %c0_12 = arith.constant 0 : index
      %13 = vector.load %arg2[%c0_10, %c7, %c0_11, %c0_12] : memref<1x8x8x512xbf16, #tpu.memory_space<vmem>>, vector<1x1x8x512xbf16>
      %14 = vector.shape_cast %13 : vector<1x1x8x512xbf16> to vector<8x512xbf16>
      %15 = arith.extf %14 : vector<8x512xbf16> to vector<8x512xf32>
      %16 = arith.truncf %11 : vector<8x128xf32> to vector<8x128xbf16>
      %cst = arith.constant dense<0.000000e+00> : vector<8x512xf32>
      %17 = tpu.matmul %16, %4, %cst {dimension_numbers = #tpu.dot_dimension_numbers<[1], [0], [0], [1], [0, 0, 1, 1], [], []>} : vector<8x128xbf16>, vector<128x512xbf16>, vector<8x512xf32> -> vector<8x512xf32>
      %18 = arith.addf %15, %17 : vector<8x512xf32>
      %19 = vector.extract_strided_slice %18 {offsets = [0, 0], sizes = [8, 128], strides = [1, 1]} : vector<8x512xf32> to vector<8x128xf32>
      %cst_13 = arith.constant 5.000000e-01 : f32
      %20 = vector.broadcast %cst_13 : f32 to vector<8x128xf32>
      %21 = arith.mulf %20, %19 : vector<8x128xf32>
      %22 = math.tanh %21 : vector<8x128xf32>
      %cst_14 = arith.constant 5.000000e-01 : f32
      %23 = vector.broadcast %cst_14 : f32 to vector<8x128xf32>
      %24 = arith.mulf %23, %22 : vector<8x128xf32>
      %cst_15 = arith.constant 5.000000e-01 : f32
      %25 = vector.broadcast %cst_15 : f32 to vector<8x128xf32>
      %26 = arith.addf %24, %25 : vector<8x128xf32>
      %27 = vector.extract_strided_slice %18 {offsets = [0, 128], sizes = [8, 128], strides = [1, 1]} : vector<8x512xf32> to vector<8x128xf32>
      %cst_16 = arith.constant 5.000000e-01 : f32
      %28 = vector.broadcast %cst_16 : f32 to vector<8x128xf32>
      %29 = arith.mulf %28, %27 : vector<8x128xf32>
      %30 = math.tanh %29 : vector<8x128xf32>
      %cst_17 = arith.constant 5.000000e-01 : f32
      %31 = vector.broadcast %cst_17 : f32 to vector<8x128xf32>
      %32 = arith.mulf %31, %30 : vector<8x128xf32>
      %cst_18 = arith.constant 5.000000e-01 : f32
      %33 = vector.broadcast %cst_18 : f32 to vector<8x128xf32>
      %34 = arith.addf %32, %33 : vector<8x128xf32>
      %35 = vector.extract_strided_slice %18 {offsets = [0, 256], sizes = [8, 128], strides = [1, 1]} : vector<8x512xf32> to vector<8x128xf32>
      %36 = math.tanh %35 : vector<8x128xf32>
      %37 = vector.extract_strided_slice %18 {offsets = [0, 384], sizes = [8, 128], strides = [1, 1]} : vector<8x512xf32> to vector<8x128xf32>
      %cst_19 = arith.constant 5.000000e-01 : f32
      %38 = vector.broadcast %cst_19 : f32 to vector<8x128xf32>
      %39 = arith.mulf %38, %37 : vector<8x128xf32>
      %40 = math.tanh %39 : vector<8x128xf32>
      %cst_20 = arith.constant 5.000000e-01 : f32
      %41 = vector.broadcast %cst_20 : f32 to vector<8x128xf32>
      %42 = arith.mulf %41, %40 : vector<8x128xf32>
      %cst_21 = arith.constant 5.000000e-01 : f32
      %43 = vector.broadcast %cst_21 : f32 to vector<8x128xf32>
      %44 = arith.addf %42, %43 : vector<8x128xf32>
      %45 = arith.mulf %34, %12 : vector<8x128xf32>
      %46 = arith.mulf %26, %36 : vector<8x128xf32>
      %47 = arith.addf %45, %46 : vector<8x128xf32>
      %48 = math.tanh %47 : vector<8x128xf32>
      %49 = arith.mulf %44, %48 : vector<8x128xf32>
      %50 = arith.truncf %49 : vector<8x128xf32> to vector<8x128xbf16>
      %c7_22 = arith.constant 7 : index
      %c0_23 = arith.constant 0 : index
      %c0_24 = arith.constant 0 : index
      %51 = vector.load %arg4[%c7_22, %c0_23, %c0_24] : memref<8x8x128xbf16, #tpu.memory_space<vmem>>, vector<1x8x128xbf16>
      %52 = vector.shape_cast %51 : vector<1x8x128xbf16> to vector<8x128xbf16>
      %53 = vector.shape_cast %50 : vector<8x128xbf16> to vector<1x8x128xbf16>
      tpu.vector_store %arg4[%c7_22, %c0_23, %c0_24], %53 {strides = array<i32>} : memref<8x8x128xbf16, #tpu.memory_space<vmem>>, vector<1x8x128xbf16>,
      %c0_25 = arith.constant 0 : index
      %c6 = arith.constant 6 : index
      %c0_26 = arith.constant 0 : index
      %c0_27 = arith.constant 0 : index
      %54 = vector.load %arg2[%c0_25, %c6, %c0_26, %c0_27] : memref<1x8x8x512xbf16, #tpu.memory_space<vmem>>, vector<1x1x8x512xbf16>
      %55 = vector.shape_cast %54 : vector<1x1x8x512xbf16> to vector<8x512xbf16>
      %56 = arith.extf %55 : vector<8x512xbf16> to vector<8x512xf32>
      %57 = arith.truncf %49 : vector<8x128xf32> to vector<8x128xbf16>
      %cst_28 = arith.constant dense<0.000000e+00> : vector<8x512xf32>
      %58 = tpu.matmul %57, %4, %cst_28 {dimension_numbers = #tpu.dot_dimension_numbers<[1], [0], [0], [1], [0, 0, 1, 1], [], []>} : vector<8x128xbf16>, vector<128x512xbf16>, vector<8x512xf32> -> vector<8x512xf32>
      %59 = arith.addf %56, %58 : vector<8x512xf32>
      %60 = vector.extract_strided_slice %59 {offsets = [0, 0], sizes = [8, 128], strides = [1, 1]} : vector<8x512xf32> to vector<8x128xf32>
      %cst_29 = arith.constant 5.000000e-01 : f32
      %61 = vector.broadcast %cst_29 : f32 to vector<8x128xf32>
      %62 = arith.mulf %61, %60 : vector<8x128xf32>
      %63 = math.tanh %62 : vector<8x128xf32>
      %cst_30 = arith.constant 5.000000e-01 : f32
      %64 = vector.broadcast %cst_30 : f32 to vector<8x128xf32>
      %65 = arith.mulf %64, %63 : vector<8x128xf32>
      %cst_31 = arith.constant 5.000000e-01 : f32
      %66 = vector.broadcast %cst_31 : f32 to vector<8x128xf32>
      %67 = arith.addf %65, %66 : vector<8x128xf32>
      %68 = vector.extract_strided_slice %59 {offsets = [0, 128], sizes = [8, 128], strides = [1, 1]} : vector<8x512xf32> to vector<8x128xf32>
      %cst_32 = arith.constant 5.000000e-01 : f32
      %69 = vector.broadcast %cst_32 : f32 to vector<8x128xf32>
      %70 = arith.mulf %69, %68 : vector<8x128xf32>
      %71 = math.tanh %70 : vector<8x128xf32>
      %cst_33 = arith.constant 5.000000e-01 : f32
      %72 = vector.broadcast %cst_33 : f32 to vector<8x128xf32>
      %73 = arith.mulf %72, %71 : vector<8x128xf32>
      %cst_34 = arith.constant 5.000000e-01 : f32
      %74 = vector.broadcast %cst_34 : f32 to vector<8x128xf32>
      %75 = arith.addf %73, %74 : vector<8x128xf32>
      %76 = vector.extract_strided_slice %59 {offsets = [0, 256], sizes = [8, 128], strides = [1, 1]} : vector<8x512xf32> to vector<8x128xf32>
      %77 = math.tanh %76 : vector<8x128xf32>
      %78 = vector.extract_strided_slice %59 {offsets = [0, 384], sizes = [8, 128], strides = [1, 1]} : vector<8x512xf32> to vector<8x128xf32>
      %cst_35 = arith.constant 5.000000e-01 : f32
      %79 = vector.broadcast %cst_35 : f32 to vector<8x128xf32>
      %80 = arith.mulf %79, %78 : vector<8x128xf32>
      %81 = math.tanh %80 : vector<8x128xf32>
      %cst_36 = arith.constant 5.000000e-01 : f32
      %82 = vector.broadcast %cst_36 : f32 to vector<8x128xf32>
      %83 = arith.mulf %82, %81 : vector<8x128xf32>
      %cst_37 = arith.constant 5.000000e-01 : f32
      %84 = vector.broadcast %cst_37 : f32 to vector<8x128xf32>
      %85 = arith.addf %83, %84 : vector<8x128xf32>
      %86 = arith.mulf %75, %47 : vector<8x128xf32>
      %87 = arith.mulf %67, %77 : vector<8x128xf32>
      %88 = arith.addf %86, %87 : vector<8x128xf32>
      %89 = math.tanh %88 : vector<8x128xf32>
      %90 = arith.mulf %85, %89 : vector<8x128xf32>
      %91 = arith.truncf %90 : vector<8x128xf32> to vector<8x128xbf16>
      %c6_38 = arith.constant 6 : index
      %c0_39 = arith.constant 0 : index
      %c0_40 = arith.constant 0 : index
      %92 = vector.load %arg4[%c6_38, %c0_39, %c0_40] : memref<8x8x128xbf16, #tpu.memory_space<vmem>>, vector<1x8x128xbf16>
      %93 = vector.shape_cast %92 : vector<1x8x128xbf16> to vector<8x128xbf16>
      %94 = vector.shape_cast %91 : vector<8x128xbf16> to vector<1x8x128xbf16>
      tpu.vector_store %arg4[%c6_38, %c0_39, %c0_40], %94 {strides = array<i32>} : memref<8x8x128xbf16, #tpu.memory_space<vmem>>, vector<1x8x128xbf16>,
      %c0_41 = arith.constant 0 : index
      %c5 = arith.constant 5 : index
      %c0_42 = arith.constant 0 : index
      %c0_43 = arith.constant 0 : index
      %95 = vector.load %arg2[%c0_41, %c5, %c0_42, %c0_43] : memref<1x8x8x512xbf16, #tpu.memory_space<vmem>>, vector<1x1x8x512xbf16>
      %96 = vector.shape_cast %95 : vector<1x1x8x512xbf16> to vector<8x512xbf16>
      %97 = arith.extf %96 : vector<8x512xbf16> to vector<8x512xf32>
      %98 = arith.truncf %90 : vector<8x128xf32> to vector<8x128xbf16>
      %cst_44 = arith.constant dense<0.000000e+00> : vector<8x512xf32>
      %99 = tpu.matmul %98, %4, %cst_44 {dimension_numbers = #tpu.dot_dimension_numbers<[1], [0], [0], [1], [0, 0, 1, 1], [], []>} : vector<8x128xbf16>, vector<128x512xbf16>, vector<8x512xf32> -> vector<8x512xf32>
      %100 = arith.addf %97, %99 : vector<8x512xf32>
      %101 = vector.extract_strided_slice %100 {offsets = [0, 0], sizes = [8, 128], strides = [1, 1]} : vector<8x512xf32> to vector<8x128xf32>
      %cst_45 = arith.constant 5.000000e-01 : f32
      %102 = vector.broadcast %cst_45 : f32 to vector<8x128xf32>
      %103 = arith.mulf %102, %101 : vector<8x128xf32>
      %104 = math.tanh %103 : vector<8x128xf32>
      %cst_46 = arith.constant 5.000000e-01 : f32
      %105 = vector.broadcast %cst_46 : f32 to vector<8x128xf32>
      %106 = arith.mulf %105, %104 : vector<8x128xf32>
      %cst_47 = arith.constant 5.000000e-01 : f32
      %107 = vector.broadcast %cst_47 : f32 to vector<8x128xf32>
      %108 = arith.addf %106, %107 : vector<8x128xf32>
      %109 = vector.extract_strided_slice %100 {offsets = [0, 128], sizes = [8, 128], strides = [1, 1]} : vector<8x512xf32> to vector<8x128xf32>
      %cst_48 = arith.constant 5.000000e-01 : f32
      %110 = vector.broadcast %cst_48 : f32 to vector<8x128xf32>
      %111 = arith.mulf %110, %109 : vector<8x128xf32>
      %112 = math.tanh %111 : vector<8x128xf32>
      %cst_49 = arith.constant 5.000000e-01 : f32
      %113 = vector.broadcast %cst_49 : f32 to vector<8x128xf32>
      %114 = arith.mulf %113, %112 : vector<8x128xf32>
      %cst_50 = arith.constant 5.000000e-01 : f32
      %115 = vector.broadcast %cst_50 : f32 to vector<8x128xf32>
      %116 = arith.addf %114, %115 : vector<8x128xf32>
      %117 = vector.extract_strided_slice %100 {offsets = [0, 256], sizes = [8, 128], strides = [1, 1]} : vector<8x512xf32> to vector<8x128xf32>
      %118 = math.tanh %117 : vector<8x128xf32>
      %119 = vector.extract_strided_slice %100 {offsets = [0, 384], sizes = [8, 128], strides = [1, 1]} : vector<8x512xf32> to vector<8x128xf32>
      %cst_51 = arith.constant 5.000000e-01 : f32
      %120 = vector.broadcast %cst_51 : f32 to vector<8x128xf32>
      %121 = arith.mulf %120, %119 : vector<8x128xf32>
      %122 = math.tanh %121 : vector<8x128xf32>
      %cst_52 = arith.constant 5.000000e-01 : f32
      %123 = vector.broadcast %cst_52 : f32 to vector<8x128xf32>
      %124 = arith.mulf %123, %122 : vector<8x128xf32>
      %cst_53 = arith.constant 5.000000e-01 : f32
      %125 = vector.broadcast %cst_53 : f32 to vector<8x128xf32>
      %126 = arith.addf %124, %125 : vector<8x128xf32>
      %127 = arith.mulf %116, %88 : vector<8x128xf32>
      %128 = arith.mulf %108, %118 : vector<8x128xf32>
      %129 = arith.addf %127, %128 : vector<8x128xf32>
      %130 = math.tanh %129 : vector<8x128xf32>
      %131 = arith.mulf %126, %130 : vector<8x128xf32>
      %132 = arith.truncf %131 : vector<8x128xf32> to vector<8x128xbf16>
      %c5_54 = arith.constant 5 : index
      %c0_55 = arith.constant 0 : index
      %c0_56 = arith.constant 0 : index
      %133 = vector.load %arg4[%c5_54, %c0_55, %c0_56] : memref<8x8x128xbf16, #tpu.memory_space<vmem>>, vector<1x8x128xbf16>
      %134 = vector.shape_cast %133 : vector<1x8x128xbf16> to vector<8x128xbf16>
      %135 = vector.shape_cast %132 : vector<8x128xbf16> to vector<1x8x128xbf16>
      tpu.vector_store %arg4[%c5_54, %c0_55, %c0_56], %135 {strides = array<i32>} : memref<8x8x128xbf16, #tpu.memory_space<vmem>>, vector<1x8x128xbf16>,
      %c0_57 = arith.constant 0 : index
      %c4 = arith.constant 4 : index
      %c0_58 = arith.constant 0 : index
      %c0_59 = arith.constant 0 : index
      %136 = vector.load %arg2[%c0_57, %c4, %c0_58, %c0_59] : memref<1x8x8x512xbf16, #tpu.memory_space<vmem>>, vector<1x1x8x512xbf16>
      %137 = vector.shape_cast %136 : vector<1x1x8x512xbf16> to vector<8x512xbf16>
      %138 = arith.extf %137 : vector<8x512xbf16> to vector<8x512xf32>
      %139 = arith.truncf %131 : vector<8x128xf32> to vector<8x128xbf16>
      %cst_60 = arith.constant dense<0.000000e+00> : vector<8x512xf32>
      %140 = tpu.matmul %139, %4, %cst_60 {dimension_numbers = #tpu.dot_dimension_numbers<[1], [0], [0], [1], [0, 0, 1, 1], [], []>} : vector<8x128xbf16>, vector<128x512xbf16>, vector<8x512xf32> -> vector<8x512xf32>
      %141 = arith.addf %138, %140 : vector<8x512xf32>
      %142 = vector.extract_strided_slice %141 {offsets = [0, 0], sizes = [8, 128], strides = [1, 1]} : vector<8x512xf32> to vector<8x128xf32>
      %cst_61 = arith.constant 5.000000e-01 : f32
      %143 = vector.broadcast %cst_61 : f32 to vector<8x128xf32>
      %144 = arith.mulf %143, %142 : vector<8x128xf32>
      %145 = math.tanh %144 : vector<8x128xf32>
      %cst_62 = arith.constant 5.000000e-01 : f32
      %146 = vector.broadcast %cst_62 : f32 to vector<8x128xf32>
      %147 = arith.mulf %146, %145 : vector<8x128xf32>
      %cst_63 = arith.constant 5.000000e-01 : f32
      %148 = vector.broadcast %cst_63 : f32 to vector<8x128xf32>
      %149 = arith.addf %147, %148 : vector<8x128xf32>
      %150 = vector.extract_strided_slice %141 {offsets = [0, 128], sizes = [8, 128], strides = [1, 1]} : vector<8x512xf32> to vector<8x128xf32>
      %cst_64 = arith.constant 5.000000e-01 : f32
      %151 = vector.broadcast %cst_64 : f32 to vector<8x128xf32>
      %152 = arith.mulf %151, %150 : vector<8x128xf32>
      %153 = math.tanh %152 : vector<8x128xf32>
      %cst_65 = arith.constant 5.000000e-01 : f32
      %154 = vector.broadcast %cst_65 : f32 to vector<8x128xf32>
      %155 = arith.mulf %154, %153 : vector<8x128xf32>
      %cst_66 = arith.constant 5.000000e-01 : f32
      %156 = vector.broadcast %cst_66 : f32 to vector<8x128xf32>
      %157 = arith.addf %155, %156 : vector<8x128xf32>
      %158 = vector.extract_strided_slice %141 {offsets = [0, 256], sizes = [8, 128], strides = [1, 1]} : vector<8x512xf32> to vector<8x128xf32>
      %159 = math.tanh %158 : vector<8x128xf32>
      %160 = vector.extract_strided_slice %141 {offsets = [0, 384], sizes = [8, 128], strides = [1, 1]} : vector<8x512xf32> to vector<8x128xf32>
      %cst_67 = arith.constant 5.000000e-01 : f32
      %161 = vector.broadcast %cst_67 : f32 to vector<8x128xf32>
      %162 = arith.mulf %161, %160 : vector<8x128xf32>
      %163 = math.tanh %162 : vector<8x128xf32>
      %cst_68 = arith.constant 5.000000e-01 : f32
      %164 = vector.broadcast %cst_68 : f32 to vector<8x128xf32>
      %165 = arith.mulf %164, %163 : vector<8x128xf32>
      %cst_69 = arith.constant 5.000000e-01 : f32
      %166 = vector.broadcast %cst_69 : f32 to vector<8x128xf32>
      %167 = arith.addf %165, %166 : vector<8x128xf32>
      %168 = arith.mulf %157, %129 : vector<8x128xf32>
      %169 = arith.mulf %149, %159 : vector<8x128xf32>
      %170 = arith.addf %168, %169 : vector<8x128xf32>
      %171 = math.tanh %170 : vector<8x128xf32>
      %172 = arith.mulf %167, %171 : vector<8x128xf32>
      %173 = arith.truncf %172 : vector<8x128xf32> to vector<8x128xbf16>
      %c4_70 = arith.constant 4 : index
      %c0_71 = arith.constant 0 : index
      %c0_72 = arith.constant 0 : index
      %174 = vector.load %arg4[%c4_70, %c0_71, %c0_72] : memref<8x8x128xbf16, #tpu.memory_space<vmem>>, vector<1x8x128xbf16>
      %175 = vector.shape_cast %174 : vector<1x8x128xbf16> to vector<8x128xbf16>
      %176 = vector.shape_cast %173 : vector<8x128xbf16> to vector<1x8x128xbf16>
      tpu.vector_store %arg4[%c4_70, %c0_71, %c0_72], %176 {strides = array<i32>} : memref<8x8x128xbf16, #tpu.memory_space<vmem>>, vector<1x8x128xbf16>,
      %c0_73 = arith.constant 0 : index
      %c3 = arith.constant 3 : index
      %c0_74 = arith.constant 0 : index
      %c0_75 = arith.constant 0 : index
      %177 = vector.load %arg2[%c0_73, %c3, %c0_74, %c0_75] : memref<1x8x8x512xbf16, #tpu.memory_space<vmem>>, vector<1x1x8x512xbf16>
      %178 = vector.shape_cast %177 : vector<1x1x8x512xbf16> to vector<8x512xbf16>
      %179 = arith.extf %178 : vector<8x512xbf16> to vector<8x512xf32>
      %180 = arith.truncf %172 : vector<8x128xf32> to vector<8x128xbf16>
      %cst_76 = arith.constant dense<0.000000e+00> : vector<8x512xf32>
      %181 = tpu.matmul %180, %4, %cst_76 {dimension_numbers = #tpu.dot_dimension_numbers<[1], [0], [0], [1], [0, 0, 1, 1], [], []>} : vector<8x128xbf16>, vector<128x512xbf16>, vector<8x512xf32> -> vector<8x512xf32>
      %182 = arith.addf %179, %181 : vector<8x512xf32>
      %183 = vector.extract_strided_slice %182 {offsets = [0, 0], sizes = [8, 128], strides = [1, 1]} : vector<8x512xf32> to vector<8x128xf32>
      %cst_77 = arith.constant 5.000000e-01 : f32
      %184 = vector.broadcast %cst_77 : f32 to vector<8x128xf32>
      %185 = arith.mulf %184, %183 : vector<8x128xf32>
      %186 = math.tanh %185 : vector<8x128xf32>
      %cst_78 = arith.constant 5.000000e-01 : f32
      %187 = vector.broadcast %cst_78 : f32 to vector<8x128xf32>
      %188 = arith.mulf %187, %186 : vector<8x128xf32>
      %cst_79 = arith.constant 5.000000e-01 : f32
      %189 = vector.broadcast %cst_79 : f32 to vector<8x128xf32>
      %190 = arith.addf %188, %189 : vector<8x128xf32>
      %191 = vector.extract_strided_slice %182 {offsets = [0, 128], sizes = [8, 128], strides = [1, 1]} : vector<8x512xf32> to vector<8x128xf32>
      %cst_80 = arith.constant 5.000000e-01 : f32
      %192 = vector.broadcast %cst_80 : f32 to vector<8x128xf32>
      %193 = arith.mulf %192, %191 : vector<8x128xf32>
      %194 = math.tanh %193 : vector<8x128xf32>
      %cst_81 = arith.constant 5.000000e-01 : f32
      %195 = vector.broadcast %cst_81 : f32 to vector<8x128xf32>
      %196 = arith.mulf %195, %194 : vector<8x128xf32>
      %cst_82 = arith.constant 5.000000e-01 : f32
      %197 = vector.broadcast %cst_82 : f32 to vector<8x128xf32>
      %198 = arith.addf %196, %197 : vector<8x128xf32>
      %199 = vector.extract_strided_slice %182 {offsets = [0, 256], sizes = [8, 128], strides = [1, 1]} : vector<8x512xf32> to vector<8x128xf32>
      %200 = math.tanh %199 : vector<8x128xf32>
      %201 = vector.extract_strided_slice %182 {offsets = [0, 384], sizes = [8, 128], strides = [1, 1]} : vector<8x512xf32> to vector<8x128xf32>
      %cst_83 = arith.constant 5.000000e-01 : f32
      %202 = vector.broadcast %cst_83 : f32 to vector<8x128xf32>
      %203 = arith.mulf %202, %201 : vector<8x128xf32>
      %204 = math.tanh %203 : vector<8x128xf32>
      %cst_84 = arith.constant 5.000000e-01 : f32
      %205 = vector.broadcast %cst_84 : f32 to vector<8x128xf32>
      %206 = arith.mulf %205, %204 : vector<8x128xf32>
      %cst_85 = arith.constant 5.000000e-01 : f32
      %207 = vector.broadcast %cst_85 : f32 to vector<8x128xf32>
      %208 = arith.addf %206, %207 : vector<8x128xf32>
      %209 = arith.mulf %198, %170 : vector<8x128xf32>
      %210 = arith.mulf %190, %200 : vector<8x128xf32>
      %211 = arith.addf %209, %210 : vector<8x128xf32>
      %212 = math.tanh %211 : vector<8x128xf32>
      %213 = arith.mulf %208, %212 : vector<8x128xf32>
      %214 = arith.truncf %213 : vector<8x128xf32> to vector<8x128xbf16>
      %c3_86 = arith.constant 3 : index
      %c0_87 = arith.constant 0 : index
      %c0_88 = arith.constant 0 : index
      %215 = vector.load %arg4[%c3_86, %c0_87, %c0_88] : memref<8x8x128xbf16, #tpu.memory_space<vmem>>, vector<1x8x128xbf16>
      %216 = vector.shape_cast %215 : vector<1x8x128xbf16> to vector<8x128xbf16>
      %217 = vector.shape_cast %214 : vector<8x128xbf16> to vector<1x8x128xbf16>
      tpu.vector_store %arg4[%c3_86, %c0_87, %c0_88], %217 {strides = array<i32>} : memref<8x8x128xbf16, #tpu.memory_space<vmem>>, vector<1x8x128xbf16>,
      %c0_89 = arith.constant 0 : index
      %c2 = arith.constant 2 : index
      %c0_90 = arith.constant 0 : index
      %c0_91 = arith.constant 0 : index
      %218 = vector.load %arg2[%c0_89, %c2, %c0_90, %c0_91] : memref<1x8x8x512xbf16, #tpu.memory_space<vmem>>, vector<1x1x8x512xbf16>
      %219 = vector.shape_cast %218 : vector<1x1x8x512xbf16> to vector<8x512xbf16>
      %220 = arith.extf %219 : vector<8x512xbf16> to vector<8x512xf32>
      %221 = arith.truncf %213 : vector<8x128xf32> to vector<8x128xbf16>
      %cst_92 = arith.constant dense<0.000000e+00> : vector<8x512xf32>
      %222 = tpu.matmul %221, %4, %cst_92 {dimension_numbers = #tpu.dot_dimension_numbers<[1], [0], [0], [1], [0, 0, 1, 1], [], []>} : vector<8x128xbf16>, vector<128x512xbf16>, vector<8x512xf32> -> vector<8x512xf32>
      %223 = arith.addf %220, %222 : vector<8x512xf32>
      %224 = vector.extract_strided_slice %223 {offsets = [0, 0], sizes = [8, 128], strides = [1, 1]} : vector<8x512xf32> to vector<8x128xf32>
      %cst_93 = arith.constant 5.000000e-01 : f32
      %225 = vector.broadcast %cst_93 : f32 to vector<8x128xf32>
      %226 = arith.mulf %225, %224 : vector<8x128xf32>
      %227 = math.tanh %226 : vector<8x128xf32>
      %cst_94 = arith.constant 5.000000e-01 : f32
      %228 = vector.broadcast %cst_94 : f32 to vector<8x128xf32>
      %229 = arith.mulf %228, %227 : vector<8x128xf32>
      %cst_95 = arith.constant 5.000000e-01 : f32
      %230 = vector.broadcast %cst_95 : f32 to vector<8x128xf32>
      %231 = arith.addf %229, %230 : vector<8x128xf32>
      %232 = vector.extract_strided_slice %223 {offsets = [0, 128], sizes = [8, 128], strides = [1, 1]} : vector<8x512xf32> to vector<8x128xf32>
      %cst_96 = arith.constant 5.000000e-01 : f32
      %233 = vector.broadcast %cst_96 : f32 to vector<8x128xf32>
      %234 = arith.mulf %233, %232 : vector<8x128xf32>
      %235 = math.tanh %234 : vector<8x128xf32>
      %cst_97 = arith.constant 5.000000e-01 : f32
      %236 = vector.broadcast %cst_97 : f32 to vector<8x128xf32>
      %237 = arith.mulf %236, %235 : vector<8x128xf32>
      %cst_98 = arith.constant 5.000000e-01 : f32
      %238 = vector.broadcast %cst_98 : f32 to vector<8x128xf32>
      %239 = arith.addf %237, %238 : vector<8x128xf32>
      %240 = vector.extract_strided_slice %223 {offsets = [0, 256], sizes = [8, 128], strides = [1, 1]} : vector<8x512xf32> to vector<8x128xf32>
      %241 = math.tanh %240 : vector<8x128xf32>
      %242 = vector.extract_strided_slice %223 {offsets = [0, 384], sizes = [8, 128], strides = [1, 1]} : vector<8x512xf32> to vector<8x128xf32>
      %cst_99 = arith.constant 5.000000e-01 : f32
      %243 = vector.broadcast %cst_99 : f32 to vector<8x128xf32>
      %244 = arith.mulf %243, %242 : vector<8x128xf32>
      %245 = math.tanh %244 : vector<8x128xf32>
      %cst_100 = arith.constant 5.000000e-01 : f32
      %246 = vector.broadcast %cst_100 : f32 to vector<8x128xf32>
      %247 = arith.mulf %246, %245 : vector<8x128xf32>
      %cst_101 = arith.constant 5.000000e-01 : f32
      %248 = vector.broadcast %cst_101 : f32 to vector<8x128xf32>
      %249 = arith.addf %247, %248 : vector<8x128xf32>
      %250 = arith.mulf %239, %211 : vector<8x128xf32>
      %251 = arith.mulf %231, %241 : vector<8x128xf32>
      %252 = arith.addf %250, %251 : vector<8x128xf32>
      %253 = math.tanh %252 : vector<8x128xf32>
      %254 = arith.mulf %249, %253 : vector<8x128xf32>
      %255 = arith.truncf %254 : vector<8x128xf32> to vector<8x128xbf16>
      %c2_102 = arith.constant 2 : index
      %c0_103 = arith.constant 0 : index
      %c0_104 = arith.constant 0 : index
      %256 = vector.load %arg4[%c2_102, %c0_103, %c0_104] : memref<8x8x128xbf16, #tpu.memory_space<vmem>>, vector<1x8x128xbf16>
      %257 = vector.shape_cast %256 : vector<1x8x128xbf16> to vector<8x128xbf16>
      %258 = vector.shape_cast %255 : vector<8x128xbf16> to vector<1x8x128xbf16>
      tpu.vector_store %arg4[%c2_102, %c0_103, %c0_104], %258 {strides = array<i32>} : memref<8x8x128xbf16, #tpu.memory_space<vmem>>, vector<1x8x128xbf16>,
      %c0_105 = arith.constant 0 : index
      %c1 = arith.constant 1 : index
      %c0_106 = arith.constant 0 : index
      %c0_107 = arith.constant 0 : index
      %259 = vector.load %arg2[%c0_105, %c1, %c0_106, %c0_107] : memref<1x8x8x512xbf16, #tpu.memory_space<vmem>>, vector<1x1x8x512xbf16>
      %260 = vector.shape_cast %259 : vector<1x1x8x512xbf16> to vector<8x512xbf16>
      %261 = arith.extf %260 : vector<8x512xbf16> to vector<8x512xf32>
      %262 = arith.truncf %254 : vector<8x128xf32> to vector<8x128xbf16>
      %cst_108 = arith.constant dense<0.000000e+00> : vector<8x512xf32>
      %263 = tpu.matmul %262, %4, %cst_108 {dimension_numbers = #tpu.dot_dimension_numbers<[1], [0], [0], [1], [0, 0, 1, 1], [], []>} : vector<8x128xbf16>, vector<128x512xbf16>, vector<8x512xf32> -> vector<8x512xf32>
      %264 = arith.addf %261, %263 : vector<8x512xf32>
      %265 = vector.extract_strided_slice %264 {offsets = [0, 0], sizes = [8, 128], strides = [1, 1]} : vector<8x512xf32> to vector<8x128xf32>
      %cst_109 = arith.constant 5.000000e-01 : f32
      %266 = vector.broadcast %cst_109 : f32 to vector<8x128xf32>
      %267 = arith.mulf %266, %265 : vector<8x128xf32>
      %268 = math.tanh %267 : vector<8x128xf32>
      %cst_110 = arith.constant 5.000000e-01 : f32
      %269 = vector.broadcast %cst_110 : f32 to vector<8x128xf32>
      %270 = arith.mulf %269, %268 : vector<8x128xf32>
      %cst_111 = arith.constant 5.000000e-01 : f32
      %271 = vector.broadcast %cst_111 : f32 to vector<8x128xf32>
      %272 = arith.addf %270, %271 : vector<8x128xf32>
      %273 = vector.extract_strided_slice %264 {offsets = [0, 128], sizes = [8, 128], strides = [1, 1]} : vector<8x512xf32> to vector<8x128xf32>
      %cst_112 = arith.constant 5.000000e-01 : f32
      %274 = vector.broadcast %cst_112 : f32 to vector<8x128xf32>
      %275 = arith.mulf %274, %273 : vector<8x128xf32>
      %276 = math.tanh %275 : vector<8x128xf32>
      %cst_113 = arith.constant 5.000000e-01 : f32
      %277 = vector.broadcast %cst_113 : f32 to vector<8x128xf32>
      %278 = arith.mulf %277, %276 : vector<8x128xf32>
      %cst_114 = arith.constant 5.000000e-01 : f32
      %279 = vector.broadcast %cst_114 : f32 to vector<8x128xf32>
      %280 = arith.addf %278, %279 : vector<8x128xf32>
      %281 = vector.extract_strided_slice %264 {offsets = [0, 256], sizes = [8, 128], strides = [1, 1]} : vector<8x512xf32> to vector<8x128xf32>
      %282 = math.tanh %281 : vector<8x128xf32>
      %283 = vector.extract_strided_slice %264 {offsets = [0, 384], sizes = [8, 128], strides = [1, 1]} : vector<8x512xf32> to vector<8x128xf32>
      %cst_115 = arith.constant 5.000000e-01 : f32
      %284 = vector.broadcast %cst_115 : f32 to vector<8x128xf32>
      %285 = arith.mulf %284, %283 : vector<8x128xf32>
      %286 = math.tanh %285 : vector<8x128xf32>
      %cst_116 = arith.constant 5.000000e-01 : f32
      %287 = vector.broadcast %cst_116 : f32 to vector<8x128xf32>
      %288 = arith.mulf %287, %286 : vector<8x128xf32>
      %cst_117 = arith.constant 5.000000e-01 : f32
      %289 = vector.broadcast %cst_117 : f32 to vector<8x128xf32>
      %290 = arith.addf %288, %289 : vector<8x128xf32>
      %291 = arith.mulf %280, %252 : vector<8x128xf32>
      %292 = arith.mulf %272, %282 : vector<8x128xf32>
      %293 = arith.addf %291, %292 : vector<8x128xf32>
      %294 = math.tanh %293 : vector<8x128xf32>
      %295 = arith.mulf %290, %294 : vector<8x128xf32>
      %296 = arith.truncf %295 : vector<8x128xf32> to vector<8x128xbf16>
      %c1_118 = arith.constant 1 : index
      %c0_119 = arith.constant 0 : index
      %c0_120 = arith.constant 0 : index
      %297 = vector.load %arg4[%c1_118, %c0_119, %c0_120] : memref<8x8x128xbf16, #tpu.memory_space<vmem>>, vector<1x8x128xbf16>
      %298 = vector.shape_cast %297 : vector<1x8x128xbf16> to vector<8x128xbf16>
      %299 = vector.shape_cast %296 : vector<8x128xbf16> to vector<1x8x128xbf16>
      tpu.vector_store %arg4[%c1_118, %c0_119, %c0_120], %299 {strides = array<i32>} : memref<8x8x128xbf16, #tpu.memory_space<vmem>>, vector<1x8x128xbf16>,
      %c0_121 = arith.constant 0 : index
      %c0_122 = arith.constant 0 : index
      %c0_123 = arith.constant 0 : index
      %c0_124 = arith.constant 0 : index
      %300 = vector.load %arg2[%c0_121, %c0_122, %c0_123, %c0_124] : memref<1x8x8x512xbf16, #tpu.memory_space<vmem>>, vector<1x1x8x512xbf16>
      %301 = vector.shape_cast %300 : vector<1x1x8x512xbf16> to vector<8x512xbf16>
      %302 = arith.extf %301 : vector<8x512xbf16> to vector<8x512xf32>
      %303 = arith.truncf %295 : vector<8x128xf32> to vector<8x128xbf16>
      %cst_125 = arith.constant dense<0.000000e+00> : vector<8x512xf32>
      %304 = tpu.matmul %303, %4, %cst_125 {dimension_numbers = #tpu.dot_dimension_numbers<[1], [0], [0], [1], [0, 0, 1, 1], [], []>} : vector<8x128xbf16>, vector<128x512xbf16>, vector<8x512xf32> -> vector<8x512xf32>
      %305 = arith.addf %302, %304 : vector<8x512xf32>
      %306 = vector.extract_strided_slice %305 {offsets = [0, 0], sizes = [8, 128], strides = [1, 1]} : vector<8x512xf32> to vector<8x128xf32>
      %cst_126 = arith.constant 5.000000e-01 : f32
      %307 = vector.broadcast %cst_126 : f32 to vector<8x128xf32>
      %308 = arith.mulf %307, %306 : vector<8x128xf32>
      %309 = math.tanh %308 : vector<8x128xf32>
      %cst_127 = arith.constant 5.000000e-01 : f32
      %310 = vector.broadcast %cst_127 : f32 to vector<8x128xf32>
      %311 = arith.mulf %310, %309 : vector<8x128xf32>
      %cst_128 = arith.constant 5.000000e-01 : f32
      %312 = vector.broadcast %cst_128 : f32 to vector<8x128xf32>
      %313 = arith.addf %311, %312 : vector<8x128xf32>
      %314 = vector.extract_strided_slice %305 {offsets = [0, 128], sizes = [8, 128], strides = [1, 1]} : vector<8x512xf32> to vector<8x128xf32>
      %cst_129 = arith.constant 5.000000e-01 : f32
      %315 = vector.broadcast %cst_129 : f32 to vector<8x128xf32>
      %316 = arith.mulf %315, %314 : vector<8x128xf32>
      %317 = math.tanh %316 : vector<8x128xf32>
      %cst_130 = arith.constant 5.000000e-01 : f32
      %318 = vector.broadcast %cst_130 : f32 to vector<8x128xf32>
      %319 = arith.mulf %318, %317 : vector<8x128xf32>
      %cst_131 = arith.constant 5.000000e-01 : f32
      %320 = vector.broadcast %cst_131 : f32 to vector<8x128xf32>
      %321 = arith.addf %319, %320 : vector<8x128xf32>
      %322 = vector.extract_strided_slice %305 {offsets = [0, 256], sizes = [8, 128], strides = [1, 1]} : vector<8x512xf32> to vector<8x128xf32>
      %323 = math.tanh %322 : vector<8x128xf32>
      %324 = vector.extract_strided_slice %305 {offsets = [0, 384], sizes = [8, 128], strides = [1, 1]} : vector<8x512xf32> to vector<8x128xf32>
      %cst_132 = arith.constant 5.000000e-01 : f32
      %325 = vector.broadcast %cst_132 : f32 to vector<8x128xf32>
      %326 = arith.mulf %325, %324 : vector<8x128xf32>
      %327 = math.tanh %326 : vector<8x128xf32>
      %cst_133 = arith.constant 5.000000e-01 : f32
      %328 = vector.broadcast %cst_133 : f32 to vector<8x128xf32>
      %329 = arith.mulf %328, %327 : vector<8x128xf32>
      %cst_134 = arith.constant 5.000000e-01 : f32
      %330 = vector.broadcast %cst_134 : f32 to vector<8x128xf32>
      %331 = arith.addf %329, %330 : vector<8x128xf32>
      %332 = arith.mulf %321, %293 : vector<8x128xf32>
      %333 = arith.mulf %313, %323 : vector<8x128xf32>
      %334 = arith.addf %332, %333 : vector<8x128xf32>
      %335 = math.tanh %334 : vector<8x128xf32>
      %336 = arith.mulf %331, %335 : vector<8x128xf32>
      %337 = arith.truncf %336 : vector<8x128xf32> to vector<8x128xbf16>
      %c0_135 = arith.constant 0 : index
      %c0_136 = arith.constant 0 : index
      %c0_137 = arith.constant 0 : index
      %338 = vector.load %arg4[%c0_135, %c0_136, %c0_137] : memref<8x8x128xbf16, #tpu.memory_space<vmem>>, vector<1x8x128xbf16>
      %339 = vector.shape_cast %338 : vector<1x8x128xbf16> to vector<8x128xbf16>
      %340 = vector.shape_cast %337 : vector<8x128xbf16> to vector<1x8x128xbf16>
      tpu.vector_store %arg4[%c0_135, %c0_136, %c0_137], %340 {strides = array<i32>} : memref<8x8x128xbf16, #tpu.memory_space<vmem>>, vector<1x8x128xbf16>,
      %c0_138 = arith.constant 0 : index
      %c0_139 = arith.constant 0 : index
      %341 = vector.load %arg5[%c0_138, %c0_139] : memref<8x128xf32, #tpu.memory_space<vmem>>, vector<8x128xf32>
      tpu.vector_store %arg5[%c0_138, %c0_139], %336 {strides = array<i32>} : memref<8x128xf32, #tpu.memory_space<vmem>>, vector<8x128xf32>,
      %c0_140 = arith.constant 0 : index
      %c0_141 = arith.constant 0 : index
      %342 = vector.load %arg6[%c0_140, %c0_141] : memref<8x128xf32, #tpu.memory_space<vmem>>, vector<8x128xf32>
      tpu.vector_store %arg6[%c0_140, %c0_141], %334 {strides = array<i32>} : memref<8x128xf32, #tpu.memory_space<vmem>>, vector<8x128xf32>,
    } else {
    }
    return
  }
  func.func @transform_0(%arg0: i32, %arg1: i32) -> (i32, i32, i32, i32) {
    %c2_i32 = arith.constant 2 : i32
    %0 = arith.muli %c2_i32, %arg1 : i32
    %c0_i32 = arith.constant 0 : i32
    %1 = arith.subi %c0_i32, %0 : i32
    %2 = arith.muli %arg0, %1 : i32
    %3 = arith.addi %arg1, %2 : i32
    %c0_i32_0 = arith.constant 0 : i32
    %c0_i32_1 = arith.constant 0 : i32
    %c0_i32_2 = arith.constant 0 : i32
    return %arg0, %3, %c0_i32_0, %c0_i32_1 : i32, i32, i32, i32
  }
  func.func @transform_1(%arg0: i32, %arg1: i32) -> (i32, i32, i32) {
    %c0_i32 = arith.constant 0 : i32
    %c0_i32_0 = arith.constant 0 : i32
    %c0_i32_1 = arith.constant 0 : i32
    return %arg0, %c0_i32, %c0_i32_0 : i32, i32, i32
  }
  func.func @transform_2(%arg0: i32, %arg1: i32) -> (i32, i32, i32) {
    %c2_i32 = arith.constant 2 : i32
    %0 = arith.muli %c2_i32, %arg1 : i32
    %c0_i32 = arith.constant 0 : i32
    %1 = arith.subi %c0_i32, %0 : i32
    %2 = arith.muli %arg0, %1 : i32
    %3 = arith.addi %arg1, %2 : i32
    %c0_i32_0 = arith.constant 0 : i32
    %c0_i32_1 = arith.constant 0 : i32
    return %3, %c0_i32_0, %arg0 : i32, i32, i32
  }
}

module attributes {stable_mosaic.version = 11 : i64} {
  func.func @_proj_kernel(%arg0: i32, %arg1: memref<8x8x256xbf16, #tpu.memory_space<vmem>>, %arg2: memref<256x1024xbf16, #tpu.memory_space<vmem>>, %arg3: memref<1x1024xf32, #tpu.memory_space<vmem>>, %arg4: memref<2x8x8x512xbf16, #tpu.memory_space<vmem>>) attributes {dimension_semantics = [#tpu.dimension_semantics<parallel>], iteration_bounds = array<i64: 1>, scalar_prefetch = 0 : i64, scratch_operands = 0 : i64, tpu.core_type = #tpu.core_type<tc>, window_params = [{transform_indices = @transform_0, window_bounds = array<i64: 8, 8, 256>}, {pipeline_mode = #tpu.pipeline_mode<synchronous>, transform_indices = @transform_1, window_bounds = array<i64: 256, 1024>}, {pipeline_mode = #tpu.pipeline_mode<synchronous>, transform_indices = @transform_2, window_bounds = array<i64: 1, 1024>}, {transform_indices = @transform_3, window_bounds = array<i64: 2, 8, 8, 512>}]} {
    %c0 = arith.constant 0 : index
    %c0_0 = arith.constant 0 : index
    %c0_1 = arith.constant 0 : index
    %0 = vector.load %arg1[%c0, %c0_0, %c0_1] : memref<8x8x256xbf16, #tpu.memory_space<vmem>>, vector<8x8x256xbf16>
    %1 = vector.shape_cast %0 : vector<8x8x256xbf16> to vector<64x256xbf16>
    %c0_2 = arith.constant 0 : index
    %c0_3 = arith.constant 0 : index
    %2 = vector.load %arg2[%c0_2, %c0_3] : memref<256x1024xbf16, #tpu.memory_space<vmem>>, vector<256x1024xbf16>
    %cst = arith.constant dense<0.000000e+00> : vector<64x1024xf32>
    %3 = tpu.matmul %1, %2, %cst {dimension_numbers = #tpu.dot_dimension_numbers<[1], [0], [0], [1], [0, 0, 1, 1], [], []>} : vector<64x256xbf16>, vector<256x1024xbf16>, vector<64x1024xf32> -> vector<64x1024xf32>
    %c0_4 = arith.constant 0 : index
    %c0_5 = arith.constant 0 : index
    %4 = vector.load %arg3[%c0_4, %c0_5] : memref<1x1024xf32, #tpu.memory_space<vmem>>, vector<1x1024xf32>
    %5 = vector.broadcast %4 : vector<1x1024xf32> to vector<64x1024xf32>
    %6 = arith.addf %3, %5 : vector<64x1024xf32>
    %7 = vector.extract_strided_slice %6 {offsets = [0, 0], sizes = [64, 512], strides = [1, 1]} : vector<64x1024xf32> to vector<64x512xf32>
    %8 = vector.shape_cast %7 : vector<64x512xf32> to vector<8x8x512xf32>
    %9 = arith.truncf %8 : vector<8x8x512xf32> to vector<8x8x512xbf16>
    %c0_6 = arith.constant 0 : index
    %c0_7 = arith.constant 0 : index
    %c0_8 = arith.constant 0 : index
    %c0_9 = arith.constant 0 : index
    %10 = vector.load %arg4[%c0_6, %c0_7, %c0_8, %c0_9] : memref<2x8x8x512xbf16, #tpu.memory_space<vmem>>, vector<1x8x8x512xbf16>
    %11 = vector.shape_cast %10 : vector<1x8x8x512xbf16> to vector<8x8x512xbf16>
    %12 = vector.shape_cast %9 : vector<8x8x512xbf16> to vector<1x8x8x512xbf16>
    tpu.vector_store %arg4[%c0_6, %c0_7, %c0_8, %c0_9], %12 {strides = array<i32>} : memref<2x8x8x512xbf16, #tpu.memory_space<vmem>>, vector<1x8x8x512xbf16>,
    %13 = vector.extract_strided_slice %6 {offsets = [0, 512], sizes = [64, 512], strides = [1, 1]} : vector<64x1024xf32> to vector<64x512xf32>
    %14 = vector.shape_cast %13 : vector<64x512xf32> to vector<8x8x512xf32>
    %15 = arith.truncf %14 : vector<8x8x512xf32> to vector<8x8x512xbf16>
    %c1 = arith.constant 1 : index
    %c0_10 = arith.constant 0 : index
    %c0_11 = arith.constant 0 : index
    %c0_12 = arith.constant 0 : index
    %16 = vector.load %arg4[%c1, %c0_10, %c0_11, %c0_12] : memref<2x8x8x512xbf16, #tpu.memory_space<vmem>>, vector<1x8x8x512xbf16>
    %17 = vector.shape_cast %16 : vector<1x8x8x512xbf16> to vector<8x8x512xbf16>
    %18 = vector.shape_cast %15 : vector<8x8x512xbf16> to vector<1x8x8x512xbf16>
    tpu.vector_store %arg4[%c1, %c0_10, %c0_11, %c0_12], %18 {strides = array<i32>} : memref<2x8x8x512xbf16, #tpu.memory_space<vmem>>, vector<1x8x8x512xbf16>,
    return
  }
  func.func @transform_0(%arg0: i32) -> (i32, i32, i32) {
    %c0_i32 = arith.constant 0 : i32
    %c0_i32_0 = arith.constant 0 : i32
    %c0_i32_1 = arith.constant 0 : i32
    return %arg0, %c0_i32, %c0_i32_0 : i32, i32, i32
  }
  func.func @transform_1(%arg0: i32) -> (i32, i32) {
    %c0_i32 = arith.constant 0 : i32
    %c0_i32_0 = arith.constant 0 : i32
    %c0_i32_1 = arith.constant 0 : i32
    return %c0_i32, %c0_i32_0 : i32, i32
  }
  func.func @transform_2(%arg0: i32) -> (i32, i32) {
    %c0_i32 = arith.constant 0 : i32
    %c0_i32_0 = arith.constant 0 : i32
    %c0_i32_1 = arith.constant 0 : i32
    return %c0_i32, %c0_i32_0 : i32, i32
  }
  func.func @transform_3(%arg0: i32) -> (i32, i32, i32, i32) {
    %c0_i32 = arith.constant 0 : i32
    %c0_i32_0 = arith.constant 0 : i32
    %c0_i32_1 = arith.constant 0 : i32
    %c0_i32_2 = arith.constant 0 : i32
    return %c0_i32, %arg0, %c0_i32_0, %c0_i32_1 : i32, i32, i32, i32
  }
}

</mosaic_0001>

<llo_original>
// kernel: audio_lstm_forward.4
$region0: #{audio_lstm_forward.4}
  #allocation0 [shape = 'u32[]', space=smem, size = 0x4, offset = 0x4, fixed_abs, tag = 'smem constant byte address 0x4 - core index']
  #allocation1 [shape = 'u32[72,128]{1,0:T(1,128)}', space=vmem, size = 0x9000, scoped, tag = 'internal scratch']
  %s0 = inlined_call_operand.vmem [shape: bf16[8,8,16], index: 0, kind: input, shape index: {}]
  %s1 = inlined_call_operand.vmem [shape: bf16[16,1024], index: 1, kind: input, shape index: {}]
  %s2 = inlined_call_operand.hbm [shape: f32[1,1024], index: 2, kind: input, shape index: {}]
  %s3 = inlined_call_operand.vmem [shape: bf16[2,8,8,512], index: 3, kind: output, shape index: {}]
  %s4 = sld [smem:[#allocation0]]
  $region26: #{audio_lstm_forward.4} parent=0
    _
  %s6 = ssub.s32 1, %s4
  %s7 = scalar_select 0, %s6, %s4
  $region1: #{audio_lstm_forward.4} parent=0
    #allocation2 [shape = 'u8[4096]{0}', space=vmem, size = 0x1000, scoped, tag = 'input window, operand 2, single buffered']
    #allocation3 [shape = 's32[1]{0}', space=sflag, size = 0x4, scoped, tag = 'scoped memory for audio_lstm_forward.4']
    %8 = vsyncpa [#allocation3], 0
    // Predicated region
    $region2: #{audio_lstm_forward.4} parent=1 // pred_check
      _
    $region3: #{audio_lstm_forward.4} parent=1 // pred_check_branch
      %10 = sbr.rel (0) target = $region5
    $region4: #{audio_lstm_forward.4} parent=1 // pred_region
      _
    $region5: #{audio_lstm_forward.4} parent=1 // pred_fallthru
      _
    // Predicated region
    $region6: #{audio_lstm_forward.4} parent=1 // pred_check
      _
    $region7: #{audio_lstm_forward.4} parent=1 // pred_check_branch
      %12 = sbr.rel (0) target = $region9
    $region8: #{audio_lstm_forward.4} parent=1 // pred_region
      _
    $region9: #{audio_lstm_forward.4} parent=1 // pred_fallthru
      _
    // Predicated region
    $region10: #{audio_lstm_forward.4} parent=1 // pred_check
      _
    $region11: #{audio_lstm_forward.4} parent=1 // pred_check_branch
      %14 = sbr.rel (0) target = $region13
    $region12: #{audio_lstm_forward.4} parent=1 // pred_region
      %16 = vsyncadd [#allocation3], 0
      %s18 = sshll.u32 %s2, 4
      %s19 = int_to_ptr.hbm [resolvable:$true] %s18
      %s20 = sshll.u32 [#allocation2], 4
      %s21 = int_to_ptr.vmem [resolvable:$true] %s20
      %23 = dma.hbm_to_vmem [thread:$0]  %s19, 128, %s21, [#allocation3]
    $region13: #{audio_lstm_forward.4} parent=1 // pred_fallthru
      _
    // Predicated region
    $region14: #{audio_lstm_forward.4} parent=1 // pred_check
      _
    $region15: #{audio_lstm_forward.4} parent=1 // pred_check_branch
      %25 = sbr.rel (0) target = $region17
    $region16: #{audio_lstm_forward.4} parent=1 // pred_region
      %27 = dma.done [#allocation3], 128
    $region17: #{audio_lstm_forward.4} parent=1 // pred_fallthru
      _
    %v29 = vld [vmem:[%s0] sm:$0xf]
    %v30 = vld [vmem:[%s0 + $0x4] sm:$0xf]
    %v31 = vld [vmem:[%s0 + $0x8] sm:$0xf]
    %v32 = vld [vmem:[%s0 + $0xc] sm:$0xf]
    %v33 = vld [vmem:[%s0 + $0x10] sm:$0xf]
    %v34 = vld [vmem:[%s0 + $0x14] sm:$0xf]
    %v35 = vld [vmem:[%s0 + $0x18] sm:$0xf]
    %v36 = vld [vmem:[%s0 + $0x1c] sm:$0xf]
    %v37 = vld [vmem:[%s1] sm:$0xff]
    %v38 = vld [vmem:[%s1 + $0x8] sm:$0xff]
    %v39 = vld [vmem:[%s1 + $0x10] sm:$0xff]
    %v40 = vld [vmem:[%s1 + $0x18] sm:$0xff]
    %v41 = vld [vmem:[%s1 + $0x20] sm:$0xff]
    %v42 = vld [vmem:[%s1 + $0x28] sm:$0xff]
    %v43 = vld [vmem:[%s1 + $0x30] sm:$0xff]
    %v44 = vld [vmem:[%s1 + $0x38] sm:$0xff]
    %v45 = vld [vmem:[#allocation2] sm:$0xff]
    %v47 = vperm.slane %v45, 0
    %v48 = vperm.slane %v45, 1
    %v49 = vperm.slane %v45, 2
    %v50 = vperm.slane %v45, 3
    %v51 = vperm.slane %v45, 4
    %v52 = vperm.slane %v45, 5
    %v53 = vperm.slane %v45, 6
    %v54 = vperm.slane %v45, 7
    %v71 = vunpack.c.l.b16 %v29
    %v72 = vunpack.c.l.b16 %v30
    %v73 = vunpack.c.l.b16 %v31
    %v74 = vunpack.c.l.b16 %v32
    %v75 = vunpack.c.l.b16 %v33
    %v76 = vunpack.c.l.b16 %v34
    %v77 = vunpack.c.l.b16 %v35
    %v78 = vunpack.c.l.b16 %v36
    %v79 = vpack.c.b16 %v72, %v71
    %v80 = vpack.c.b16 %v74, %v73
    %v81 = vpack.c.b16 %v76, %v75
    %v82 = vpack.c.b16 %v78, %v77
    %v91 = vunpack.c.l.b16 %v37
    %v92 = vunpack.c.h.b16 %v37
    %v93 = vunpack.c.l.b16 %v38
    %v94 = vunpack.c.h.b16 %v38
    %v95 = vunpack.c.l.b16 %v39
    %v96 = vunpack.c.h.b16 %v39
    %v97 = vunpack.c.l.b16 %v40
    %v98 = vunpack.c.h.b16 %v40
    %v99 = vunpack.c.l.b16 %v41
    %v100 = vunpack.c.h.b16 %v41
    %v101 = vunpack.c.l.b16 %v42
    %v102 = vunpack.c.h.b16 %v42
    %v103 = vunpack.c.l.b16 %v43
    %v104 = vunpack.c.h.b16 %v43
    %v105 = vunpack.c.l.b16 %v44
    %v106 = vunpack.c.h.b16 %v44
    %v107 = vpack.c.b16 %v99, %v91
    %v108 = vpack.c.b16 %v100, %v92
    %v109 = vpack.c.b16 %v101, %v93
    %v110 = vpack.c.b16 %v102, %v94
    %v111 = vpack.c.b16 %v103, %v95
    %v112 = vpack.c.b16 %v104, %v96
    %v113 = vpack.c.b16 %v105, %v97
    %v114 = vpack.c.b16 %v106, %v98
    %vm123 = vcmask 130048
    %v125 = vsel %vm123, %v79, 0
    %v128 = vsel %vm123, %v80, 0
    %v131 = vsel %vm123, %v81, 0
    %v134 = vsel %vm123, %v82, 0
    %136 = vmatpush.bf16.msra.mxu0 0
    %137 = vmatpush.bf16.msra.mxu0 0
    %138 = vmatpush.bf16.msra.mxu0 0
    %139 = vmatpush.bf16.msra.mxu0 0
    %140 = vmatpush.bf16.msra.mxu0 0
    %141 = vmatpush.bf16.msra.mxu0 0
    %142 = vmatpush.bf16.msra.mxu0 0
    %143 = vmatpush.bf16.msra.mxu0 %v107
    %144 = vmatmul.bf16.gmra.mxu0 %v125
    %v145 = vpop.f32.mrf.mxu0
    %v146 = vadd.f32 %v47, %v145
    %v147 = vpop.f32.mrf.mxu0
    %v148 = vadd.f32 %v47, %v147
    %149 = vmatmul.bf16.gmra.mxu0 %v128
    %v150 = vpop.f32.mrf.mxu0
    %v151 = vadd.f32 %v47, %v150
    %v152 = vpop.f32.mrf.mxu0
    %v153 = vadd.f32 %v47, %v152
    %154 = vmatmul.bf16.gmra.mxu0 %v131
    %v155 = vpop.f32.mrf.mxu0
    %v156 = vadd.f32 %v47, %v155
    %v157 = vpop.f32.mrf.mxu0
    %v158 = vadd.f32 %v47, %v157
    %159 = vmatmul.bf16.gmra.mxu0 %v134
    %v160 = vpop.f32.mrf.mxu0
    %v161 = vadd.f32 %v47, %v160
    %v162 = vpop.f32.mrf.mxu0
    %v163 = vadd.f32 %v47, %v162
    %164 = vdwg.mxu0
    %165 = vmatpush.bf16.msra.mxu0 0
    %166 = vmatpush.bf16.msra.mxu0 0
    %167 = vmatpush.bf16.msra.mxu0 0
    %168 = vmatpush.bf16.msra.mxu0 0
    %169 = vmatpush.bf16.msra.mxu0 0
    %170 = vmatpush.bf16.msra.mxu0 0
    %171 = vmatpush.bf16.msra.mxu0 0
    %172 = vmatpush.bf16.msra.mxu0 %v108
    %173 = vmatmul.bf16.gmra.mxu0 %v125
    %v174 = vpop.f32.mrf.mxu0
    %v175 = vadd.f32 %v48, %v174
    %v176 = vpop.f32.mrf.mxu0
    %v177 = vadd.f32 %v48, %v176
    %178 = vmatmul.bf16.gmra.mxu0 %v128
    %v179 = vpop.f32.mrf.mxu0
    %v180 = vadd.f32 %v48, %v179
    %v181 = vpop.f32.mrf.mxu0
    %v182 = vadd.f32 %v48, %v181
    %183 = vmatmul.bf16.gmra.mxu0 %v131
    %v184 = vpop.f32.mrf.mxu0
    %v185 = vadd.f32 %v48, %v184
    %v186 = vpop.f32.mrf.mxu0
    %v187 = vadd.f32 %v48, %v186
    %188 = vmatmul.bf16.gmra.mxu0 %v134
    %v189 = vpop.f32.mrf.mxu0
    %v190 = vadd.f32 %v48, %v189
    %v191 = vpop.f32.mrf.mxu0
    %v192 = vadd.f32 %v48, %v191
    %193 = vdwg.mxu0
    %194 = vmatpush.bf16.msra.mxu0 0
    %195 = vmatpush.bf16.msra.mxu0 0
    %196 = vmatpush.bf16.msra.mxu0 0
    %197 = vmatpush.bf16.msra.mxu0 0
    %198 = vmatpush.bf16.msra.mxu0 0
    %199 = vmatpush.bf16.msra.mxu0 0
    %200 = vmatpush.bf16.msra.mxu0 0
    %201 = vmatpush.bf16.msra.mxu0 %v109
    %202 = vmatmul.bf16.gmra.mxu0 %v125
    %v203 = vpop.f32.mrf.mxu0
    %v204 = vadd.f32 %v49, %v203
    %v205 = vpop.f32.mrf.mxu0
    %v206 = vadd.f32 %v49, %v205
    %207 = vmatmul.bf16.gmra.mxu0 %v128
    %v208 = vpop.f32.mrf.mxu0
    %v209 = vadd.f32 %v49, %v208
    %v210 = vpop.f32.mrf.mxu0
    %v211 = vadd.f32 %v49, %v210
    %212 = vmatmul.bf16.gmra.mxu0 %v131
    %v213 = vpop.f32.mrf.mxu0
    %v214 = vadd.f32 %v49, %v213
    %v215 = vpop.f32.mrf.mxu0
    %v216 = vadd.f32 %v49, %v215
    %217 = vmatmul.bf16.gmra.mxu0 %v134
    %v218 = vpop.f32.mrf.mxu0
    %v219 = vadd.f32 %v49, %v218
    %v220 = vpop.f32.mrf.mxu0
    %v221 = vadd.f32 %v49, %v220
    %222 = vdwg.mxu0
    %223 = vmatpush.bf16.msra.mxu0 0
    %224 = vmatpush.bf16.msra.mxu0 0
    %225 = vmatpush.bf16.msra.mxu0 0
    %226 = vmatpush.bf16.msra.mxu0 0
    %227 = vmatpush.bf16.msra.mxu0 0
    %228 = vmatpush.bf16.msra.mxu0 0
    %229 = vmatpush.bf16.msra.mxu0 0
    %230 = vmatpush.bf16.msra.mxu0 %v110
    %231 = vmatmul.bf16.gmra.mxu0 %v125
    %v232 = vpop.f32.mrf.mxu0
    %v233 = vadd.f32 %v50, %v232
    %v234 = vpop.f32.mrf.mxu0
    %v235 = vadd.f32 %v50, %v234
    %236 = vmatmul.bf16.gmra.mxu0 %v128
    %v237 = vpop.f32.mrf.mxu0
    %v238 = vadd.f32 %v50, %v237
    %v239 = vpop.f32.mrf.mxu0
    %v240 = vadd.f32 %v50, %v239
    %241 = vmatmul.bf16.gmra.mxu0 %v131
    %v242 = vpop.f32.mrf.mxu0
    %v243 = vadd.f32 %v50, %v242
    %v244 = vpop.f32.mrf.mxu0
    %v245 = vadd.f32 %v50, %v244
    %246 = vmatmul.bf16.gmra.mxu0 %v134
    %v247 = vpop.f32.mrf.mxu0
    %v248 = vadd.f32 %v50, %v247
    %v249 = vpop.f32.mrf.mxu0
    %v250 = vadd.f32 %v50, %v249
    %251 = vdwg.mxu0
    %252 = vmatpush.bf16.msra.mxu0 0
    %253 = vmatpush.bf16.msra.mxu0 0
    %254 = vmatpush.bf16.msra.mxu0 0
    %255 = vmatpush.bf16.msra.mxu0 0
    %256 = vmatpush.bf16.msra.mxu0 0
    %257 = vmatpush.bf16.msra.mxu0 0
    %258 = vmatpush.bf16.msra.mxu0 0
    %259 = vmatpush.bf16.msra.mxu0 %v111
    %260 = vmatmul.bf16.gmra.mxu0 %v125
    %v261 = vpop.f32.mrf.mxu0
    %v262 = vadd.f32 %v51, %v261
    %v263 = vpop.f32.mrf.mxu0
    %v264 = vadd.f32 %v51, %v263
    %265 = vmatmul.bf16.gmra.mxu0 %v128
    %v266 = vpop.f32.mrf.mxu0
    %v267 = vadd.f32 %v51, %v266
    %v268 = vpop.f32.mrf.mxu0
    %v269 = vadd.f32 %v51, %v268
    %270 = vmatmul.bf16.gmra.mxu0 %v131
    %v271 = vpop.f32.mrf.mxu0
    %v272 = vadd.f32 %v51, %v271
    %v273 = vpop.f32.mrf.mxu0
    %v274 = vadd.f32 %v51, %v273
    %275 = vmatmul.bf16.gmra.mxu0 %v134
    %v276 = vpop.f32.mrf.mxu0
    %v277 = vadd.f32 %v51, %v276
    %v278 = vpop.f32.mrf.mxu0
    %v279 = vadd.f32 %v51, %v278
    %280 = vdwg.mxu0
    %281 = vmatpush.bf16.msra.mxu0 0
    %282 = vmatpush.bf16.msra.mxu0 0
    %283 = vmatpush.bf16.msra.mxu0 0
    %284 = vmatpush.bf16.msra.mxu0 0
    %285 = vmatpush.bf16.msra.mxu0 0
    %286 = vmatpush.bf16.msra.mxu0 0
    %287 = vmatpush.bf16.msra.mxu0 0
    %288 = vmatpush.bf16.msra.mxu0 %v112
    %289 = vmatmul.bf16.gmra.mxu0 %v125
    %v290 = vpop.f32.mrf.mxu0
    %v291 = vadd.f32 %v52, %v290
    %v292 = vpop.f32.mrf.mxu0
    %v293 = vadd.f32 %v52, %v292
    %294 = vmatmul.bf16.gmra.mxu0 %v128
    %v295 = vpop.f32.mrf.mxu0
    %v296 = vadd.f32 %v52, %v295
    %v297 = vpop.f32.mrf.mxu0
    %v298 = vadd.f32 %v52, %v297
    %299 = vmatmul.bf16.gmra.mxu0 %v131
    %v300 = vpop.f32.mrf.mxu0
    %v301 = vadd.f32 %v52, %v300
    %v302 = vpop.f32.mrf.mxu0
    %v303 = vadd.f32 %v52, %v302
    %304 = vmatmul.bf16.gmra.mxu0 %v134
    %v305 = vpop.f32.mrf.mxu0
    %v306 = vadd.f32 %v52, %v305
    %v307 = vpop.f32.mrf.mxu0
    %v308 = vadd.f32 %v52, %v307
    %309 = vdwg.mxu0
    %310 = vmatpush.bf16.msra.mxu0 0
    %311 = vmatpush.bf16.msra.mxu0 0
    %312 = vmatpush.bf16.msra.mxu0 0
    %313 = vmatpush.bf16.msra.mxu0 0
    %314 = vmatpush.bf16.msra.mxu0 0
    %315 = vmatpush.bf16.msra.mxu0 0
    %316 = vmatpush.bf16.msra.mxu0 0
    %317 = vmatpush.bf16.msra.mxu0 %v113
    %318 = vmatmul.bf16.gmra.mxu0 %v125
    %v319 = vpop.f32.mrf.mxu0
    %v320 = vadd.f32 %v53, %v319
    %v321 = vpop.f32.mrf.mxu0
    %v322 = vadd.f32 %v53, %v321
    %323 = vmatmul.bf16.gmra.mxu0 %v128
    %v324 = vpop.f32.mrf.mxu0
    %v325 = vadd.f32 %v53, %v324
    %v326 = vpop.f32.mrf.mxu0
    %v327 = vadd.f32 %v53, %v326
    %328 = vmatmul.bf16.gmra.mxu0 %v131
    %v329 = vpop.f32.mrf.mxu0
    %v330 = vadd.f32 %v53, %v329
    %v331 = vpop.f32.mrf.mxu0
    %v332 = vadd.f32 %v53, %v331
    %333 = vmatmul.bf16.gmra.mxu0 %v134
    %v334 = vpop.f32.mrf.mxu0
    %v335 = vadd.f32 %v53, %v334
    %v336 = vpop.f32.mrf.mxu0
    %v337 = vadd.f32 %v53, %v336
    %338 = vdwg.mxu0
    %339 = vmatpush.bf16.msra.mxu0 0
    %340 = vmatpush.bf16.msra.mxu0 0
    %341 = vmatpush.bf16.msra.mxu0 0
    %342 = vmatpush.bf16.msra.mxu0 0
    %343 = vmatpush.bf16.msra.mxu0 0
    %344 = vmatpush.bf16.msra.mxu0 0
    %345 = vmatpush.bf16.msra.mxu0 0
    %346 = vmatpush.bf16.msra.mxu0 %v114
    %347 = vmatmul.bf16.gmra.mxu0 %v125
    %v348 = vpop.f32.mrf.mxu0
    %v349 = vadd.f32 %v54, %v348
    %v350 = vpop.f32.mrf.mxu0
    %v351 = vadd.f32 %v54, %v350
    %352 = vmatmul.bf16.gmra.mxu0 %v128
    %v353 = vpop.f32.mrf.mxu0
    %v354 = vadd.f32 %v54, %v353
    %v355 = vpop.f32.mrf.mxu0
    %v356 = vadd.f32 %v54, %v355
    %357 = vmatmul.bf16.gmra.mxu0 %v131
    %v358 = vpop.f32.mrf.mxu0
    %v359 = vadd.f32 %v54, %v358
    %v360 = vpop.f32.mrf.mxu0
    %v361 = vadd.f32 %v54, %v360
    %362 = vmatmul.bf16.gmra.mxu0 %v134
    %v363 = vpop.f32.mrf.mxu0
    %v364 = vadd.f32 %v54, %v363
    %v365 = vpop.f32.mrf.mxu0
    %v366 = vadd.f32 %v54, %v365
    %367 = vdwg.mxu0
    %v368 = vpack.c.bf16 %v175, %v146
    %v369 = vpack.c.bf16 %v233, %v204
    %v370 = vpack.c.bf16 %v177, %v148
    %v371 = vpack.c.bf16 %v235, %v206
    %v372 = vpack.c.bf16 %v180, %v151
    %v373 = vpack.c.bf16 %v238, %v209
    %v374 = vpack.c.bf16 %v182, %v153
    %v375 = vpack.c.bf16 %v240, %v211
    %v376 = vpack.c.bf16 %v185, %v156
    %v377 = vpack.c.bf16 %v243, %v214
    %v378 = vpack.c.bf16 %v187, %v158
    %v379 = vpack.c.bf16 %v245, %v216
    %v380 = vpack.c.bf16 %v190, %v161
    %v381 = vpack.c.bf16 %v248, %v219
    %v382 = vpack.c.bf16 %v192, %v163
    %v383 = vpack.c.bf16 %v250, %v221
    %384 = vst [vmem:[%s3] sm:$0xff] %v368
    %385 = vst [vmem:[%s3 + $0x8] sm:$0xff] %v369
    %386 = vst [vmem:[%s3 + $0x10] sm:$0xff] %v370
    %387 = vst [vmem:[%s3 + $0x18] sm:$0xff] %v371
    %388 = vst [vmem:[%s3 + $0x20] sm:$0xff] %v372
    %389 = vst [vmem:[%s3 + $0x28] sm:$0xff] %v373
    %390 = vst [vmem:[%s3 + $0x30] sm:$0xff] %v374
    %391 = vst [vmem:[%s3 + $0x38] sm:$0xff] %v375
    %392 = vst [vmem:[%s3 + $0x40] sm:$0xff] %v376
    %393 = vst [vmem:[%s3 + $0x48] sm:$0xff] %v377
    %394 = vst [vmem:[%s3 + $0x50] sm:$0xff] %v378
    %395 = vst [vmem:[%s3 + $0x58] sm:$0xff] %v379
    %396 = vst [vmem:[%s3 + $0x60] sm:$0xff] %v380
    %397 = vst [vmem:[%s3 + $0x68] sm:$0xff] %v381
    %398 = vst [vmem:[%s3 + $0x70] sm:$0xff] %v382
    %399 = vst [vmem:[%s3 + $0x78] sm:$0xff] %v383
    %v400 = vpack.c.bf16 %v291, %v262
    %v401 = vpack.c.bf16 %v349, %v320
    %v402 = vpack.c.bf16 %v293, %v264
    %v403 = vpack.c.bf16 %v351, %v322
    %v404 = vpack.c.bf16 %v296, %v267
    %v405 = vpack.c.bf16 %v354, %v325
    %v406 = vpack.c.bf16 %v298, %v269
    %v407 = vpack.c.bf16 %v356, %v327
    %v408 = vpack.c.bf16 %v301, %v272
    %v409 = vpack.c.bf16 %v359, %v330
    %v410 = vpack.c.bf16 %v303, %v274
    %v411 = vpack.c.bf16 %v361, %v332
    %v412 = vpack.c.bf16 %v306, %v277
    %v413 = vpack.c.bf16 %v364, %v335
    %v414 = vpack.c.bf16 %v308, %v279
    %v415 = vpack.c.bf16 %v366, %v337
    %s416 = scalar_lea.vmem %s3, 128
    %417 = vst [vmem:[%s416] sm:$0xff] %v400
    %418 = vst [vmem:[%s416 + $0x8] sm:$0xff] %v401
    %419 = vst [vmem:[%s416 + $0x10] sm:$0xff] %v402
    %420 = vst [vmem:[%s416 + $0x18] sm:$0xff] %v403
    %421 = vst [vmem:[%s416 + $0x20] sm:$0xff] %v404
    %422 = vst [vmem:[%s416 + $0x28] sm:$0xff] %v405
    %423 = vst [vmem:[%s416 + $0x30] sm:$0xff] %v406
    %424 = vst [vmem:[%s416 + $0x38] sm:$0xff] %v407
    %425 = vst [vmem:[%s416 + $0x40] sm:$0xff] %v408
    %426 = vst [vmem:[%s416 + $0x48] sm:$0xff] %v409
    %427 = vst [vmem:[%s416 + $0x50] sm:$0xff] %v410
    %428 = vst [vmem:[%s416 + $0x58] sm:$0xff] %v411
    %429 = vst [vmem:[%s416 + $0x60] sm:$0xff] %v412
    %430 = vst [vmem:[%s416 + $0x68] sm:$0xff] %v413
    %431 = vst [vmem:[%s416 + $0x70] sm:$0xff] %v414
    %432 = vst [vmem:[%s416 + $0x78] sm:$0xff] %v415
    // Predicated region
    $region18: #{audio_lstm_forward.4} parent=1 // pred_check
      _
    $region19: #{audio_lstm_forward.4} parent=1 // pred_check_branch
      %434 = sbr.rel (0) target = $region21
    $region20: #{audio_lstm_forward.4} parent=1 // pred_region
      _
    $region21: #{audio_lstm_forward.4} parent=1 // pred_fallthru
      _
    // Predicated region
    $region22: #{audio_lstm_forward.4} parent=1 // pred_check
      _
    $region23: #{audio_lstm_forward.4} parent=1 // pred_check_branch
      %436 = sbr.rel (0) target = $region25
    $region24: #{audio_lstm_forward.4} parent=1 // pred_region
      _
    $region25: #{audio_lstm_forward.4} parent=1 // pred_fallthru
      _
    %437 = vsyncpa [#allocation3], 1

// kernel: audio_lstm_forward.6
$region0: #{audio_lstm_forward.6}
  #allocation0 [shape = 'u32[]', space=smem, size = 0x4, offset = 0x4, fixed_abs, tag = 'smem constant byte address 0x4 - core index']
  #allocation1 [shape = 'u32[72,128]{1,0:T(1,128)}', space=vmem, size = 0x9000, scoped, tag = 'internal scratch']
  %s0 = inlined_call_operand.vmem [shape: bf16[8,8,256], index: 0, kind: input, shape index: {}]
  %s1 = inlined_call_operand.hbm [shape: bf16[256,1024], index: 1, kind: input, shape index: {}]
  %s2 = inlined_call_operand.hbm [shape: f32[1,1024], index: 2, kind: input, shape index: {}]
  %s3 = inlined_call_operand.vmem [shape: bf16[2,8,8,512], index: 3, kind: output, shape index: {}]
  %s4 = sld [smem:[#allocation0]]
  $region30: #{audio_lstm_forward.6} parent=0
    _
  %s6 = ssub.s32 1, %s4
  %s7 = scalar_select 0, %s6, %s4
  $region1: #{audio_lstm_forward.6} parent=0
    #allocation2 [shape = 'u8[524288]{0}', space=vmem, size = 0x80000, scoped, tag = 'input window, operand 1, single buffered']
    #allocation3 [shape = 's32[1]{0}', space=sflag, size = 0x4, scoped, tag = 'scoped memory for audio_lstm_forward.6']
    #allocation4 [shape = 'u8[4096]{0}', space=vmem, size = 0x1000, scoped, tag = 'input window, operand 2, single buffered']
    #allocation5 [shape = 's32[1]{0}', space=sflag, size = 0x4, scoped, tag = 'scoped memory for audio_lstm_forward.6']
    %8 = vsyncpa [#allocation3], 0
    %9 = vsyncpa [#allocation5], 0
    // Predicated region
    $region2: #{audio_lstm_forward.6} parent=1 // pred_check
      _
    $region3: #{audio_lstm_forward.6} parent=1 // pred_check_branch
      %11 = sbr.rel (0) target = $region5
    $region4: #{audio_lstm_forward.6} parent=1 // pred_region
      _
    $region5: #{audio_lstm_forward.6} parent=1 // pred_fallthru
      _
    // Predicated region
    $region6: #{audio_lstm_forward.6} parent=1 // pred_check
      _
    $region7: #{audio_lstm_forward.6} parent=1 // pred_check_branch
      %13 = sbr.rel (0) target = $region9
    $region8: #{audio_lstm_forward.6} parent=1 // pred_region
      %15 = vsyncadd [#allocation3], 0
      %s16 = sshll.u32 %s1, 4
      %s17 = int_to_ptr.hbm [resolvable:$true] %s16
      %s18 = sshll.u32 [#allocation2], 4
      %s19 = int_to_ptr.vmem [resolvable:$true] %s18
      %24 = dma.hbm_to_vmem [thread:$0]  %s17, 16384, %s19, [#allocation3], 512, 512, 32
    $region9: #{audio_lstm_forward.6} parent=1 // pred_fallthru
      _
    // Predicated region
    $region10: #{audio_lstm_forward.6} parent=1 // pred_check
      _
    $region11: #{audio_lstm_forward.6} parent=1 // pred_check_branch
      %26 = sbr.rel (0) target = $region13
    $region12: #{audio_lstm_forward.6} parent=1 // pred_region
      %28 = vsyncadd [#allocation5], 0
      %s30 = sshll.u32 %s2, 4
      %s31 = int_to_ptr.hbm [resolvable:$true] %s30
      %s32 = sshll.u32 [#allocation4], 4
      %s33 = int_to_ptr.vmem [resolvable:$true] %s32
      %35 = dma.hbm_to_vmem [thread:$0]  %s31, 128, %s33, [#allocation5]
    $region13: #{audio_lstm_forward.6} parent=1 // pred_fallthru
      _
    // Predicated region
    $region14: #{audio_lstm_forward.6} parent=1 // pred_check
      _
    $region15: #{audio_lstm_forward.6} parent=1 // pred_check_branch
      %37 = sbr.rel (0) target = $region17
    $region16: #{audio_lstm_forward.6} parent=1 // pred_region
      %39 = dma.done [#allocation3], 16384
    $region17: #{audio_lstm_forward.6} parent=1 // pred_fallthru
      _
    // Predicated region
    $region18: #{audio_lstm_forward.6} parent=1 // pred_check
      _
    $region19: #{audio_lstm_forward.6} parent=1 // pred_check_branch
      %41 = sbr.rel (0) target = $region21
    $region20: #{audio_lstm_forward.6} parent=1 // pred_region
      %43 = dma.done [#allocation5], 128
    $region21: #{audio_lstm_forward.6} parent=1 // pred_fallthru
      _
    %v44 = vld [vmem:[%s0] sm:$0xff]
    %v45 = vld [vmem:[%s0 + $0x8] sm:$0xff]
    %v46 = vld [vmem:[%s0 + $0x10] sm:$0xff]
    %v47 = vld [vmem:[%s0 + $0x18] sm:$0xff]
    %v48 = vld [vmem:[%s0 + $0x20] sm:$0xff]
    %v49 = vld [vmem:[%s0 + $0x28] sm:$0xff]
    %v50 = vld [vmem:[%s0 + $0x30] sm:$0xff]
    %v51 = vld [vmem:[%s0 + $0x38] sm:$0xff]
    %v52 = vld [vmem:[#allocation2] sm:$0xff]
    %v53 = vld [vmem:[#allocation2 + $0x8] sm:$0xff]
    %v54 = vld [vmem:[#allocation2 + $0x10] sm:$0xff]
    %v55 = vld [vmem:[#allocation2 + $0x18] sm:$0xff]
    %v56 = vld [vmem:[#allocation2 + $0x20] sm:$0xff]
    %v57 = vld [vmem:[#allocation2 + $0x28] sm:$0xff]
    %v58 = vld [vmem:[#allocation2 + $0x30] sm:$0xff]
    %v59 = vld [vmem:[#allocation2 + $0x38] sm:$0xff]
    %v60 = vld [vmem:[#allocation2 + $0x40] sm:$0xff]
    %v61 = vld [vmem:[#allocation2 + $0x48] sm:$0xff]
    %v62 = vld [vmem:[#allocation2 + $0x50] sm:$0xff]
    %v63 = vld [vmem:[#allocation2 + $0x58] sm:$0xff]
    %v64 = vld [vmem:[#allocation2 + $0x60] sm:$0xff]
    %v65 = vld [vmem:[#allocation2 + $0x68] sm:$0xff]
    %v66 = vld [vmem:[#allocation2 + $0x70] sm:$0xff]
    %v67 = vld [vmem:[#allocation2 + $0x78] sm:$0xff]
    %v68 = vld [vmem:[#allocation2 + $0x80] sm:$0xff]
    %v69 = vld [vmem:[#allocation2 + $0x88] sm:$0xff]
    %v70 = vld [vmem:[#allocation2 + $0x90] sm:$0xff]
    %v71 = vld [vmem:[#allocation2 + $0x98] sm:$0xff]
    %v72 = vld [vmem:[#allocation2 + $0xa0] sm:$0xff]
    %v73 = vld [vmem:[#allocation2 + $0xa8] sm:$0xff]
    %v74 = vld [vmem:[#allocation2 + $0xb0] sm:$0xff]
    %v75 = vld [vmem:[#allocation2 + $0xb8] sm:$0xff]
    %v76 = vld [vmem:[#allocation2 + $0xc0] sm:$0xff]
    %v77 = vld [vmem:[#allocation2 + $0xc8] sm:$0xff]
    %v78 = vld [vmem:[#allocation2 + $0xd0] sm:$0xff]
    %v79 = vld [vmem:[#allocation2 + $0xd8] sm:$0xff]
    %v80 = vld [vmem:[#allocation2 + $0xe0] sm:$0xff]
    %v81 = vld [vmem:[#allocation2 + $0xe8] sm:$0xff]
    %v82 = vld [vmem:[#allocation2 + $0xf0] sm:$0xff]
    %v83 = vld [vmem:[#allocation2 + $0xf8] sm:$0xff]
    %v84 = vld [vmem:[#allocation2 + $0x100] sm:$0xff]
    %v85 = vld [vmem:[#allocation2 + $0x108] sm:$0xff]
    %v86 = vld [vmem:[#allocation2 + $0x110] sm:$0xff]
    %v87 = vld [vmem:[#allocation2 + $0x118] sm:$0xff]
    %v88 = vld [vmem:[#allocation2 + $0x120] sm:$0xff]
    %v89 = vld [vmem:[#allocation2 + $0x128] sm:$0xff]
    %v90 = vld [vmem:[#allocation2 + $0x130] sm:$0xff]
    %v91 = vld [vmem:[#allocation2 + $0x138] sm:$0xff]
    %v92 = vld [vmem:[#allocation2 + $0x140] sm:$0xff]
    %v93 = vld [vmem:[#allocation2 + $0x148] sm:$0xff]
    %v94 = vld [vmem:[#allocation2 + $0x150] sm:$0xff]
    %v95 = vld [vmem:[#allocation2 + $0x158] sm:$0xff]
    %v96 = vld [vmem:[#allocation2 + $0x160] sm:$0xff]
    %v97 = vld [vmem:[#allocation2 + $0x168] sm:$0xff]
    %v98 = vld [vmem:[#allocation2 + $0x170] sm:$0xff]
    %v99 = vld [vmem:[#allocation2 + $0x178] sm:$0xff]
    %v100 = vld [vmem:[#allocation2 + $0x180] sm:$0xff]
    %v101 = vld [vmem:[#allocation2 + $0x188] sm:$0xff]
    %v102 = vld [vmem:[#allocation2 + $0x190] sm:$0xff]
    %v103 = vld [vmem:[#allocation2 + $0x198] sm:$0xff]
    %v104 = vld [vmem:[#allocation2 + $0x1a0] sm:$0xff]
    %v105 = vld [vmem:[#allocation2 + $0x1a8] sm:$0xff]
    %v106 = vld [vmem:[#allocation2 + $0x1b0] sm:$0xff]
    %v107 = vld [vmem:[#allocation2 + $0x1b8] sm:$0xff]
    %v108 = vld [vmem:[#allocation2 + $0x1c0] sm:$0xff]
    %v109 = vld [vmem:[#allocation2 + $0x1c8] sm:$0xff]
    %v110 = vld [vmem:[#allocation2 + $0x1d0] sm:$0xff]
    %v111 = vld [vmem:[#allocation2 + $0x1d8] sm:$0xff]
    %v112 = vld [vmem:[#allocation2 + $0x1e0] sm:$0xff]
    %v113 = vld [vmem:[#allocation2 + $0x1e8] sm:$0xff]
    %v114 = vld [vmem:[#allocation2 + $0x1f0] sm:$0xff]
    %v115 = vld [vmem:[#allocation2 + $0x1f8] sm:$0xff]
    %v116 = vld [vmem:[#allocation2 + $0x200] sm:$0xff]
    %v117 = vld [vmem:[#allocation2 + $0x208] sm:$0xff]
    %v118 = vld [vmem:[#allocation2 + $0x210] sm:$0xff]
    %v119 = vld [vmem:[#allocation2 + $0x218] sm:$0xff]
    %v120 = vld [vmem:[#allocation2 + $0x220] sm:$0xff]
    %v121 = vld [vmem:[#allocation2 + $0x228] sm:$0xff]
    %v122 = vld [vmem:[#allocation2 + $0x230] sm:$0xff]
    %v123 = vld [vmem:[#allocation2 + $0x238] sm:$0xff]
    %v124 = vld [vmem:[#allocation2 + $0x240] sm:$0xff]
    %v125 = vld [vmem:[#allocation2 + $0x248] sm:$0xff]
    %v126 = vld [vmem:[#allocation2 + $0x250] sm:$0xff]
    %v127 = vld [vmem:[#allocation2 + $0x258] sm:$0xff]
    %v128 = vld [vmem:[#allocation2 + $0x260] sm:$0xff]
    %v129 = vld [vmem:[#allocation2 + $0x268] sm:$0xff]
    %v130 = vld [vmem:[#allocation2 + $0x270] sm:$0xff]
    %v131 = vld [vmem:[#allocation2 + $0x278] sm:$0xff]
    %v132 = vld [vmem:[#allocation2 + $0x280] sm:$0xff]
    %v133 = vld [vmem:[#allocation2 + $0x288] sm:$0xff]
    %v134 = vld [vmem:[#allocation2 + $0x290] sm:$0xff]
    %v135 = vld [vmem:[#allocation2 + $0x298] sm:$0xff]
    %v136 = vld [vmem:[#allocation2 + $0x2a0] sm:$0xff]
    %v137 = vld [vmem:[#allocation2 + $0x2a8] sm:$0xff]
    %v138 = vld [vmem:[#allocation2 + $0x2b0] sm:$0xff]
    %v139 = vld [vmem:[#allocation2 + $0x2b8] sm:$0xff]
    %v140 = vld [vmem:[#allocation2 + $0x2c0] sm:$0xff]
    %v141 = vld [vmem:[#allocation2 + $0x2c8] sm:$0xff]
    %v142 = vld [vmem:[#allocation2 + $0x2d0] sm:$0xff]
    %v143 = vld [vmem:[#allocation2 + $0x2d8] sm:$0xff]
    %v144 = vld [vmem:[#allocation2 + $0x2e0] sm:$0xff]
    %v145 = vld [vmem:[#allocation2 + $0x2e8] sm:$0xff]
    %v146 = vld [vmem:[#allocation2 + $0x2f0] sm:$0xff]
    %v147 = vld [vmem:[#allocation2 + $0x2f8] sm:$0xff]
    %v148 = vld [vmem:[#allocation2 + $0x300] sm:$0xff]
    %v149 = vld [vmem:[#allocation2 + $0x308] sm:$0xff]
    %v150 = vld [vmem:[#allocation2 + $0x310] sm:$0xff]
    %v151 = vld [vmem:[#allocation2 + $0x318] sm:$0xff]
    %v152 = vld [vmem:[#allocation2 + $0x320] sm:$0xff]
    %v153 = vld [vmem:[#allocation2 + $0x328] sm:$0xff]
    %v154 = vld [vmem:[#allocation2 + $0x330] sm:$0xff]
    %v155 = vld [vmem:[#allocation2 + $0x338] sm:$0xff]
    %v156 = vld [vmem:[#allocation2 + $0x340] sm:$0xff]
    %v157 = vld [vmem:[#allocation2 + $0x348] sm:$0xff]
    %v158 = vld [vmem:[#allocation2 + $0x350] sm:$0xff]
    %v159 = vld [vmem:[#allocation2 + $0x358] sm:$0xff]
    %v160 = vld [vmem:[#allocation2 + $0x360] sm:$0xff]
    %v161 = vld [vmem:[#allocation2 + $0x368] sm:$0xff]
    %v162 = vld [vmem:[#allocation2 + $0x370] sm:$0xff]
    %v163 = vld [vmem:[#allocation2 + $0x378] sm:$0xff]
    %v164 = vld [vmem:[#allocation2 + $0x380] sm:$0xff]
    %v165 = vld [vmem:[#allocation2 + $0x388] sm:$0xff]
    %v166 = vld [vmem:[#allocation2 + $0x390] sm:$0xff]
    %v167 = vld [vmem:[#allocation2 + $0x398] sm:$0xff]
    %v168 = vld [vmem:[#allocation2 + $0x3a0] sm:$0xff]
    %v169 = vld [vmem:[#allocation2 + $0x3a8] sm:$0xff]
    %v170 = vld [vmem:[#allocation2 + $0x3b0] sm:$0xff]
    %v171 = vld [vmem:[#allocation2 + $0x3b8] sm:$0xff]
    %v172 = vld [vmem:[#allocation2 + $0x3c0] sm:$0xff]
    %v173 = vld [vmem:[#allocation2 + $0x3c8] sm:$0xff]
    %v174 = vld [vmem:[#allocation2 + $0x3d0] sm:$0xff]
    %v175 = vld [vmem:[#allocation2 + $0x3d8] sm:$0xff]
    %v176 = vld [vmem:[#allocation2 + $0x3e0] sm:$0xff]
    %v177 = vld [vmem:[#allocation2 + $0x3e8] sm:$0xff]
    %v178 = vld [vmem:[#allocation2 + $0x3f0] sm:$0xff]
    %v179 = vld [vmem:[#allocation2 + $0x3f8] sm:$0xff]
    %v180 = vld [vmem:[#allocation4] sm:$0xff]
    %v182 = vperm.slane %v180, 0
    %v183 = vperm.slane %v180, 1
    %v184 = vperm.slane %v180, 2
    %v185 = vperm.slane %v180, 3
    %v186 = vperm.slane %v180, 4
    %v187 = vperm.slane %v180, 5
    %v188 = vperm.slane %v180, 6
    %v189 = vperm.slane %v180, 7
    %v206 = vunpack.c.l.b16 %v44
    %v207 = vunpack.c.h.b16 %v44
    %v208 = vunpack.c.l.b16 %v45
    %v209 = vunpack.c.h.b16 %v45
    %v210 = vunpack.c.l.b16 %v46
    %v211 = vunpack.c.h.b16 %v46
    %v212 = vunpack.c.l.b16 %v47
    %v213 = vunpack.c.h.b16 %v47
    %v214 = vunpack.c.l.b16 %v48
    %v215 = vunpack.c.h.b16 %v48
    %v216 = vunpack.c.l.b16 %v49
    %v217 = vunpack.c.h.b16 %v49
    %v218 = vunpack.c.l.b16 %v50
    %v219 = vunpack.c.h.b16 %v50
    %v220 = vunpack.c.l.b16 %v51
    %v221 = vunpack.c.h.b16 %v51
    %v222 = vpack.c.b16 %v208, %v206
    %v223 = vpack.c.b16 %v209, %v207
    %v224 = vpack.c.b16 %v212, %v210
    %v225 = vpack.c.b16 %v213, %v211
    %v226 = vpack.c.b16 %v216, %v214
    %v227 = vpack.c.b16 %v217, %v215
    %v228 = vpack.c.b16 %v220, %v218
    %v229 = vpack.c.b16 %v221, %v219
    %v366 = vunpack.c.l.b16 %v52
    %v367 = vunpack.c.h.b16 %v52
    %v368 = vunpack.c.l.b16 %v53
    %v369 = vunpack.c.h.b16 %v53
    %v370 = vunpack.c.l.b16 %v54
    %v371 = vunpack.c.h.b16 %v54
    %v372 = vunpack.c.l.b16 %v55
    %v373 = vunpack.c.h.b16 %v55
    %v374 = vunpack.c.l.b16 %v56
    %v375 = vunpack.c.h.b16 %v56
    %v376 = vunpack.c.l.b16 %v57
    %v377 = vunpack.c.h.b16 %v57
    %v378 = vunpack.c.l.b16 %v58
    %v379 = vunpack.c.h.b16 %v58
    %v380 = vunpack.c.l.b16 %v59
    %v381 = vunpack.c.h.b16 %v59
    %v382 = vunpack.c.l.b16 %v60
    %v383 = vunpack.c.h.b16 %v60
    %v384 = vunpack.c.l.b16 %v61
    %v385 = vunpack.c.h.b16 %v61
    %v386 = vunpack.c.l.b16 %v62
    %v387 = vunpack.c.h.b16 %v62
    %v388 = vunpack.c.l.b16 %v63
    %v389 = vunpack.c.h.b16 %v63
    %v390 = vunpack.c.l.b16 %v64
    %v391 = vunpack.c.h.b16 %v64
    %v392 = vunpack.c.l.b16 %v65
    %v393 = vunpack.c.h.b16 %v65
    %v394 = vunpack.c.l.b16 %v66
    %v395 = vunpack.c.h.b16 %v66
    %v396 = vunpack.c.l.b16 %v67
    %v397 = vunpack.c.h.b16 %v67
    %v398 = vunpack.c.l.b16 %v68
    %v399 = vunpack.c.h.b16 %v68
    %v400 = vunpack.c.l.b16 %v69
    %v401 = vunpack.c.h.b16 %v69
    %v402 = vunpack.c.l.b16 %v70
    %v403 = vunpack.c.h.b16 %v70
    %v404 = vunpack.c.l.b16 %v71
    %v405 = vunpack.c.h.b16 %v71
    %v406 = vunpack.c.l.b16 %v72
    %v407 = vunpack.c.h.b16 %v72
    %v408 = vunpack.c.l.b16 %v73
    %v409 = vunpack.c.h.b16 %v73
    %v410 = vunpack.c.l.b16 %v74
    %v411 = vunpack.c.h.b16 %v74
    %v412 = vunpack.c.l.b16 %v75
    %v413 = vunpack.c.h.b16 %v75
    %v414 = vunpack.c.l.b16 %v76
    %v415 = vunpack.c.h.b16 %v76
    %v416 = vunpack.c.l.b16 %v77
    %v417 = vunpack.c.h.b16 %v77
    %v418 = vunpack.c.l.b16 %v78
    %v419 = vunpack.c.h.b16 %v78
    %v420 = vunpack.c.l.b16 %v79
    %v421 = vunpack.c.h.b16 %v79
    %v422 = vunpack.c.l.b16 %v80
    %v423 = vunpack.c.h.b16 %v80
    %v424 = vunpack.c.l.b16 %v81
    %v425 = vunpack.c.h.b16 %v81
    %v426 = vunpack.c.l.b16 %v82
    %v427 = vunpack.c.h.b16 %v82
    %v428 = vunpack.c.l.b16 %v83
    %v429 = vunpack.c.h.b16 %v83
    %v430 = vunpack.c.l.b16 %v84
    %v431 = vunpack.c.h.b16 %v84
    %v432 = vunpack.c.l.b16 %v85
    %v433 = vunpack.c.h.b16 %v85
    %v434 = vunpack.c.l.b16 %v86
    %v435 = vunpack.c.h.b16 %v86
    %v436 = vunpack.c.l.b16 %v87
    %v437 = vunpack.c.h.b16 %v87
    %v438 = vunpack.c.l.b16 %v88
    %v439 = vunpack.c.h.b16 %v88
    %v440 = vunpack.c.l.b16 %v89
    %v441 = vunpack.c.h.b16 %v89
    %v442 = vunpack.c.l.b16 %v90
    %v443 = vunpack.c.h.b16 %v90
    %v444 = vunpack.c.l.b16 %v91
    %v445 = vunpack.c.h.b16 %v91
    %v446 = vunpack.c.l.b16 %v92
    %v447 = vunpack.c.h.b16 %v92
    %v448 = vunpack.c.l.b16 %v93
    %v449 = vunpack.c.h.b16 %v93
    %v450 = vunpack.c.l.b16 %v94
    %v451 = vunpack.c.h.b16 %v94
    %v452 = vunpack.c.l.b16 %v95
    %v453 = vunpack.c.h.b16 %v95
    %v454 = vunpack.c.l.b16 %v96
    %v455 = vunpack.c.h.b16 %v96
    %v456 = vunpack.c.l.b16 %v97
    %v457 = vunpack.c.h.b16 %v97
    %v458 = vunpack.c.l.b16 %v98
    %v459 = vunpack.c.h.b16 %v98
    %v460 = vunpack.c.l.b16 %v99
    %v461 = vunpack.c.h.b16 %v99
    %v462 = vunpack.c.l.b16 %v100
    %v463 = vunpack.c.h.b16 %v100
    %v464 = vunpack.c.l.b16 %v101
    %v465 = vunpack.c.h.b16 %v101
    %v466 = vunpack.c.l.b16 %v102
    %v467 = vunpack.c.h.b16 %v102
    %v468 = vunpack.c.l.b16 %v103
    %v469 = vunpack.c.h.b16 %v103
    %v470 = vunpack.c.l.b16 %v104
    %v471 = vunpack.c.h.b16 %v104
    %v472 = vunpack.c.l.b16 %v105
    %v473 = vunpack.c.h.b16 %v105
    %v474 = vunpack.c.l.b16 %v106
    %v475 = vunpack.c.h.b16 %v106
    %v476 = vunpack.c.l.b16 %v107
    %v477 = vunpack.c.h.b16 %v107
    %v478 = vunpack.c.l.b16 %v108
    %v479 = vunpack.c.h.b16 %v108
    %v480 = vunpack.c.l.b16 %v109
    %v481 = vunpack.c.h.b16 %v109
    %v482 = vunpack.c.l.b16 %v110
    %v483 = vunpack.c.h.b16 %v110
    %v484 = vunpack.c.l.b16 %v111
    %v485 = vunpack.c.h.b16 %v111
    %v486 = vunpack.c.l.b16 %v112
    %v487 = vunpack.c.h.b16 %v112
    %v488 = vunpack.c.l.b16 %v113
    %v489 = vunpack.c.h.b16 %v113
    %v490 = vunpack.c.l.b16 %v114
    %v491 = vunpack.c.h.b16 %v114
    %v492 = vunpack.c.l.b16 %v115
    %v493 = vunpack.c.h.b16 %v115
    %v494 = vunpack.c.l.b16 %v116
    %v495 = vunpack.c.h.b16 %v116
    %v496 = vunpack.c.l.b16 %v117
    %v497 = vunpack.c.h.b16 %v117
    %v498 = vunpack.c.l.b16 %v118
    %v499 = vunpack.c.h.b16 %v118
    %v500 = vunpack.c.l.b16 %v119
    %v501 = vunpack.c.h.b16 %v119
    %v502 = vunpack.c.l.b16 %v120
    %v503 = vunpack.c.h.b16 %v120
    %v504 = vunpack.c.l.b16 %v121
    %v505 = vunpack.c.h.b16 %v121
    %v506 = vunpack.c.l.b16 %v122
    %v507 = vunpack.c.h.b16 %v122
    %v508 = vunpack.c.l.b16 %v123
    %v509 = vunpack.c.h.b16 %v123
    %v510 = vunpack.c.l.b16 %v124
    %v511 = vunpack.c.h.b16 %v124
    %v512 = vunpack.c.l.b16 %v125
    %v513 = vunpack.c.h.b16 %v125
    %v514 = vunpack.c.l.b16 %v126
    %v515 = vunpack.c.h.b16 %v126
    %v516 = vunpack.c.l.b16 %v127
    %v517 = vunpack.c.h.b16 %v127
    %v518 = vunpack.c.l.b16 %v128
    %v519 = vunpack.c.h.b16 %v128
    %v520 = vunpack.c.l.b16 %v129
    %v521 = vunpack.c.h.b16 %v129
    %v522 = vunpack.c.l.b16 %v130
    %v523 = vunpack.c.h.b16 %v130
    %v524 = vunpack.c.l.b16 %v131
    %v525 = vunpack.c.h.b16 %v131
    %v526 = vunpack.c.l.b16 %v132
    %v527 = vunpack.c.h.b16 %v132
    %v528 = vunpack.c.l.b16 %v133
    %v529 = vunpack.c.h.b16 %v133
    %v530 = vunpack.c.l.b16 %v134
    %v531 = vunpack.c.h.b16 %v134
    %v532 = vunpack.c.l.b16 %v135
    %v533 = vunpack.c.h.b16 %v135
    %v534 = vunpack.c.l.b16 %v136
    %v535 = vunpack.c.h.b16 %v136
    %v536 = vunpack.c.l.b16 %v137
    %v537 = vunpack.c.h.b16 %v137
    %v538 = vunpack.c.l.b16 %v138
    %v539 = vunpack.c.h.b16 %v138
    %v540 = vunpack.c.l.b16 %v139
    %v541 = vunpack.c.h.b16 %v139
    %v542 = vunpack.c.l.b16 %v140
    %v543 = vunpack.c.h.b16 %v140
    %v544 = vunpack.c.l.b16 %v141
    %v545 = vunpack.c.h.b16 %v141
    %v546 = vunpack.c.l.b16 %v142
    %v547 = vunpack.c.h.b16 %v142
    %v548 = vunpack.c.l.b16 %v143
    %v549 = vunpack.c.h.b16 %v143
    %v550 = vunpack.c.l.b16 %v144
    %v551 = vunpack.c.h.b16 %v144
    %v552 = vunpack.c.l.b16 %v145
    %v553 = vunpack.c.h.b16 %v145
    %v554 = vunpack.c.l.b16 %v146
    %v555 = vunpack.c.h.b16 %v146
    %v556 = vunpack.c.l.b16 %v147
    %v557 = vunpack.c.h.b16 %v147
    %v558 = vunpack.c.l.b16 %v148
    %v559 = vunpack.c.h.b16 %v148
    %v560 = vunpack.c.l.b16 %v149
    %v561 = vunpack.c.h.b16 %v149
    %v562 = vunpack.c.l.b16 %v150
    %v563 = vunpack.c.h.b16 %v150
    %v564 = vunpack.c.l.b16 %v151
    %v565 = vunpack.c.h.b16 %v151
    %v566 = vunpack.c.l.b16 %v152
    %v567 = vunpack.c.h.b16 %v152
    %v568 = vunpack.c.l.b16 %v153
    %v569 = vunpack.c.h.b16 %v153
    %v570 = vunpack.c.l.b16 %v154
    %v571 = vunpack.c.h.b16 %v154
    %v572 = vunpack.c.l.b16 %v155
    %v573 = vunpack.c.h.b16 %v155
    %v574 = vunpack.c.l.b16 %v156
    %v575 = vunpack.c.h.b16 %v156
    %v576 = vunpack.c.l.b16 %v157
    %v577 = vunpack.c.h.b16 %v157
    %v578 = vunpack.c.l.b16 %v158
    %v579 = vunpack.c.h.b16 %v158
    %v580 = vunpack.c.l.b16 %v159
    %v581 = vunpack.c.h.b16 %v159
    %v582 = vunpack.c.l.b16 %v160
    %v583 = vunpack.c.h.b16 %v160
    %v584 = vunpack.c.l.b16 %v161
    %v585 = vunpack.c.h.b16 %v161
    %v586 = vunpack.c.l.b16 %v162
    %v587 = vunpack.c.h.b16 %v162
    %v588 = vunpack.c.l.b16 %v163
    %v589 = vunpack.c.h.b16 %v163
    %v590 = vunpack.c.l.b16 %v164
    %v591 = vunpack.c.h.b16 %v164
    %v592 = vunpack.c.l.b16 %v165
    %v593 = vunpack.c.h.b16 %v165
    %v594 = vunpack.c.l.b16 %v166
    %v595 = vunpack.c.h.b16 %v166
    %v596 = vunpack.c.l.b16 %v167
    %v597 = vunpack.c.h.b16 %v167
    %v598 = vunpack.c.l.b16 %v168
    %v599 = vunpack.c.h.b16 %v168
    %v600 = vunpack.c.l.b16 %v169
    %v601 = vunpack.c.h.b16 %v169
    %v602 = vunpack.c.l.b16 %v170
    %v603 = vunpack.c.h.b16 %v170
    %v604 = vunpack.c.l.b16 %v171
    %v605 = vunpack.c.h.b16 %v171
    %v606 = vunpack.c.l.b16 %v172
    %v607 = vunpack.c.h.b16 %v172
    %v608 = vunpack.c.l.b16 %v173
    %v609 = vunpack.c.h.b16 %v173
    %v610 = vunpack.c.l.b16 %v174
    %v611 = vunpack.c.h.b16 %v174
    %v612 = vunpack.c.l.b16 %v175
    %v613 = vunpack.c.h.b16 %v175
    %v614 = vunpack.c.l.b16 %v176
    %v615 = vunpack.c.h.b16 %v176
    %v616 = vunpack.c.l.b16 %v177
    %v617 = vunpack.c.h.b16 %v177
    %v618 = vunpack.c.l.b16 %v178
    %v619 = vunpack.c.h.b16 %v178
    %v620 = vunpack.c.l.b16 %v179
    %v621 = vunpack.c.h.b16 %v179
    %v622 = vpack.c.b16 %v374, %v366
    %v623 = vpack.c.b16 %v375, %v367
    %v624 = vpack.c.b16 %v376, %v368
    %v625 = vpack.c.b16 %v377, %v369
    %v626 = vpack.c.b16 %v378, %v370
    %v627 = vpack.c.b16 %v379, %v371
    %v628 = vpack.c.b16 %v380, %v372
    %v629 = vpack.c.b16 %v381, %v373
    %v630 = vpack.c.b16 %v390, %v382
    %v631 = vpack.c.b16 %v391, %v383
    %v632 = vpack.c.b16 %v392, %v384
    %v633 = vpack.c.b16 %v393, %v385
    %v634 = vpack.c.b16 %v394, %v386
    %v635 = vpack.c.b16 %v395, %v387
    %v636 = vpack.c.b16 %v396, %v388
    %v637 = vpack.c.b16 %v397, %v389
    %v638 = vpack.c.b16 %v406, %v398
    %v639 = vpack.c.b16 %v407, %v399
    %v640 = vpack.c.b16 %v408, %v400
    %v641 = vpack.c.b16 %v409, %v401
    %v642 = vpack.c.b16 %v410, %v402
    %v643 = vpack.c.b16 %v411, %v403
    %v644 = vpack.c.b16 %v412, %v404
    %v645 = vpack.c.b16 %v413, %v405
    %v646 = vpack.c.b16 %v422, %v414
    %v647 = vpack.c.b16 %v423, %v415
    %v648 = vpack.c.b16 %v424, %v416
    %v649 = vpack.c.b16 %v425, %v417
    %v650 = vpack.c.b16 %v426, %v418
    %v651 = vpack.c.b16 %v427, %v419
    %v652 = vpack.c.b16 %v428, %v420
    %v653 = vpack.c.b16 %v429, %v421
    %v654 = vpack.c.b16 %v438, %v430
    %v655 = vpack.c.b16 %v439, %v431
    %v656 = vpack.c.b16 %v440, %v432
    %v657 = vpack.c.b16 %v441, %v433
    %v658 = vpack.c.b16 %v442, %v434
    %v659 = vpack.c.b16 %v443, %v435
    %v660 = vpack.c.b16 %v444, %v436
    %v661 = vpack.c.b16 %v445, %v437
    %v662 = vpack.c.b16 %v454, %v446
    %v663 = vpack.c.b16 %v455, %v447
    %v664 = vpack.c.b16 %v456, %v448
    %v665 = vpack.c.b16 %v457, %v449
    %v666 = vpack.c.b16 %v458, %v450
    %v667 = vpack.c.b16 %v459, %v451
    %v668 = vpack.c.b16 %v460, %v452
    %v669 = vpack.c.b16 %v461, %v453
    %v670 = vpack.c.b16 %v470, %v462
    %v671 = vpack.c.b16 %v471, %v463
    %v672 = vpack.c.b16 %v472, %v464
    %v673 = vpack.c.b16 %v473, %v465
    %v674 = vpack.c.b16 %v474, %v466
    %v675 = vpack.c.b16 %v475, %v467
    %v676 = vpack.c.b16 %v476, %v468
    %v677 = vpack.c.b16 %v477, %v469
    %v678 = vpack.c.b16 %v486, %v478
    %v679 = vpack.c.b16 %v487, %v479
    %v680 = vpack.c.b16 %v488, %v480
    %v681 = vpack.c.b16 %v489, %v481
    %v682 = vpack.c.b16 %v490, %v482
    %v683 = vpack.c.b16 %v491, %v483
    %v684 = vpack.c.b16 %v492, %v484
    %v685 = vpack.c.b16 %v493, %v485
    %v686 = vpack.c.b16 %v502, %v494
    %v687 = vpack.c.b16 %v503, %v495
    %v688 = vpack.c.b16 %v504, %v496
    %v689 = vpack.c.b16 %v505, %v497
    %v690 = vpack.c.b16 %v506, %v498
    %v691 = vpack.c.b16 %v507, %v499
    %v692 = vpack.c.b16 %v508, %v500
    %v693 = vpack.c.b16 %v509, %v501
    %v694 = vpack.c.b16 %v518, %v510
    %v695 = vpack.c.b16 %v519, %v511
    %v696 = vpack.c.b16 %v520, %v512
    %v697 = vpack.c.b16 %v521, %v513
    %v698 = vpack.c.b16 %v522, %v514
    %v699 = vpack.c.b16 %v523, %v515
    %v700 = vpack.c.b16 %v524, %v516
    %v701 = vpack.c.b16 %v525, %v517
    %v702 = vpack.c.b16 %v534, %v526
    %v703 = vpack.c.b16 %v535, %v527
    %v704 = vpack.c.b16 %v536, %v528
    %v705 = vpack.c.b16 %v537, %v529
    %v706 = vpack.c.b16 %v538, %v530
    %v707 = vpack.c.b16 %v539, %v531
    %v708 = vpack.c.b16 %v540, %v532
    %v709 = vpack.c.b16 %v541, %v533
    %v710 = vpack.c.b16 %v550, %v542
    %v711 = vpack.c.b16 %v551, %v543
    %v712 = vpack.c.b16 %v552, %v544
    %v713 = vpack.c.b16 %v553, %v545
    %v714 = vpack.c.b16 %v554, %v546
    %v715 = vpack.c.b16 %v555, %v547
    %v716 = vpack.c.b16 %v556, %v548
    %v717 = vpack.c.b16 %v557, %v549
    %v718 = vpack.c.b16 %v566, %v558
    %v719 = vpack.c.b16 %v567, %v559
    %v720 = vpack.c.b16 %v568, %v560
    %v721 = vpack.c.b16 %v569, %v561
    %v722 = vpack.c.b16 %v570, %v562
    %v723 = vpack.c.b16 %v571, %v563
    %v724 = vpack.c.b16 %v572, %v564
    %v725 = vpack.c.b16 %v573, %v565
    %v726 = vpack.c.b16 %v582, %v574
    %v727 = vpack.c.b16 %v583, %v575
    %v728 = vpack.c.b16 %v584, %v576
    %v729 = vpack.c.b16 %v585, %v577
    %v730 = vpack.c.b16 %v586, %v578
    %v731 = vpack.c.b16 %v587, %v579
    %v732 = vpack.c.b16 %v588, %v580
    %v733 = vpack.c.b16 %v589, %v581
    %v734 = vpack.c.b16 %v598, %v590
    %v735 = vpack.c.b16 %v599, %v591
    %v736 = vpack.c.b16 %v600, %v592
    %v737 = vpack.c.b16 %v601, %v593
    %v738 = vpack.c.b16 %v602, %v594
    %v739 = vpack.c.b16 %v603, %v595
    %v740 = vpack.c.b16 %v604, %v596
    %v741 = vpack.c.b16 %v605, %v597
    %v742 = vpack.c.b16 %v614, %v606
    %v743 = vpack.c.b16 %v615, %v607
    %v744 = vpack.c.b16 %v616, %v608
    %v745 = vpack.c.b16 %v617, %v609
    %v746 = vpack.c.b16 %v618, %v610
    %v747 = vpack.c.b16 %v619, %v611
    %v748 = vpack.c.b16 %v620, %v612
    %v749 = vpack.c.b16 %v621, %v613
    %878 = vmatpush.bf16.msra.mxu0 %v678
    %879 = vmatpush.bf16.msra.mxu0 %v670
    %880 = vmatpush.bf16.msra.mxu0 %v662
    %881 = vmatpush.bf16.msra.mxu0 %v654
    %882 = vmatpush.bf16.msra.mxu0 %v646
    %883 = vmatpush.bf16.msra.mxu0 %v638
    %884 = vmatpush.bf16.msra.mxu0 %v630
    %885 = vmatpush.bf16.msra.mxu0 %v622
    %886 = vmatmul.bf16.gmra.mxu0 %v222
    %v887 = vpop.f32.mrf.mxu0
    %v888 = vadd.f32 %v182, %v887
    %v889 = vpop.f32.mrf.mxu0
    %v890 = vadd.f32 %v182, %v889
    %891 = vmatmul.bf16.gmra.mxu0 %v224
    %v892 = vpop.f32.mrf.mxu0
    %v893 = vadd.f32 %v182, %v892
    %v894 = vpop.f32.mrf.mxu0
    %v895 = vadd.f32 %v182, %v894
    %896 = vmatmul.bf16.gmra.mxu0 %v226
    %v897 = vpop.f32.mrf.mxu0
    %v898 = vadd.f32 %v182, %v897
    %v899 = vpop.f32.mrf.mxu0
    %v900 = vadd.f32 %v182, %v899
    %901 = vmatmul.bf16.gmra.mxu0 %v228
    %v902 = vpop.f32.mrf.mxu0
    %v903 = vadd.f32 %v182, %v902
    %v904 = vpop.f32.mrf.mxu0
    %v905 = vadd.f32 %v182, %v904
    %906 = vdwg.mxu0
    %907 = vmatpush.bf16.msra.mxu0 %v742
    %908 = vmatpush.bf16.msra.mxu0 %v734
    %909 = vmatpush.bf16.msra.mxu0 %v726
    %910 = vmatpush.bf16.msra.mxu0 %v718
    %911 = vmatpush.bf16.msra.mxu0 %v710
    %912 = vmatpush.bf16.msra.mxu0 %v702
    %913 = vmatpush.bf16.msra.mxu0 %v694
    %914 = vmatpush.bf16.msra.mxu0 %v686
    %915 = vmatmul.bf16.gmra.mxu0 %v223
    %v916 = vpop.f32.mrf.mxu0
    %v917 = vadd.f32 %v888, %v916
    %v918 = vpop.f32.mrf.mxu0
    %v919 = vadd.f32 %v890, %v918
    %920 = vmatmul.bf16.gmra.mxu0 %v225
    %v921 = vpop.f32.mrf.mxu0
    %v922 = vadd.f32 %v893, %v921
    %v923 = vpop.f32.mrf.mxu0
    %v924 = vadd.f32 %v895, %v923
    %925 = vmatmul.bf16.gmra.mxu0 %v227
    %v926 = vpop.f32.mrf.mxu0
    %v927 = vadd.f32 %v898, %v926
    %v928 = vpop.f32.mrf.mxu0
    %v929 = vadd.f32 %v900, %v928
    %930 = vmatmul.bf16.gmra.mxu0 %v229
    %v931 = vpop.f32.mrf.mxu0
    %v932 = vadd.f32 %v903, %v931
    %v933 = vpop.f32.mrf.mxu0
    %v934 = vadd.f32 %v905, %v933
    %935 = vdwg.mxu0
    %936 = vmatpush.bf16.msra.mxu0 %v679
    %937 = vmatpush.bf16.msra.mxu0 %v671
    %938 = vmatpush.bf16.msra.mxu0 %v663
    %939 = vmatpush.bf16.msra.mxu0 %v655
    %940 = vmatpush.bf16.msra.mxu0 %v647
    %941 = vmatpush.bf16.msra.mxu0 %v639
    %942 = vmatpush.bf16.msra.mxu0 %v631
    %943 = vmatpush.bf16.msra.mxu0 %v623
    %944 = vmatmul.bf16.gmra.mxu0 %v222
    %v945 = vpop.f32.mrf.mxu0
    %v946 = vadd.f32 %v183, %v945
    %v947 = vpop.f32.mrf.mxu0
    %v948 = vadd.f32 %v183, %v947
    %949 = vmatmul.bf16.gmra.mxu0 %v224
    %v950 = vpop.f32.mrf.mxu0
    %v951 = vadd.f32 %v183, %v950
    %v952 = vpop.f32.mrf.mxu0
    %v953 = vadd.f32 %v183, %v952
    %954 = vmatmul.bf16.gmra.mxu0 %v226
    %v955 = vpop.f32.mrf.mxu0
    %v956 = vadd.f32 %v183, %v955
    %v957 = vpop.f32.mrf.mxu0
    %v958 = vadd.f32 %v183, %v957
    %959 = vmatmul.bf16.gmra.mxu0 %v228
    %v960 = vpop.f32.mrf.mxu0
    %v961 = vadd.f32 %v183, %v960
    %v962 = vpop.f32.mrf.mxu0
    %v963 = vadd.f32 %v183, %v962
    %964 = vdwg.mxu0
    %965 = vmatpush.bf16.msra.mxu0 %v743
    %966 = vmatpush.bf16.msra.mxu0 %v735
    %967 = vmatpush.bf16.msra.mxu0 %v727
    %968 = vmatpush.bf16.msra.mxu0 %v719
    %969 = vmatpush.bf16.msra.mxu0 %v711
    %970 = vmatpush.bf16.msra.mxu0 %v703
    %971 = vmatpush.bf16.msra.mxu0 %v695
    %972 = vmatpush.bf16.msra.mxu0 %v687
    %973 = vmatmul.bf16.gmra.mxu0 %v223
    %v974 = vpop.f32.mrf.mxu0
    %v975 = vadd.f32 %v946, %v974
    %v976 = vpop.f32.mrf.mxu0
    %v977 = vadd.f32 %v948, %v976
    %978 = vmatmul.bf16.gmra.mxu0 %v225
    %v979 = vpop.f32.mrf.mxu0
    %v980 = vadd.f32 %v951, %v979
    %v981 = vpop.f32.mrf.mxu0
    %v982 = vadd.f32 %v953, %v981
    %983 = vmatmul.bf16.gmra.mxu0 %v227
    %v984 = vpop.f32.mrf.mxu0
    %v985 = vadd.f32 %v956, %v984
    %v986 = vpop.f32.mrf.mxu0
    %v987 = vadd.f32 %v958, %v986
    %988 = vmatmul.bf16.gmra.mxu0 %v229
    %v989 = vpop.f32.mrf.mxu0
    %v990 = vadd.f32 %v961, %v989
    %v991 = vpop.f32.mrf.mxu0
    %v992 = vadd.f32 %v963, %v991
    %993 = vdwg.mxu0
    %994 = vmatpush.bf16.msra.mxu0 %v680
    %995 = vmatpush.bf16.msra.mxu0 %v672
    %996 = vmatpush.bf16.msra.mxu0 %v664
    %997 = vmatpush.bf16.msra.mxu0 %v656
    %998 = vmatpush.bf16.msra.mxu0 %v648
    %999 = vmatpush.bf16.msra.mxu0 %v640
    %1000 = vmatpush.bf16.msra.mxu0 %v632
    %1001 = vmatpush.bf16.msra.mxu0 %v624
    %1002 = vmatmul.bf16.gmra.mxu0 %v222
    %v1003 = vpop.f32.mrf.mxu0
    %v1004 = vadd.f32 %v184, %v1003
    %v1005 = vpop.f32.mrf.mxu0
    %v1006 = vadd.f32 %v184, %v1005
    %1007 = vmatmul.bf16.gmra.mxu0 %v224
    %v1008 = vpop.f32.mrf.mxu0
    %v1009 = vadd.f32 %v184, %v1008
    %v1010 = vpop.f32.mrf.mxu0
    %v1011 = vadd.f32 %v184, %v1010
    %1012 = vmatmul.bf16.gmra.mxu0 %v226
    %v1013 = vpop.f32.mrf.mxu0
    %v1014 = vadd.f32 %v184, %v1013
    %v1015 = vpop.f32.mrf.mxu0
    %v1016 = vadd.f32 %v184, %v1015
    %1017 = vmatmul.bf16.gmra.mxu0 %v228
    %v1018 = vpop.f32.mrf.mxu0
    %v1019 = vadd.f32 %v184, %v1018
    %v1020 = vpop.f32.mrf.mxu0
    %v1021 = vadd.f32 %v184, %v1020
    %1022 = vdwg.mxu0
    %1023 = vmatpush.bf16.msra.mxu0 %v744
    %1024 = vmatpush.bf16.msra.mxu0 %v736
    %1025 = vmatpush.bf16.msra.mxu0 %v728
    %1026 = vmatpush.bf16.msra.mxu0 %v720
    %1027 = vmatpush.bf16.msra.mxu0 %v712
    %1028 = vmatpush.bf16.msra.mxu0 %v704
    %1029 = vmatpush.bf16.msra.mxu0 %v696
    %1030 = vmatpush.bf16.msra.mxu0 %v688
    %1031 = vmatmul.bf16.gmra.mxu0 %v223
    %v1032 = vpop.f32.mrf.mxu0
    %v1033 = vadd.f32 %v1004, %v1032
    %v1034 = vpop.f32.mrf.mxu0
    %v1035 = vadd.f32 %v1006, %v1034
    %1036 = vmatmul.bf16.gmra.mxu0 %v225
    %v1037 = vpop.f32.mrf.mxu0
    %v1038 = vadd.f32 %v1009, %v1037
    %v1039 = vpop.f32.mrf.mxu0
    %v1040 = vadd.f32 %v1011, %v1039
    %1041 = vmatmul.bf16.gmra.mxu0 %v227
    %v1042 = vpop.f32.mrf.mxu0
    %v1043 = vadd.f32 %v1014, %v1042
    %v1044 = vpop.f32.mrf.mxu0
    %v1045 = vadd.f32 %v1016, %v1044
    %1046 = vmatmul.bf16.gmra.mxu0 %v229
    %v1047 = vpop.f32.mrf.mxu0
    %v1048 = vadd.f32 %v1019, %v1047
    %v1049 = vpop.f32.mrf.mxu0
    %v1050 = vadd.f32 %v1021, %v1049
    %1051 = vdwg.mxu0
    %1052 = vmatpush.bf16.msra.mxu0 %v681
    %1053 = vmatpush.bf16.msra.mxu0 %v673
    %1054 = vmatpush.bf16.msra.mxu0 %v665
    %1055 = vmatpush.bf16.msra.mxu0 %v657
    %1056 = vmatpush.bf16.msra.mxu0 %v649
    %1057 = vmatpush.bf16.msra.mxu0 %v641
    %1058 = vmatpush.bf16.msra.mxu0 %v633
    %1059 = vmatpush.bf16.msra.mxu0 %v625
    %1060 = vmatmul.bf16.gmra.mxu0 %v222
    %v1061 = vpop.f32.mrf.mxu0
    %v1062 = vadd.f32 %v185, %v1061
    %v1063 = vpop.f32.mrf.mxu0
    %v1064 = vadd.f32 %v185, %v1063
    %1065 = vmatmul.bf16.gmra.mxu0 %v224
    %v1066 = vpop.f32.mrf.mxu0
    %v1067 = vadd.f32 %v185, %v1066
    %v1068 = vpop.f32.mrf.mxu0
    %v1069 = vadd.f32 %v185, %v1068
    %1070 = vmatmul.bf16.gmra.mxu0 %v226
    %v1071 = vpop.f32.mrf.mxu0
    %v1072 = vadd.f32 %v185, %v1071
    %v1073 = vpop.f32.mrf.mxu0
    %v1074 = vadd.f32 %v185, %v1073
    %1075 = vmatmul.bf16.gmra.mxu0 %v228
    %v1076 = vpop.f32.mrf.mxu0
    %v1077 = vadd.f32 %v185, %v1076
    %v1078 = vpop.f32.mrf.mxu0
    %v1079 = vadd.f32 %v185, %v1078
    %1080 = vdwg.mxu0
    %1081 = vmatpush.bf16.msra.mxu0 %v745
    %1082 = vmatpush.bf16.msra.mxu0 %v737
    %1083 = vmatpush.bf16.msra.mxu0 %v729
    %1084 = vmatpush.bf16.msra.mxu0 %v721
    %1085 = vmatpush.bf16.msra.mxu0 %v713
    %1086 = vmatpush.bf16.msra.mxu0 %v705
    %1087 = vmatpush.bf16.msra.mxu0 %v697
    %1088 = vmatpush.bf16.msra.mxu0 %v689
    %1089 = vmatmul.bf16.gmra.mxu0 %v223
    %v1090 = vpop.f32.mrf.mxu0
    %v1091 = vadd.f32 %v1062, %v1090
    %v1092 = vpop.f32.mrf.mxu0
    %v1093 = vadd.f32 %v1064, %v1092
    %1094 = vmatmul.bf16.gmra.mxu0 %v225
    %v1095 = vpop.f32.mrf.mxu0
    %v1096 = vadd.f32 %v1067, %v1095
    %v1097 = vpop.f32.mrf.mxu0
    %v1098 = vadd.f32 %v1069, %v1097
    %1099 = vmatmul.bf16.gmra.mxu0 %v227
    %v1100 = vpop.f32.mrf.mxu0
    %v1101 = vadd.f32 %v1072, %v1100
    %v1102 = vpop.f32.mrf.mxu0
    %v1103 = vadd.f32 %v1074, %v1102
    %1104 = vmatmul.bf16.gmra.mxu0 %v229
    %v1105 = vpop.f32.mrf.mxu0
    %v1106 = vadd.f32 %v1077, %v1105
    %v1107 = vpop.f32.mrf.mxu0
    %v1108 = vadd.f32 %v1079, %v1107
    %1109 = vdwg.mxu0
    %1110 = vmatpush.bf16.msra.mxu0 %v682
    %1111 = vmatpush.bf16.msra.mxu0 %v674
    %1112 = vmatpush.bf16.msra.mxu0 %v666
    %1113 = vmatpush.bf16.msra.mxu0 %v658
    %1114 = vmatpush.bf16.msra.mxu0 %v650
    %1115 = vmatpush.bf16.msra.mxu0 %v642
    %1116 = vmatpush.bf16.msra.mxu0 %v634
    %1117 = vmatpush.bf16.msra.mxu0 %v626
    %1118 = vmatmul.bf16.gmra.mxu0 %v222
    %v1119 = vpop.f32.mrf.mxu0
    %v1120 = vadd.f32 %v186, %v1119
    %v1121 = vpop.f32.mrf.mxu0
    %v1122 = vadd.f32 %v186, %v1121
    %1123 = vmatmul.bf16.gmra.mxu0 %v224
    %v1124 = vpop.f32.mrf.mxu0
    %v1125 = vadd.f32 %v186, %v1124
    %v1126 = vpop.f32.mrf.mxu0
    %v1127 = vadd.f32 %v186, %v1126
    %1128 = vmatmul.bf16.gmra.mxu0 %v226
    %v1129 = vpop.f32.mrf.mxu0
    %v1130 = vadd.f32 %v186, %v1129
    %v1131 = vpop.f32.mrf.mxu0
    %v1132 = vadd.f32 %v186, %v1131
    %1133 = vmatmul.bf16.gmra.mxu0 %v228
    %v1134 = vpop.f32.mrf.mxu0
    %v1135 = vadd.f32 %v186, %v1134
    %v1136 = vpop.f32.mrf.mxu0
    %v1137 = vadd.f32 %v186, %v1136
    %1138 = vdwg.mxu0
    %1139 = vmatpush.bf16.msra.mxu0 %v746
    %1140 = vmatpush.bf16.msra.mxu0 %v738
    %1141 = vmatpush.bf16.msra.mxu0 %v730
    %1142 = vmatpush.bf16.msra.mxu0 %v722
    %1143 = vmatpush.bf16.msra.mxu0 %v714
    %1144 = vmatpush.bf16.msra.mxu0 %v706
    %1145 = vmatpush.bf16.msra.mxu0 %v698
    %1146 = vmatpush.bf16.msra.mxu0 %v690
    %1147 = vmatmul.bf16.gmra.mxu0 %v223
    %v1148 = vpop.f32.mrf.mxu0
    %v1149 = vadd.f32 %v1120, %v1148
    %v1150 = vpop.f32.mrf.mxu0
    %v1151 = vadd.f32 %v1122, %v1150
    %1152 = vmatmul.bf16.gmra.mxu0 %v225
    %v1153 = vpop.f32.mrf.mxu0
    %v1154 = vadd.f32 %v1125, %v1153
    %v1155 = vpop.f32.mrf.mxu0
    %v1156 = vadd.f32 %v1127, %v1155
    %1157 = vmatmul.bf16.gmra.mxu0 %v227
    %v1158 = vpop.f32.mrf.mxu0
    %v1159 = vadd.f32 %v1130, %v1158
    %v1160 = vpop.f32.mrf.mxu0
    %v1161 = vadd.f32 %v1132, %v1160
    %1162 = vmatmul.bf16.gmra.mxu0 %v229
    %v1163 = vpop.f32.mrf.mxu0
    %v1164 = vadd.f32 %v1135, %v1163
    %v1165 = vpop.f32.mrf.mxu0
    %v1166 = vadd.f32 %v1137, %v1165
    %1167 = vdwg.mxu0
    %1168 = vmatpush.bf16.msra.mxu0 %v683
    %1169 = vmatpush.bf16.msra.mxu0 %v675
    %1170 = vmatpush.bf16.msra.mxu0 %v667
    %1171 = vmatpush.bf16.msra.mxu0 %v659
    %1172 = vmatpush.bf16.msra.mxu0 %v651
    %1173 = vmatpush.bf16.msra.mxu0 %v643
    %1174 = vmatpush.bf16.msra.mxu0 %v635
    %1175 = vmatpush.bf16.msra.mxu0 %v627
    %1176 = vmatmul.bf16.gmra.mxu0 %v222
    %v1177 = vpop.f32.mrf.mxu0
    %v1178 = vadd.f32 %v187, %v1177
    %v1179 = vpop.f32.mrf.mxu0
    %v1180 = vadd.f32 %v187, %v1179
    %1181 = vmatmul.bf16.gmra.mxu0 %v224
    %v1182 = vpop.f32.mrf.mxu0
    %v1183 = vadd.f32 %v187, %v1182
    %v1184 = vpop.f32.mrf.mxu0
    %v1185 = vadd.f32 %v187, %v1184
    %1186 = vmatmul.bf16.gmra.mxu0 %v226
    %v1187 = vpop.f32.mrf.mxu0
    %v1188 = vadd.f32 %v187, %v1187
    %v1189 = vpop.f32.mrf.mxu0
    %v1190 = vadd.f32 %v187, %v1189
    %1191 = vmatmul.bf16.gmra.mxu0 %v228
    %v1192 = vpop.f32.mrf.mxu0
    %v1193 = vadd.f32 %v187, %v1192
    %v1194 = vpop.f32.mrf.mxu0
    %v1195 = vadd.f32 %v187, %v1194
    %1196 = vdwg.mxu0
    %1197 = vmatpush.bf16.msra.mxu0 %v747
    %1198 = vmatpush.bf16.msra.mxu0 %v739
    %1199 = vmatpush.bf16.msra.mxu0 %v731
    %1200 = vmatpush.bf16.msra.mxu0 %v723
    %1201 = vmatpush.bf16.msra.mxu0 %v715
    %1202 = vmatpush.bf16.msra.mxu0 %v707
    %1203 = vmatpush.bf16.msra.mxu0 %v699
    %1204 = vmatpush.bf16.msra.mxu0 %v691
    %1205 = vmatmul.bf16.gmra.mxu0 %v223
    %v1206 = vpop.f32.mrf.mxu0
    %v1207 = vadd.f32 %v1178, %v1206
    %v1208 = vpop.f32.mrf.mxu0
    %v1209 = vadd.f32 %v1180, %v1208
    %1210 = vmatmul.bf16.gmra.mxu0 %v225
    %v1211 = vpop.f32.mrf.mxu0
    %v1212 = vadd.f32 %v1183, %v1211
    %v1213 = vpop.f32.mrf.mxu0
    %v1214 = vadd.f32 %v1185, %v1213
    %1215 = vmatmul.bf16.gmra.mxu0 %v227
    %v1216 = vpop.f32.mrf.mxu0
    %v1217 = vadd.f32 %v1188, %v1216
    %v1218 = vpop.f32.mrf.mxu0
    %v1219 = vadd.f32 %v1190, %v1218
    %1220 = vmatmul.bf16.gmra.mxu0 %v229
    %v1221 = vpop.f32.mrf.mxu0
    %v1222 = vadd.f32 %v1193, %v1221
    %v1223 = vpop.f32.mrf.mxu0
    %v1224 = vadd.f32 %v1195, %v1223
    %1225 = vdwg.mxu0
    %1226 = vmatpush.bf16.msra.mxu0 %v684
    %1227 = vmatpush.bf16.msra.mxu0 %v676
    %1228 = vmatpush.bf16.msra.mxu0 %v668
    %1229 = vmatpush.bf16.msra.mxu0 %v660
    %1230 = vmatpush.bf16.msra.mxu0 %v652
    %1231 = vmatpush.bf16.msra.mxu0 %v644
    %1232 = vmatpush.bf16.msra.mxu0 %v636
    %1233 = vmatpush.bf16.msra.mxu0 %v628
    %1234 = vmatmul.bf16.gmra.mxu0 %v222
    %v1235 = vpop.f32.mrf.mxu0
    %v1236 = vadd.f32 %v188, %v1235
    %v1237 = vpop.f32.mrf.mxu0
    %v1238 = vadd.f32 %v188, %v1237
    %1239 = vmatmul.bf16.gmra.mxu0 %v224
    %v1240 = vpop.f32.mrf.mxu0
    %v1241 = vadd.f32 %v188, %v1240
    %v1242 = vpop.f32.mrf.mxu0
    %v1243 = vadd.f32 %v188, %v1242
    %1244 = vmatmul.bf16.gmra.mxu0 %v226
    %v1245 = vpop.f32.mrf.mxu0
    %v1246 = vadd.f32 %v188, %v1245
    %v1247 = vpop.f32.mrf.mxu0
    %v1248 = vadd.f32 %v188, %v1247
    %1249 = vmatmul.bf16.gmra.mxu0 %v228
    %v1250 = vpop.f32.mrf.mxu0
    %v1251 = vadd.f32 %v188, %v1250
    %v1252 = vpop.f32.mrf.mxu0
    %v1253 = vadd.f32 %v188, %v1252
    %1254 = vdwg.mxu0
    %1255 = vmatpush.bf16.msra.mxu0 %v748
    %1256 = vmatpush.bf16.msra.mxu0 %v740
    %1257 = vmatpush.bf16.msra.mxu0 %v732
    %1258 = vmatpush.bf16.msra.mxu0 %v724
    %1259 = vmatpush.bf16.msra.mxu0 %v716
    %1260 = vmatpush.bf16.msra.mxu0 %v708
    %1261 = vmatpush.bf16.msra.mxu0 %v700
    %1262 = vmatpush.bf16.msra.mxu0 %v692
    %1263 = vmatmul.bf16.gmra.mxu0 %v223
    %v1264 = vpop.f32.mrf.mxu0
    %v1265 = vadd.f32 %v1236, %v1264
    %v1266 = vpop.f32.mrf.mxu0
    %v1267 = vadd.f32 %v1238, %v1266
    %1268 = vmatmul.bf16.gmra.mxu0 %v225
    %v1269 = vpop.f32.mrf.mxu0
    %v1270 = vadd.f32 %v1241, %v1269
    %v1271 = vpop.f32.mrf.mxu0
    %v1272 = vadd.f32 %v1243, %v1271
    %1273 = vmatmul.bf16.gmra.mxu0 %v227
    %v1274 = vpop.f32.mrf.mxu0
    %v1275 = vadd.f32 %v1246, %v1274
    %v1276 = vpop.f32.mrf.mxu0
    %v1277 = vadd.f32 %v1248, %v1276
    %1278 = vmatmul.bf16.gmra.mxu0 %v229
    %v1279 = vpop.f32.mrf.mxu0
    %v1280 = vadd.f32 %v1251, %v1279
    %v1281 = vpop.f32.mrf.mxu0
    %v1282 = vadd.f32 %v1253, %v1281
    %1283 = vdwg.mxu0
    %1284 = vmatpush.bf16.msra.mxu0 %v685
    %1285 = vmatpush.bf16.msra.mxu0 %v677
    %1286 = vmatpush.bf16.msra.mxu0 %v669
    %1287 = vmatpush.bf16.msra.mxu0 %v661
    %1288 = vmatpush.bf16.msra.mxu0 %v653
    %1289 = vmatpush.bf16.msra.mxu0 %v645
    %1290 = vmatpush.bf16.msra.mxu0 %v637
    %1291 = vmatpush.bf16.msra.mxu0 %v629
    %1292 = vmatmul.bf16.gmra.mxu0 %v222
    %v1293 = vpop.f32.mrf.mxu0
    %v1294 = vadd.f32 %v189, %v1293
    %v1295 = vpop.f32.mrf.mxu0
    %v1296 = vadd.f32 %v189, %v1295
    %1297 = vmatmul.bf16.gmra.mxu0 %v224
    %v1298 = vpop.f32.mrf.mxu0
    %v1299 = vadd.f32 %v189, %v1298
    %v1300 = vpop.f32.mrf.mxu0
    %v1301 = vadd.f32 %v189, %v1300
    %1302 = vmatmul.bf16.gmra.mxu0 %v226
    %v1303 = vpop.f32.mrf.mxu0
    %v1304 = vadd.f32 %v189, %v1303
    %v1305 = vpop.f32.mrf.mxu0
    %v1306 = vadd.f32 %v189, %v1305
    %1307 = vmatmul.bf16.gmra.mxu0 %v228
    %v1308 = vpop.f32.mrf.mxu0
    %v1309 = vadd.f32 %v189, %v1308
    %v1310 = vpop.f32.mrf.mxu0
    %v1311 = vadd.f32 %v189, %v1310
    %1312 = vdwg.mxu0
    %1313 = vmatpush.bf16.msra.mxu0 %v749
    %1314 = vmatpush.bf16.msra.mxu0 %v741
    %1315 = vmatpush.bf16.msra.mxu0 %v733
    %1316 = vmatpush.bf16.msra.mxu0 %v725
    %1317 = vmatpush.bf16.msra.mxu0 %v717
    %1318 = vmatpush.bf16.msra.mxu0 %v709
    %1319 = vmatpush.bf16.msra.mxu0 %v701
    %1320 = vmatpush.bf16.msra.mxu0 %v693
    %1321 = vmatmul.bf16.gmra.mxu0 %v223
    %v1322 = vpop.f32.mrf.mxu0
    %v1323 = vadd.f32 %v1294, %v1322
    %v1324 = vpop.f32.mrf.mxu0
    %v1325 = vadd.f32 %v1296, %v1324
    %1326 = vmatmul.bf16.gmra.mxu0 %v225
    %v1327 = vpop.f32.mrf.mxu0
    %v1328 = vadd.f32 %v1299, %v1327
    %v1329 = vpop.f32.mrf.mxu0
    %v1330 = vadd.f32 %v1301, %v1329
    %1331 = vmatmul.bf16.gmra.mxu0 %v227
    %v1332 = vpop.f32.mrf.mxu0
    %v1333 = vadd.f32 %v1304, %v1332
    %v1334 = vpop.f32.mrf.mxu0
    %v1335 = vadd.f32 %v1306, %v1334
    %1336 = vmatmul.bf16.gmra.mxu0 %v229
    %v1337 = vpop.f32.mrf.mxu0
    %v1338 = vadd.f32 %v1309, %v1337
    %v1339 = vpop.f32.mrf.mxu0
    %v1340 = vadd.f32 %v1311, %v1339
    %1341 = vdwg.mxu0
    %v1342 = vpack.c.bf16 %v975, %v917
    %v1343 = vpack.c.bf16 %v1091, %v1033
    %v1344 = vpack.c.bf16 %v977, %v919
    %v1345 = vpack.c.bf16 %v1093, %v1035
    %v1346 = vpack.c.bf16 %v980, %v922
    %v1347 = vpack.c.bf16 %v1096, %v1038
    %v1348 = vpack.c.bf16 %v982, %v924
    %v1349 = vpack.c.bf16 %v1098, %v1040
    %v1350 = vpack.c.bf16 %v985, %v927
    %v1351 = vpack.c.bf16 %v1101, %v1043
    %v1352 = vpack.c.bf16 %v987, %v929
    %v1353 = vpack.c.bf16 %v1103, %v1045
    %v1354 = vpack.c.bf16 %v990, %v932
    %v1355 = vpack.c.bf16 %v1106, %v1048
    %v1356 = vpack.c.bf16 %v992, %v934
    %v1357 = vpack.c.bf16 %v1108, %v1050
    %1358 = vst [vmem:[%s3] sm:$0xff] %v1342
    %1359 = vst [vmem:[%s3 + $0x8] sm:$0xff] %v1343
    %1360 = vst [vmem:[%s3 + $0x10] sm:$0xff] %v1344
    %1361 = vst [vmem:[%s3 + $0x18] sm:$0xff] %v1345
    %1362 = vst [vmem:[%s3 + $0x20] sm:$0xff] %v1346
    %1363 = vst [vmem:[%s3 + $0x28] sm:$0xff] %v1347
    %1364 = vst [vmem:[%s3 + $0x30] sm:$0xff] %v1348
    %1365 = vst [vmem:[%s3 + $0x38] sm:$0xff] %v1349
    %1366 = vst [vmem:[%s3 + $0x40] sm:$0xff] %v1350
    %1367 = vst [vmem:[%s3 + $0x48] sm:$0xff] %v1351
    %1368 = vst [vmem:[%s3 + $0x50] sm:$0xff] %v1352
    %1369 = vst [vmem:[%s3 + $0x58] sm:$0xff] %v1353
    %1370 = vst [vmem:[%s3 + $0x60] sm:$0xff] %v1354
    %1371 = vst [vmem:[%s3 + $0x68] sm:$0xff] %v1355
    %1372 = vst [vmem:[%s3 + $0x70] sm:$0xff] %v1356
    %1373 = vst [vmem:[%s3 + $0x78] sm:$0xff] %v1357
    %v1374 = vpack.c.bf16 %v1207, %v1149
    %v1375 = vpack.c.bf16 %v1323, %v1265
    %v1376 = vpack.c.bf16 %v1209, %v1151
    %v1377 = vpack.c.bf16 %v1325, %v1267
    %v1378 = vpack.c.bf16 %v1212, %v1154
    %v1379 = vpack.c.bf16 %v1328, %v1270
    %v1380 = vpack.c.bf16 %v1214, %v1156
    %v1381 = vpack.c.bf16 %v1330, %v1272
    %v1382 = vpack.c.bf16 %v1217, %v1159
    %v1383 = vpack.c.bf16 %v1333, %v1275
    %v1384 = vpack.c.bf16 %v1219, %v1161
    %v1385 = vpack.c.bf16 %v1335, %v1277
    %v1386 = vpack.c.bf16 %v1222, %v1164
    %v1387 = vpack.c.bf16 %v1338, %v1280
    %v1388 = vpack.c.bf16 %v1224, %v1166
    %v1389 = vpack.c.bf16 %v1340, %v1282
    %s1390 = scalar_lea.vmem %s3, 128
    %1391 = vst [vmem:[%s1390] sm:$0xff] %v1374
    %1392 = vst [vmem:[%s1390 + $0x8] sm:$0xff] %v1375
    %1393 = vst [vmem:[%s1390 + $0x10] sm:$0xff] %v1376
    %1394 = vst [vmem:[%s1390 + $0x18] sm:$0xff] %v1377
    %1395 = vst [vmem:[%s1390 + $0x20] sm:$0xff] %v1378
    %1396 = vst [vmem:[%s1390 + $0x28] sm:$0xff] %v1379
    %1397 = vst [vmem:[%s1390 + $0x30] sm:$0xff] %v1380
    %1398 = vst [vmem:[%s1390 + $0x38] sm:$0xff] %v1381
    %1399 = vst [vmem:[%s1390 + $0x40] sm:$0xff] %v1382
    %1400 = vst [vmem:[%s1390 + $0x48] sm:$0xff] %v1383
    %1401 = vst [vmem:[%s1390 + $0x50] sm:$0xff] %v1384
    %1402 = vst [vmem:[%s1390 + $0x58] sm:$0xff] %v1385
    %1403 = vst [vmem:[%s1390 + $0x60] sm:$0xff] %v1386
    %1404 = vst [vmem:[%s1390 + $0x68] sm:$0xff] %v1387
    %1405 = vst [vmem:[%s1390 + $0x70] sm:$0xff] %v1388
    %1406 = vst [vmem:[%s1390 + $0x78] sm:$0xff] %v1389
    // Predicated region
    $region22: #{audio_lstm_forward.6} parent=1 // pred_check
      _
    $region23: #{audio_lstm_forward.6} parent=1 // pred_check_branch
      %1408 = sbr.rel (0) target = $region25
    $region24: #{audio_lstm_forward.6} parent=1 // pred_region
      _
    $region25: #{audio_lstm_forward.6} parent=1 // pred_fallthru
      _
    // Predicated region
    $region26: #{audio_lstm_forward.6} parent=1 // pred_check
      _
    $region27: #{audio_lstm_forward.6} parent=1 // pred_check_branch
      %1410 = sbr.rel (0) target = $region29
    $region28: #{audio_lstm_forward.6} parent=1 // pred_region
      _
    $region29: #{audio_lstm_forward.6} parent=1 // pred_fallthru
      _
    %1411 = vsyncpa [#allocation3], 1
    %1412 = vsyncpa [#allocation5], 1

// kernel: audio_lstm_forward.5
$region0: #{audio_lstm_forward.5}
  #allocation0 [shape = 'u32[]', space=smem, size = 0x4, offset = 0x4, fixed_abs, tag = 'smem constant byte address 0x4 - core index']
  #allocation1 [shape = 'u32[72,128]{1,0:T(1,128)}', space=vmem, size = 0x9000, scoped, tag = 'internal scratch']
  #allocation2 [shape = 'f32[8,128]{1,0:T(8,128)}', space=vmem, size = 0x1000, scoped, tag = 'scratch operand']
  #allocation3 [shape = 'f32[8,128]{1,0:T(8,128)}', space=vmem, size = 0x1000, scoped, tag = 'scratch operand']
  %s0 = inlined_call_operand.vmem [shape: bf16[2,8,8,512], index: 0, kind: input, shape index: {}]
  %s1 = inlined_call_operand.hbm [shape: bf16[2,128,512], index: 1, kind: input, shape index: {}]
  %s2 = inlined_call_operand.vmem [shape: bf16[8,8,256], index: 2, kind: output, shape index: {}]
  %s3 = sld [smem:[#allocation0]]
  $region94: #{audio_lstm_forward.5} parent=0
    _
  %s5 = ssub.s32 1, %s3
  %s6 = scalar_select 0, %s5, %s3
  $region1: #{audio_lstm_forward.5} parent=0
    #allocation4 [shape = 'u8[262144]{0}', space=vmem, size = 0x40000, scoped, tag = 'input window, operand 1']
    #allocation5 [shape = 's32[2]{0}', space=sflag, size = 0x8, scoped, tag = 'scoped memory for audio_lstm_forward.5']
    #allocation6 [shape = 'u8[32768]{0}', space=vmem, size = 0x8000, scoped, tag = 'output window, operand 0']
    %7 = vsyncpa [#allocation5], 0
    %s8 = scalar_lea.sflag [#allocation5], 1
    %9 = vsyncpa %s8, 0
    loop: start=0, step=1, limit=4
    $region2: #{audio_lstm_forward.5} parent=1 // loop_pre_header
      _
    $region3: #{audio_lstm_forward.5} parent=1 // loop_header
      %s11 = sphi 0, %s15
      %p12 = scmp.ge.s32.totalorder %s11, 4
      %s18 = sphi 0, %s30
      %s19 = sphi 0, %s26
      %s20 = sphi 0, %s18
      %s21 = sphi 0, %s19
      %s22 = sphi 0, %s20
      %s23 = sphi 0, %s21
      %s43 = sphi 0, %s45
      %s46 = sphi 0, %s43
      %s47 = sphi 0, %s46
      %s63 = sphi 0, %s47
      %s69 = sphi 0, %s71
      %s72 = sphi 0, %s69
      %s73 = sphi 0, %s72
      %s89 = sphi 0, %s73
      %s105 = sphi 0, %s107
      %s108 = sphi 0, %s105
      %s109 = sphi 0, %s108
      %s125 = sphi 0, %s109
    $region4: #{audio_lstm_forward.5} parent=1 // loop_header_branch
      %14 = sbr.rel (%p12) target = $region8
    $region5: #{audio_lstm_forward.5} parent=1 // loop_body
      %s16 = ssub.s32 %s11, 1
      %s17 = ssub.s32 %s11, 2
      %s24 = sadd.s32 1, %s19
      %p25 = scmp.ge.s32.totalorder %s24, 1
      %s26 = scalar_select %p25, 0, %s24
      %s27 = sadd.s32 1, %s18
      %s28 = scalar_select %p25, %s27, %s18
      %p29 = scmp.ge.s32.totalorder %s28, 2
      %s30 = scalar_select %p29, 0, %s28
      %s31 = smul.u32 %s19, 2
      %s32 = ssub.s32 0, %s31
      %s33 = smul.u32 %s18, %s32
      %s34 = sadd.s32 %s19, %s33
      %s35 = smul.u32 %s26, 2
      %s36 = ssub.s32 0, %s35
      %s37 = smul.u32 %s30, %s36
      %s38 = sadd.s32 %s26, %s37
      %s39 = ssub.s32 %s18, %s30
      %s40 = ssub.s32 %s34, %s38
      %s41 = sor.u32 %s39, %s40
      %p42 = scmp.eq.s32.totalorder %s41, 0
      %s44 = sadd.s32 %s43, 1
      %s45 = scalar_select %p42, %s43, %s44
      %p48 = pneg %p42
      %p49 = scmp.eq.s32.totalorder %s11, 1
      %p50 = por %p48, %p49
      %p51 = scmp.ne.s32.totalorder %s43, %s46
      %p52 = scmp.eq.s32.totalorder %s11, 0
      %p53 = por %p51, %p52
      %p54 = scmp.ne.s32.totalorder %s43, %s46
      %p55 = scmp.eq.s32.totalorder %s16, 1
      %p56 = por %p54, %p55
      %p57 = scmp.ne.s32.totalorder %s46, %s47
      %p58 = scmp.eq.s32.totalorder %s16, 0
      %p59 = por %p57, %p58
      %p60 = scmp.ne.s32.totalorder %s46, %s47
      %p61 = scmp.eq.s32.totalorder %s17, 1
      %p62 = por %p60, %p61
      %p64 = scmp.ne.s32.totalorder %s47, %s63
      %p65 = scmp.eq.s32.totalorder %s17, 0
      %p66 = por %p64, %p65
      %s67 = ssub.s32 %s18, %s30
      %p68 = scmp.eq.s32.totalorder %s67, 0
      %s70 = sadd.s32 %s69, 1
      %s71 = scalar_select %p68, %s69, %s70
      %p74 = pneg %p68
      %p75 = scmp.eq.s32.totalorder %s11, 1
      %p76 = por %p74, %p75
      %p77 = scmp.ne.s32.totalorder %s69, %s72
      %p78 = scmp.eq.s32.totalorder %s11, 0
      %p79 = por %p77, %p78
      %p80 = scmp.ne.s32.totalorder %s69, %s72
      %p81 = scmp.eq.s32.totalorder %s16, 1
      %p82 = por %p80, %p81
      %p83 = scmp.ne.s32.totalorder %s72, %s73
      %p84 = scmp.eq.s32.totalorder %s16, 0
      %p85 = por %p83, %p84
      %p86 = scmp.ne.s32.totalorder %s72, %s73
      %p87 = scmp.eq.s32.totalorder %s17, 1
      %p88 = por %p86, %p87
      %p90 = scmp.ne.s32.totalorder %s73, %s89
      %p91 = scmp.eq.s32.totalorder %s17, 0
      %p92 = por %p90, %p91
      %s93 = smul.u32 %s19, 2
      %s94 = ssub.s32 0, %s93
      %s95 = smul.u32 %s18, %s94
      %s96 = sadd.s32 %s19, %s95
      %s97 = smul.u32 %s26, 2
      %s98 = ssub.s32 0, %s97
      %s99 = smul.u32 %s30, %s98
      %s100 = sadd.s32 %s26, %s99
      %s101 = ssub.s32 %s96, %s100
      %s102 = ssub.s32 %s18, %s30
      %s103 = sor.u32 %s101, %s102
      %p104 = scmp.eq.s32.totalorder %s103, 0
      %s106 = sadd.s32 %s105, 1
      %s107 = scalar_select %p104, %s105, %s106
      %p110 = pneg %p104
      %p111 = scmp.eq.s32.totalorder %s11, 1
      %p112 = por %p110, %p111
      %p113 = scmp.ne.s32.totalorder %s105, %s108
      %p114 = scmp.eq.s32.totalorder %s11, 0
      %p115 = por %p113, %p114
      %p116 = scmp.ne.s32.totalorder %s105, %s108
      %p117 = scmp.eq.s32.totalorder %s16, 1
      %p118 = por %p116, %p117
      %p119 = scmp.ne.s32.totalorder %s108, %s109
      %p120 = scmp.eq.s32.totalorder %s16, 0
      %p121 = por %p119, %p120
      %p122 = scmp.ne.s32.totalorder %s108, %s109
      %p123 = scmp.eq.s32.totalorder %s17, 1
      %p124 = por %p122, %p123
      %p126 = scmp.ne.s32.totalorder %s109, %s125
      %p127 = scmp.eq.s32.totalorder %s17, 0
      %p128 = por %p126, %p127
      %p129 = scmp.le.s32.totalorder 1, %s11
      %p130 = scmp.lt.s32.totalorder %s11, 3
      %p131 = pnand %p129, %p130
      %p132 = pneg %p131
      // Predicated region
      $region9: #{audio_lstm_forward.5} parent=5 // pred_check
        _
      $region10: #{audio_lstm_forward.5} parent=5 // pred_check_branch
        %134 = sbr.rel (%p131) target = $region12
      $region11: #{audio_lstm_forward.5} parent=5 // pred_region
        %s135 = ssub.s32 %s11, 1
      $region12: #{audio_lstm_forward.5} parent=5 // pred_fallthru
        _
      %p136 = scmp.lt.s32.totalorder %s11, 2
      // Predicated region
      $region13: #{audio_lstm_forward.5} parent=5 // pred_check
        %p137 = pneg %p136
      $region14: #{audio_lstm_forward.5} parent=5 // pred_check_branch
        %139 = sbr.rel (%p137) target = $region16
      $region15: #{audio_lstm_forward.5} parent=5 // pred_region
        // Predicated region
        $region17: #{audio_lstm_forward.5} parent=15 // pred_check
          %p140 = pneg %p53
        $region18: #{audio_lstm_forward.5} parent=15 // pred_check_branch
          %142 = sbr.rel (%p140) target = $region20
        $region19: #{audio_lstm_forward.5} parent=15 // pred_region
          %s143 = smul.u32 %s19, 2
          %s144 = ssub.s32 0, %s143
          %s145 = smul.u32 %s18, %s144
          %s146 = sadd.s32 %s19, %s145
          %s147 = smul.u32 8, %s146
          %p148 = scmp.lt.s32.totalorder %s18, 1
          %s149 = scalar_select %p148, %s18, 1
          %p150 = scmp.lt.s32.totalorder %s147, 7
          %s151 = scalar_select %p150, %s147, 7
          %s152 = smul.addr %s151, 4
          %s153 = smul.addr %s149, 32
          %s154 = sadd.s32 %s152, %s153
          %s155 = smul.addr %s154, 4
          %s156 = scalar_lea.vmem %s0, %s155
          %s157 = smul.u32 %s19, 2
          %s158 = ssub.s32 0, %s157
          %s159 = smul.u32 %s18, %s158
          %s160 = sadd.s32 %s19, %s159
          %s161 = smul.u32 8, %s160
        $region20: #{audio_lstm_forward.5} parent=15 // pred_fallthru
          _
        // Predicated region
        $region21: #{audio_lstm_forward.5} parent=15 // pred_check
          %p162 = pneg %p79
        $region22: #{audio_lstm_forward.5} parent=15 // pred_check_branch
          %164 = sbr.rel (%p162) target = $region24
        $region23: #{audio_lstm_forward.5} parent=15 // pred_region
          %s165 = sand.u32 %s69, 1
          %s166 = scalar_lea.sflag [#allocation5], %s165
          %s167 = sand.u32 %s69, 1
          %s168 = smul.addr %s167, 256
          %s169 = scalar_lea.vmem [#allocation4], %s168
          %171 = vsyncadd %s166, 0
          %s172 = smul.addr %s18, 64
          %s173 = smul.addr %s172, 4
          %s174 = scalar_lea.hbm %s1, %s173
          %s175 = sshll.u32 %s174, 4
          %s176 = int_to_ptr.hbm [resolvable:$true] %s175
          %s177 = sshll.u32 %s169, 4
          %s178 = int_to_ptr.vmem [resolvable:$true] %s177
          %183 = dma.hbm_to_vmem [thread:$0]  %s176, 4096, %s178, %s166, 256, 256, 16
        $region24: #{audio_lstm_forward.5} parent=15 // pred_fallthru
          _
      $region16: #{audio_lstm_forward.5} parent=5 // pred_fallthru
        _
      %p184 = scmp.le.s32.totalorder 1, %s11
      %p185 = scmp.lt.s32.totalorder %s11, 3
      %p186 = pnand %p184, %p185
      %p187 = pneg %p186
      // Predicated region
      $region25: #{audio_lstm_forward.5} parent=5 // pred_check
        _
      $region26: #{audio_lstm_forward.5} parent=5 // pred_check_branch
        %189 = sbr.rel (%p186) target = $region28
      $region27: #{audio_lstm_forward.5} parent=5 // pred_region
        %s190 = ssub.s32 %s11, 1
        %s191 = sand.u32 %s72, 1
        %s192 = scalar_lea.sflag [#allocation5], %s191
        %s193 = sand.u32 %s72, 1
        %s194 = smul.addr %s193, 256
        %s195 = scalar_lea.vmem [#allocation4], %s194
        // Predicated region
        $region29: #{audio_lstm_forward.5} parent=27 // pred_check
          %p196 = pneg %p85
        $region30: #{audio_lstm_forward.5} parent=27 // pred_check_branch
          %198 = sbr.rel (%p196) target = $region32
        $region31: #{audio_lstm_forward.5} parent=27 // pred_region
          %200 = dma.done %s192, 4096
        $region32: #{audio_lstm_forward.5} parent=27 // pred_fallthru
          _
        %s201 = smul.u32 %s21, 2
        %s202 = ssub.s32 0, %s201
        %s203 = smul.u32 %s20, %s202
        %s204 = sadd.s32 %s21, %s203
        %s205 = smul.u32 8, %s204
        %p206 = scmp.lt.s32.totalorder %s20, 1
        %s207 = scalar_select %p206, %s20, 1
        %p208 = scmp.lt.s32.totalorder %s205, 7
        %s209 = scalar_select %p208, %s205, 7
        %s210 = smul.addr %s209, 4
        %s211 = smul.addr %s207, 32
        %s212 = sadd.s32 %s210, %s211
        %s213 = smul.addr %s212, 4
        %s214 = scalar_lea.vmem %s0, %s213
        %p215 = pneg %p59
        %p216 = pneg %p56
        %s217 = sand.u32 %s72, 1
        %s218 = scalar_lea.sflag [#allocation5], %s217
        %s219 = sand.u32 %s72, 1
        %s220 = smul.addr %s219, 256
        %s221 = scalar_lea.vmem [#allocation4], %s220
        %p222 = pneg %p85
        %p223 = pneg %p82
        %p224 = pneg %p121
        %p225 = pneg %p118
        %s226 = sand.u32 %s108, 1
        %s227 = sand.u32 %s108, 1
        %s228 = smul.addr %s227, 32
        %s229 = scalar_lea.vmem [#allocation6], %s228
        %s230 = smul.u32 %s21, 2
        %s231 = ssub.s32 0, %s230
        %s232 = smul.u32 %s20, %s231
        %s233 = sadd.s32 %s21, %s232
        %s234 = smul.u32 8, %s233
        %p235 = scmp.lt.s32.totalorder %s20, 1
        %s236 = scalar_select %p235, %s20, 1
        %p237 = scmp.lt.s32.totalorder %s234, 7
        %s238 = scalar_select %p237, %s234, 7
        %s239 = smul.addr %s238, 4
        %s240 = smul.addr %s236, 32
        %s241 = sadd.s32 %s239, %s240
        %s242 = smul.addr %s241, 4
        %s243 = scalar_lea.vmem %s0, %s242
        %s244 = smul.u32 %s21, 2
        %s245 = ssub.s32 0, %s244
        %s246 = smul.u32 %s20, %s245
        %s247 = sadd.s32 %s21, %s246
        %s248 = smul.u32 8, %s247
        %s249 = smul.u32 %s21, 2
        %s250 = ssub.s32 0, %s249
        %s251 = smul.u32 %s20, %s250
        %s252 = sadd.s32 %s21, %s251
        %s253 = smul.u32 8, %s252
        %p254 = scmp.eq.s32.totalorder %s21, 0
        // Predicated region
        $region33: #{audio_lstm_forward.5} parent=27 // pred_check
          %p255 = pneg %p254
        $region34: #{audio_lstm_forward.5} parent=27 // pred_check_branch
          %257 = sbr.rel (%p255) target = $region36
        $region35: #{audio_lstm_forward.5} parent=27 // pred_region
          %258 = vst [vmem:[#allocation2] sm:$0xff] 0.0
          %259 = vst [vmem:[#allocation3] sm:$0xff] 0.0
        $region36: #{audio_lstm_forward.5} parent=27 // pred_fallthru
          _
        %v260 = vld [vmem:[%s195] sm:$0xff]
        %v261 = vld [vmem:[%s195 + $0x8] sm:$0xff]
        %v262 = vld [vmem:[%s195 + $0x10] sm:$0xff]
        %v263 = vld [vmem:[%s195 + $0x18] sm:$0xff]
        %v264 = vld [vmem:[%s195 + $0x20] sm:$0xff]
        %v265 = vld [vmem:[%s195 + $0x28] sm:$0xff]
        %v266 = vld [vmem:[%s195 + $0x30] sm:$0xff]
        %v267 = vld [vmem:[%s195 + $0x38] sm:$0xff]
        %v268 = vld [vmem:[%s195 + $0x40] sm:$0xff]
        %v269 = vld [vmem:[%s195 + $0x48] sm:$0xff]
        %v270 = vld [vmem:[%s195 + $0x50] sm:$0xff]
        %v271 = vld [vmem:[%s195 + $0x58] sm:$0xff]
        %v272 = vld [vmem:[%s195 + $0x60] sm:$0xff]
        %v273 = vld [vmem:[%s195 + $0x68] sm:$0xff]
        %v274 = vld [vmem:[%s195 + $0x70] sm:$0xff]
        %v275 = vld [vmem:[%s195 + $0x78] sm:$0xff]
        %v276 = vld [vmem:[%s195 + $0x80] sm:$0xff]
        %v277 = vld [vmem:[%s195 + $0x88] sm:$0xff]
        %v278 = vld [vmem:[%s195 + $0x90] sm:$0xff]
        %v279 = vld [vmem:[%s195 + $0x98] sm:$0xff]
        %v280 = vld [vmem:[%s195 + $0xa0] sm:$0xff]
        %v281 = vld [vmem:[%s195 + $0xa8] sm:$0xff]
        %v282 = vld [vmem:[%s195 + $0xb0] sm:$0xff]
        %v283 = vld [vmem:[%s195 + $0xb8] sm:$0xff]
        %v284 = vld [vmem:[%s195 + $0xc0] sm:$0xff]
        %v285 = vld [vmem:[%s195 + $0xc8] sm:$0xff]
        %v286 = vld [vmem:[%s195 + $0xd0] sm:$0xff]
        %v287 = vld [vmem:[%s195 + $0xd8] sm:$0xff]
        %v288 = vld [vmem:[%s195 + $0xe0] sm:$0xff]
        %v289 = vld [vmem:[%s195 + $0xe8] sm:$0xff]
        %v290 = vld [vmem:[%s195 + $0xf0] sm:$0xff]
        %v291 = vld [vmem:[%s195 + $0xf8] sm:$0xff]
        %p292 = scmp.eq.s32.totalorder %s20, 0
        // Predicated region
        $region37: #{audio_lstm_forward.5} parent=27 // pred_check
          %p293 = pneg %p292
        $region38: #{audio_lstm_forward.5} parent=27 // pred_check_branch
          %295 = sbr.rel (%p293) target = $region40
        $region39: #{audio_lstm_forward.5} parent=27 // pred_region
          %v296 = vld [vmem:[#allocation2] sm:$0xff]
          %v297 = vld [vmem:[#allocation3] sm:$0xff]
          %v298 = vld [vmem:[%s243] sm:$0xff]
          %v299 = vld [vmem:[%s243 + $0x8] sm:$0xff]
          %v300 = vunpack.c.l.bf16 %v298
          %v301 = vunpack.c.h.bf16 %v298
          %v302 = vunpack.c.l.bf16 %v299
          %v303 = vunpack.c.h.bf16 %v299
          %v304 = vpack.c.bf16 %v296, %v296
          %v337 = vunpack.c.l.b16 %v260
          %v338 = vunpack.c.h.b16 %v260
          %v339 = vunpack.c.l.b16 %v261
          %v340 = vunpack.c.h.b16 %v261
          %v341 = vunpack.c.l.b16 %v262
          %v342 = vunpack.c.h.b16 %v262
          %v343 = vunpack.c.l.b16 %v263
          %v344 = vunpack.c.h.b16 %v263
          %v345 = vunpack.c.l.b16 %v264
          %v346 = vunpack.c.h.b16 %v264
          %v347 = vunpack.c.l.b16 %v265
          %v348 = vunpack.c.h.b16 %v265
          %v349 = vunpack.c.l.b16 %v266
          %v350 = vunpack.c.h.b16 %v266
          %v351 = vunpack.c.l.b16 %v267
          %v352 = vunpack.c.h.b16 %v267
          %v353 = vunpack.c.l.b16 %v268
          %v354 = vunpack.c.h.b16 %v268
          %v355 = vunpack.c.l.b16 %v269
          %v356 = vunpack.c.h.b16 %v269
          %v357 = vunpack.c.l.b16 %v270
          %v358 = vunpack.c.h.b16 %v270
          %v359 = vunpack.c.l.b16 %v271
          %v360 = vunpack.c.h.b16 %v271
          %v361 = vunpack.c.l.b16 %v272
          %v362 = vunpack.c.h.b16 %v272
          %v363 = vunpack.c.l.b16 %v273
          %v364 = vunpack.c.h.b16 %v273
          %v365 = vunpack.c.l.b16 %v274
          %v366 = vunpack.c.h.b16 %v274
          %v367 = vunpack.c.l.b16 %v275
          %v368 = vunpack.c.h.b16 %v275
          %v369 = vunpack.c.l.b16 %v276
          %v370 = vunpack.c.h.b16 %v276
          %v371 = vunpack.c.l.b16 %v277
          %v372 = vunpack.c.h.b16 %v277
          %v373 = vunpack.c.l.b16 %v278
          %v374 = vunpack.c.h.b16 %v278
          %v375 = vunpack.c.l.b16 %v279
          %v376 = vunpack.c.h.b16 %v279
          %v377 = vunpack.c.l.b16 %v280
          %v378 = vunpack.c.h.b16 %v280
          %v379 = vunpack.c.l.b16 %v281
          %v380 = vunpack.c.h.b16 %v281
          %v381 = vunpack.c.l.b16 %v282
          %v382 = vunpack.c.h.b16 %v282
          %v383 = vunpack.c.l.b16 %v283
          %v384 = vunpack.c.h.b16 %v283
          %v385 = vunpack.c.l.b16 %v284
          %v386 = vunpack.c.h.b16 %v284
          %v387 = vunpack.c.l.b16 %v285
          %v388 = vunpack.c.h.b16 %v285
          %v389 = vunpack.c.l.b16 %v286
          %v390 = vunpack.c.h.b16 %v286
          %v391 = vunpack.c.l.b16 %v287
          %v392 = vunpack.c.h.b16 %v287
          %v393 = vunpack.c.l.b16 %v288
          %v394 = vunpack.c.h.b16 %v288
          %v395 = vunpack.c.l.b16 %v289
          %v396 = vunpack.c.h.b16 %v289
          %v397 = vunpack.c.l.b16 %v290
          %v398 = vunpack.c.h.b16 %v290
          %v399 = vunpack.c.l.b16 %v291
          %v400 = vunpack.c.h.b16 %v291
          %v401 = vpack.c.b16 %v341, %v337
          %v402 = vpack.c.b16 %v342, %v338
          %v403 = vpack.c.b16 %v343, %v339
          %v404 = vpack.c.b16 %v344, %v340
          %v405 = vpack.c.b16 %v349, %v345
          %v406 = vpack.c.b16 %v350, %v346
          %v407 = vpack.c.b16 %v351, %v347
          %v408 = vpack.c.b16 %v352, %v348
          %v409 = vpack.c.b16 %v357, %v353
          %v410 = vpack.c.b16 %v358, %v354
          %v411 = vpack.c.b16 %v359, %v355
          %v412 = vpack.c.b16 %v360, %v356
          %v413 = vpack.c.b16 %v365, %v361
          %v414 = vpack.c.b16 %v366, %v362
          %v415 = vpack.c.b16 %v367, %v363
          %v416 = vpack.c.b16 %v368, %v364
          %v417 = vpack.c.b16 %v373, %v369
          %v418 = vpack.c.b16 %v374, %v370
          %v419 = vpack.c.b16 %v375, %v371
          %v420 = vpack.c.b16 %v376, %v372
          %v421 = vpack.c.b16 %v381, %v377
          %v422 = vpack.c.b16 %v382, %v378
          %v423 = vpack.c.b16 %v383, %v379
          %v424 = vpack.c.b16 %v384, %v380
          %v425 = vpack.c.b16 %v389, %v385
          %v426 = vpack.c.b16 %v390, %v386
          %v427 = vpack.c.b16 %v391, %v387
          %v428 = vpack.c.b16 %v392, %v388
          %v429 = vpack.c.b16 %v397, %v393
          %v430 = vpack.c.b16 %v398, %v394
          %v431 = vpack.c.b16 %v399, %v395
          %v432 = vpack.c.b16 %v400, %v396
          %465 = vmatpush.bf16.msra.mxu0 %v429
          %466 = vmatpush.bf16.msra.mxu0 %v425
          %467 = vmatpush.bf16.msra.mxu0 %v421
          %468 = vmatpush.bf16.msra.mxu0 %v417
          %469 = vmatpush.bf16.msra.mxu0 %v413
          %470 = vmatpush.bf16.msra.mxu0 %v409
          %471 = vmatpush.bf16.msra.mxu0 %v405
          %472 = vmatpush.bf16.msra.mxu0 %v401
          %473 = vmatmul.bf16.gmra.mxu0 %v304
          %v474 = vpop.f32.mrf.mxu0
          %v475 = vadd.f32 0.0, %v474
          %v476 = vpop.f32.mrf.mxu0
          %477 = vdwg.mxu0
          %478 = vmatpush.bf16.msra.mxu0 %v430
          %479 = vmatpush.bf16.msra.mxu0 %v426
          %480 = vmatpush.bf16.msra.mxu0 %v422
          %481 = vmatpush.bf16.msra.mxu0 %v418
          %482 = vmatpush.bf16.msra.mxu0 %v414
          %483 = vmatpush.bf16.msra.mxu0 %v410
          %484 = vmatpush.bf16.msra.mxu0 %v406
          %485 = vmatpush.bf16.msra.mxu0 %v402
          %486 = vmatmul.bf16.gmra.mxu0 %v304
          %v487 = vpop.f32.mrf.mxu0
          %v488 = vadd.f32 0.0, %v487
          %v489 = vpop.f32.mrf.mxu0
          %490 = vdwg.mxu0
          %491 = vmatpush.bf16.msra.mxu0 %v431
          %492 = vmatpush.bf16.msra.mxu0 %v427
          %493 = vmatpush.bf16.msra.mxu0 %v423
          %494 = vmatpush.bf16.msra.mxu0 %v419
          %495 = vmatpush.bf16.msra.mxu0 %v415
          %496 = vmatpush.bf16.msra.mxu0 %v411
          %497 = vmatpush.bf16.msra.mxu0 %v407
          %498 = vmatpush.bf16.msra.mxu0 %v403
          %499 = vmatmul.bf16.gmra.mxu0 %v304
          %v500 = vpop.f32.mrf.mxu0
          %v501 = vadd.f32 0.0, %v500
          %v502 = vpop.f32.mrf.mxu0
          %503 = vdwg.mxu0
          %504 = vmatpush.bf16.msra.mxu0 %v432
          %505 = vmatpush.bf16.msra.mxu0 %v428
          %506 = vmatpush.bf16.msra.mxu0 %v424
          %507 = vmatpush.bf16.msra.mxu0 %v420
          %508 = vmatpush.bf16.msra.mxu0 %v416
          %509 = vmatpush.bf16.msra.mxu0 %v412
          %510 = vmatpush.bf16.msra.mxu0 %v408
          %511 = vmatpush.bf16.msra.mxu0 %v404
          %512 = vmatmul.bf16.gmra.mxu0 %v304
          %v513 = vpop.f32.mrf.mxu0
          %v514 = vadd.f32 0.0, %v513
          %v515 = vpop.f32.mrf.mxu0
          %516 = vdwg.mxu0
          %v517 = vadd.f32 %v300, %v475
          %v518 = vadd.f32 %v301, %v488
          %v519 = vadd.f32 %v302, %v501
          %v520 = vadd.f32 %v303, %v514
          %v521 = vmul.f32 %v517, 0.5
          %v522 = vtanh.pop %v521
          %v523 = vmul.f32 %v522, 0.5
          %v524 = vadd.f32 %v523, 0.5
          %v525 = vmul.f32 %v518, 0.5
          %v526 = vtanh.pop %v525
          %v527 = vmul.f32 %v526, 0.5
          %v528 = vadd.f32 %v527, 0.5
          %v529 = vtanh.pop %v519
          %v530 = vmul.f32 %v520, 0.5
          %v531 = vtanh.pop %v530
          %v532 = vmul.f32 %v531, 0.5
          %v533 = vadd.f32 %v532, 0.5
          %v534 = vmul.f32 %v528, %v297
          %v535 = vmul.f32 %v524, %v529
          %v536 = vadd.f32 %v534, %v535
          %v537 = vtanh.pop %v536
          %v538 = vmul.f32 %v533, %v537
          %v539 = vpack.c.bf16 %v538, %v538
          %540 = vst [vmem:[%s229] sm:$0xf] %v539
          %s541 = scalar_lea.vmem %s243, 16
          %v542 = vld [vmem:[%s541] sm:$0xff]
          %v543 = vld [vmem:[%s541 + $0x8] sm:$0xff]
          %v544 = vunpack.c.l.bf16 %v542
          %v545 = vunpack.c.h.bf16 %v542
          %v546 = vunpack.c.l.bf16 %v543
          %v547 = vunpack.c.h.bf16 %v543
          %548 = vmatpush.bf16.msra.mxu0 %v429
          %549 = vmatpush.bf16.msra.mxu0 %v425
          %550 = vmatpush.bf16.msra.mxu0 %v421
          %551 = vmatpush.bf16.msra.mxu0 %v417
          %552 = vmatpush.bf16.msra.mxu0 %v413
          %553 = vmatpush.bf16.msra.mxu0 %v409
          %554 = vmatpush.bf16.msra.mxu0 %v405
          %555 = vmatpush.bf16.msra.mxu0 %v401
          %556 = vmatmul.bf16.gmra.mxu0 %v539
          %v557 = vpop.f32.mrf.mxu0
          %v558 = vadd.f32 0.0, %v557
          %v559 = vpop.f32.mrf.mxu0
          %560 = vdwg.mxu0
          %561 = vmatpush.bf16.msra.mxu0 %v430
          %562 = vmatpush.bf16.msra.mxu0 %v426
          %563 = vmatpush.bf16.msra.mxu0 %v422
          %564 = vmatpush.bf16.msra.mxu0 %v418
          %565 = vmatpush.bf16.msra.mxu0 %v414
          %566 = vmatpush.bf16.msra.mxu0 %v410
          %567 = vmatpush.bf16.msra.mxu0 %v406
          %568 = vmatpush.bf16.msra.mxu0 %v402
          %569 = vmatmul.bf16.gmra.mxu0 %v539
          %v570 = vpop.f32.mrf.mxu0
          %v571 = vadd.f32 0.0, %v570
          %v572 = vpop.f32.mrf.mxu0
          %573 = vdwg.mxu0
          %574 = vmatpush.bf16.msra.mxu0 %v431
          %575 = vmatpush.bf16.msra.mxu0 %v427
          %576 = vmatpush.bf16.msra.mxu0 %v423
          %577 = vmatpush.bf16.msra.mxu0 %v419
          %578 = vmatpush.bf16.msra.mxu0 %v415
          %579 = vmatpush.bf16.msra.mxu0 %v411
          %580 = vmatpush.bf16.msra.mxu0 %v407
          %581 = vmatpush.bf16.msra.mxu0 %v403
          %582 = vmatmul.bf16.gmra.mxu0 %v539
          %v583 = vpop.f32.mrf.mxu0
          %v584 = vadd.f32 0.0, %v583
          %v585 = vpop.f32.mrf.mxu0
          %586 = vdwg.mxu0
          %587 = vmatpush.bf16.msra.mxu0 %v432
          %588 = vmatpush.bf16.msra.mxu0 %v428
          %589 = vmatpush.bf16.msra.mxu0 %v424
          %590 = vmatpush.bf16.msra.mxu0 %v420
          %591 = vmatpush.bf16.msra.mxu0 %v416
          %592 = vmatpush.bf16.msra.mxu0 %v412
          %593 = vmatpush.bf16.msra.mxu0 %v408
          %594 = vmatpush.bf16.msra.mxu0 %v404
          %595 = vmatmul.bf16.gmra.mxu0 %v539
          %v596 = vpop.f32.mrf.mxu0
          %v597 = vadd.f32 0.0, %v596
          %v598 = vpop.f32.mrf.mxu0
          %599 = vdwg.mxu0
          %v600 = vadd.f32 %v544, %v558
          %v601 = vadd.f32 %v545, %v571
          %v602 = vadd.f32 %v546, %v584
          %v603 = vadd.f32 %v547, %v597
          %v604 = vmul.f32 %v600, 0.5
          %v605 = vtanh.pop %v604
          %v606 = vmul.f32 %v605, 0.5
          %v607 = vadd.f32 %v606, 0.5
          %v608 = vmul.f32 %v601, 0.5
          %v609 = vtanh.pop %v608
          %v610 = vmul.f32 %v609, 0.5
          %v611 = vadd.f32 %v610, 0.5
          %v612 = vtanh.pop %v602
          %v613 = vmul.f32 %v603, 0.5
          %v614 = vtanh.pop %v613
          %v615 = vmul.f32 %v614, 0.5
          %v616 = vadd.f32 %v615, 0.5
          %v617 = vmul.f32 %v611, %v536
          %v618 = vmul.f32 %v607, %v612
          %v619 = vadd.f32 %v617, %v618
          %v620 = vtanh.pop %v619
          %v621 = vmul.f32 %v616, %v620
          %v622 = vpack.c.bf16 %v621, %v621
          %s623 = scalar_lea.vmem %s229, 4 [#allocation6]
          %624 = vst [vmem:[%s623] sm:$0xf] %v622
          %s625 = scalar_lea.vmem %s243, 32
          %v626 = vld [vmem:[%s625] sm:$0xff]
          %v627 = vld [vmem:[%s625 + $0x8] sm:$0xff]
          %v628 = vunpack.c.l.bf16 %v626
          %v629 = vunpack.c.h.bf16 %v626
          %v630 = vunpack.c.l.bf16 %v627
          %v631 = vunpack.c.h.bf16 %v627
          %632 = vmatpush.bf16.msra.mxu0 %v429
          %633 = vmatpush.bf16.msra.mxu0 %v425
          %634 = vmatpush.bf16.msra.mxu0 %v421
          %635 = vmatpush.bf16.msra.mxu0 %v417
          %636 = vmatpush.bf16.msra.mxu0 %v413
          %637 = vmatpush.bf16.msra.mxu0 %v409
          %638 = vmatpush.bf16.msra.mxu0 %v405
          %639 = vmatpush.bf16.msra.mxu0 %v401
          %640 = vmatmul.bf16.gmra.mxu0 %v622
          %v641 = vpop.f32.mrf.mxu0
          %v642 = vadd.f32 0.0, %v641
          %v643 = vpop.f32.mrf.mxu0
          %644 = vdwg.mxu0
          %645 = vmatpush.bf16.msra.mxu0 %v430
          %646 = vmatpush.bf16.msra.mxu0 %v426
          %647 = vmatpush.bf16.msra.mxu0 %v422
          %648 = vmatpush.bf16.msra.mxu0 %v418
          %649 = vmatpush.bf16.msra.mxu0 %v414
          %650 = vmatpush.bf16.msra.mxu0 %v410
          %651 = vmatpush.bf16.msra.mxu0 %v406
          %652 = vmatpush.bf16.msra.mxu0 %v402
          %653 = vmatmul.bf16.gmra.mxu0 %v622
          %v654 = vpop.f32.mrf.mxu0
          %v655 = vadd.f32 0.0, %v654
          %v656 = vpop.f32.mrf.mxu0
          %657 = vdwg.mxu0
          %658 = vmatpush.bf16.msra.mxu0 %v431
          %659 = vmatpush.bf16.msra.mxu0 %v427
          %660 = vmatpush.bf16.msra.mxu0 %v423
          %661 = vmatpush.bf16.msra.mxu0 %v419
          %662 = vmatpush.bf16.msra.mxu0 %v415
          %663 = vmatpush.bf16.msra.mxu0 %v411
          %664 = vmatpush.bf16.msra.mxu0 %v407
          %665 = vmatpush.bf16.msra.mxu0 %v403
          %666 = vmatmul.bf16.gmra.mxu0 %v622
          %v667 = vpop.f32.mrf.mxu0
          %v668 = vadd.f32 0.0, %v667
          %v669 = vpop.f32.mrf.mxu0
          %670 = vdwg.mxu0
          %671 = vmatpush.bf16.msra.mxu0 %v432
          %672 = vmatpush.bf16.msra.mxu0 %v428
          %673 = vmatpush.bf16.msra.mxu0 %v424
          %674 = vmatpush.bf16.msra.mxu0 %v420
          %675 = vmatpush.bf16.msra.mxu0 %v416
          %676 = vmatpush.bf16.msra.mxu0 %v412
          %677 = vmatpush.bf16.msra.mxu0 %v408
          %678 = vmatpush.bf16.msra.mxu0 %v404
          %679 = vmatmul.bf16.gmra.mxu0 %v622
          %v680 = vpop.f32.mrf.mxu0
          %v681 = vadd.f32 0.0, %v680
          %v682 = vpop.f32.mrf.mxu0
          %683 = vdwg.mxu0
          %v684 = vadd.f32 %v628, %v642
          %v685 = vadd.f32 %v629, %v655
          %v686 = vadd.f32 %v630, %v668
          %v687 = vadd.f32 %v631, %v681
          %v688 = vmul.f32 %v684, 0.5
          %v689 = vtanh.pop %v688
          %v690 = vmul.f32 %v689, 0.5
          %v691 = vadd.f32 %v690, 0.5
          %v692 = vmul.f32 %v685, 0.5
          %v693 = vtanh.pop %v692
          %v694 = vmul.f32 %v693, 0.5
          %v695 = vadd.f32 %v694, 0.5
          %v696 = vtanh.pop %v686
          %v697 = vmul.f32 %v687, 0.5
          %v698 = vtanh.pop %v697
          %v699 = vmul.f32 %v698, 0.5
          %v700 = vadd.f32 %v699, 0.5
          %v701 = vmul.f32 %v695, %v619
          %v702 = vmul.f32 %v691, %v696
          %v703 = vadd.f32 %v701, %v702
          %v704 = vtanh.pop %v703
          %v705 = vmul.f32 %v700, %v704
          %v706 = vpack.c.bf16 %v705, %v705
          %s707 = scalar_lea.vmem %s229, 8 [#allocation6]
          %708 = vst [vmem:[%s707] sm:$0xf] %v706
          %s709 = scalar_lea.vmem %s243, 48
          %v710 = vld [vmem:[%s709] sm:$0xff]
          %v711 = vld [vmem:[%s709 + $0x8] sm:$0xff]
          %v712 = vunpack.c.l.bf16 %v710
          %v713 = vunpack.c.h.bf16 %v710
          %v714 = vunpack.c.l.bf16 %v711
          %v715 = vunpack.c.h.bf16 %v711
          %716 = vmatpush.bf16.msra.mxu0 %v429
          %717 = vmatpush.bf16.msra.mxu0 %v425
          %718 = vmatpush.bf16.msra.mxu0 %v421
          %719 = vmatpush.bf16.msra.mxu0 %v417
          %720 = vmatpush.bf16.msra.mxu0 %v413
          %721 = vmatpush.bf16.msra.mxu0 %v409
          %722 = vmatpush.bf16.msra.mxu0 %v405
          %723 = vmatpush.bf16.msra.mxu0 %v401
          %724 = vmatmul.bf16.gmra.mxu0 %v706
          %v725 = vpop.f32.mrf.mxu0
          %v726 = vadd.f32 0.0, %v725
          %v727 = vpop.f32.mrf.mxu0
          %728 = vdwg.mxu0
          %729 = vmatpush.bf16.msra.mxu0 %v430
          %730 = vmatpush.bf16.msra.mxu0 %v426
          %731 = vmatpush.bf16.msra.mxu0 %v422
          %732 = vmatpush.bf16.msra.mxu0 %v418
          %733 = vmatpush.bf16.msra.mxu0 %v414
          %734 = vmatpush.bf16.msra.mxu0 %v410
          %735 = vmatpush.bf16.msra.mxu0 %v406
          %736 = vmatpush.bf16.msra.mxu0 %v402
          %737 = vmatmul.bf16.gmra.mxu0 %v706
          %v738 = vpop.f32.mrf.mxu0
          %v739 = vadd.f32 0.0, %v738
          %v740 = vpop.f32.mrf.mxu0
          %741 = vdwg.mxu0
          %742 = vmatpush.bf16.msra.mxu0 %v431
          %743 = vmatpush.bf16.msra.mxu0 %v427
          %744 = vmatpush.bf16.msra.mxu0 %v423
          %745 = vmatpush.bf16.msra.mxu0 %v419
          %746 = vmatpush.bf16.msra.mxu0 %v415
          %747 = vmatpush.bf16.msra.mxu0 %v411
          %748 = vmatpush.bf16.msra.mxu0 %v407
          %749 = vmatpush.bf16.msra.mxu0 %v403
          %750 = vmatmul.bf16.gmra.mxu0 %v706
          %v751 = vpop.f32.mrf.mxu0
          %v752 = vadd.f32 0.0, %v751
          %v753 = vpop.f32.mrf.mxu0
          %754 = vdwg.mxu0
          %755 = vmatpush.bf16.msra.mxu0 %v432
          %756 = vmatpush.bf16.msra.mxu0 %v428
          %757 = vmatpush.bf16.msra.mxu0 %v424
          %758 = vmatpush.bf16.msra.mxu0 %v420
          %759 = vmatpush.bf16.msra.mxu0 %v416
          %760 = vmatpush.bf16.msra.mxu0 %v412
          %761 = vmatpush.bf16.msra.mxu0 %v408
          %762 = vmatpush.bf16.msra.mxu0 %v404
          %763 = vmatmul.bf16.gmra.mxu0 %v706
          %v764 = vpop.f32.mrf.mxu0
          %v765 = vadd.f32 0.0, %v764
          %v766 = vpop.f32.mrf.mxu0
          %767 = vdwg.mxu0
          %v768 = vadd.f32 %v712, %v726
          %v769 = vadd.f32 %v713, %v739
          %v770 = vadd.f32 %v714, %v752
          %v771 = vadd.f32 %v715, %v765
          %v772 = vmul.f32 %v768, 0.5
          %v773 = vtanh.pop %v772
          %v774 = vmul.f32 %v773, 0.5
          %v775 = vadd.f32 %v774, 0.5
          %v776 = vmul.f32 %v769, 0.5
          %v777 = vtanh.pop %v776
          %v778 = vmul.f32 %v777, 0.5
          %v779 = vadd.f32 %v778, 0.5
          %v780 = vtanh.pop %v770
          %v781 = vmul.f32 %v771, 0.5
          %v782 = vtanh.pop %v781
          %v783 = vmul.f32 %v782, 0.5
          %v784 = vadd.f32 %v783, 0.5
          %v785 = vmul.f32 %v779, %v703
          %v786 = vmul.f32 %v775, %v780
          %v787 = vadd.f32 %v785, %v786
          %v788 = vtanh.pop %v787
          %v789 = vmul.f32 %v784, %v788
          %v790 = vpack.c.bf16 %v789, %v789
          %s791 = scalar_lea.vmem %s229, 12 [#allocation6]
          %792 = vst [vmem:[%s791] sm:$0xf] %v790
          %s793 = scalar_lea.vmem %s243, 64
          %v794 = vld [vmem:[%s793] sm:$0xff]
          %v795 = vld [vmem:[%s793 + $0x8] sm:$0xff]
          %v796 = vunpack.c.l.bf16 %v794
          %v797 = vunpack.c.h.bf16 %v794
          %v798 = vunpack.c.l.bf16 %v795
          %v799 = vunpack.c.h.bf16 %v795
          %800 = vmatpush.bf16.msra.mxu0 %v429
          %801 = vmatpush.bf16.msra.mxu0 %v425
          %802 = vmatpush.bf16.msra.mxu0 %v421
          %803 = vmatpush.bf16.msra.mxu0 %v417
          %804 = vmatpush.bf16.msra.mxu0 %v413
          %805 = vmatpush.bf16.msra.mxu0 %v409
          %806 = vmatpush.bf16.msra.mxu0 %v405
          %807 = vmatpush.bf16.msra.mxu0 %v401
          %808 = vmatmul.bf16.gmra.mxu0 %v790
          %v809 = vpop.f32.mrf.mxu0
          %v810 = vadd.f32 0.0, %v809
          %v811 = vpop.f32.mrf.mxu0
          %812 = vdwg.mxu0
          %813 = vmatpush.bf16.msra.mxu0 %v430
          %814 = vmatpush.bf16.msra.mxu0 %v426
          %815 = vmatpush.bf16.msra.mxu0 %v422
          %816 = vmatpush.bf16.msra.mxu0 %v418
          %817 = vmatpush.bf16.msra.mxu0 %v414
          %818 = vmatpush.bf16.msra.mxu0 %v410
          %819 = vmatpush.bf16.msra.mxu0 %v406
          %820 = vmatpush.bf16.msra.mxu0 %v402
          %821 = vmatmul.bf16.gmra.mxu0 %v790
          %v822 = vpop.f32.mrf.mxu0
          %v823 = vadd.f32 0.0, %v822
          %v824 = vpop.f32.mrf.mxu0
          %825 = vdwg.mxu0
          %826 = vmatpush.bf16.msra.mxu0 %v431
          %827 = vmatpush.bf16.msra.mxu0 %v427
          %828 = vmatpush.bf16.msra.mxu0 %v423
          %829 = vmatpush.bf16.msra.mxu0 %v419
          %830 = vmatpush.bf16.msra.mxu0 %v415
          %831 = vmatpush.bf16.msra.mxu0 %v411
          %832 = vmatpush.bf16.msra.mxu0 %v407
          %833 = vmatpush.bf16.msra.mxu0 %v403
          %834 = vmatmul.bf16.gmra.mxu0 %v790
          %v835 = vpop.f32.mrf.mxu0
          %v836 = vadd.f32 0.0, %v835
          %v837 = vpop.f32.mrf.mxu0
          %838 = vdwg.mxu0
          %839 = vmatpush.bf16.msra.mxu0 %v432
          %840 = vmatpush.bf16.msra.mxu0 %v428
          %841 = vmatpush.bf16.msra.mxu0 %v424
          %842 = vmatpush.bf16.msra.mxu0 %v420
          %843 = vmatpush.bf16.msra.mxu0 %v416
          %844 = vmatpush.bf16.msra.mxu0 %v412
          %845 = vmatpush.bf16.msra.mxu0 %v408
          %846 = vmatpush.bf16.msra.mxu0 %v404
          %847 = vmatmul.bf16.gmra.mxu0 %v790
          %v848 = vpop.f32.mrf.mxu0
          %v849 = vadd.f32 0.0, %v848
          %v850 = vpop.f32.mrf.mxu0
          %851 = vdwg.mxu0
          %v852 = vadd.f32 %v796, %v810
          %v853 = vadd.f32 %v797, %v823
          %v854 = vadd.f32 %v798, %v836
          %v855 = vadd.f32 %v799, %v849
          %v856 = vmul.f32 %v852, 0.5
          %v857 = vtanh.pop %v856
          %v858 = vmul.f32 %v857, 0.5
          %v859 = vadd.f32 %v858, 0.5
          %v860 = vmul.f32 %v853, 0.5
          %v861 = vtanh.pop %v860
          %v862 = vmul.f32 %v861, 0.5
          %v863 = vadd.f32 %v862, 0.5
          %v864 = vtanh.pop %v854
          %v865 = vmul.f32 %v855, 0.5
          %v866 = vtanh.pop %v865
          %v867 = vmul.f32 %v866, 0.5
          %v868 = vadd.f32 %v867, 0.5
          %v869 = vmul.f32 %v863, %v787
          %v870 = vmul.f32 %v859, %v864
          %v871 = vadd.f32 %v869, %v870
          %v872 = vtanh.pop %v871
          %v873 = vmul.f32 %v868, %v872
          %v874 = vpack.c.bf16 %v873, %v873
          %s875 = scalar_lea.vmem %s229, 16 [#allocation6]
          %876 = vst [vmem:[%s875] sm:$0xf] %v874
          %s877 = scalar_lea.vmem %s243, 80
          %v878 = vld [vmem:[%s877] sm:$0xff]
          %v879 = vld [vmem:[%s877 + $0x8] sm:$0xff]
          %v880 = vunpack.c.l.bf16 %v878
          %v881 = vunpack.c.h.bf16 %v878
          %v882 = vunpack.c.l.bf16 %v879
          %v883 = vunpack.c.h.bf16 %v879
          %884 = vmatpush.bf16.msra.mxu0 %v429
          %885 = vmatpush.bf16.msra.mxu0 %v425
          %886 = vmatpush.bf16.msra.mxu0 %v421
          %887 = vmatpush.bf16.msra.mxu0 %v417
          %888 = vmatpush.bf16.msra.mxu0 %v413
          %889 = vmatpush.bf16.msra.mxu0 %v409
          %890 = vmatpush.bf16.msra.mxu0 %v405
          %891 = vmatpush.bf16.msra.mxu0 %v401
          %892 = vmatmul.bf16.gmra.mxu0 %v874
          %v893 = vpop.f32.mrf.mxu0
          %v894 = vadd.f32 0.0, %v893
          %v895 = vpop.f32.mrf.mxu0
          %896 = vdwg.mxu0
          %897 = vmatpush.bf16.msra.mxu0 %v430
          %898 = vmatpush.bf16.msra.mxu0 %v426
          %899 = vmatpush.bf16.msra.mxu0 %v422
          %900 = vmatpush.bf16.msra.mxu0 %v418
          %901 = vmatpush.bf16.msra.mxu0 %v414
          %902 = vmatpush.bf16.msra.mxu0 %v410
          %903 = vmatpush.bf16.msra.mxu0 %v406
          %904 = vmatpush.bf16.msra.mxu0 %v402
          %905 = vmatmul.bf16.gmra.mxu0 %v874
          %v906 = vpop.f32.mrf.mxu0
          %v907 = vadd.f32 0.0, %v906
          %v908 = vpop.f32.mrf.mxu0
          %909 = vdwg.mxu0
          %910 = vmatpush.bf16.msra.mxu0 %v431
          %911 = vmatpush.bf16.msra.mxu0 %v427
          %912 = vmatpush.bf16.msra.mxu0 %v423
          %913 = vmatpush.bf16.msra.mxu0 %v419
          %914 = vmatpush.bf16.msra.mxu0 %v415
          %915 = vmatpush.bf16.msra.mxu0 %v411
          %916 = vmatpush.bf16.msra.mxu0 %v407
          %917 = vmatpush.bf16.msra.mxu0 %v403
          %918 = vmatmul.bf16.gmra.mxu0 %v874
          %v919 = vpop.f32.mrf.mxu0
          %v920 = vadd.f32 0.0, %v919
          %v921 = vpop.f32.mrf.mxu0
          %922 = vdwg.mxu0
          %923 = vmatpush.bf16.msra.mxu0 %v432
          %924 = vmatpush.bf16.msra.mxu0 %v428
          %925 = vmatpush.bf16.msra.mxu0 %v424
          %926 = vmatpush.bf16.msra.mxu0 %v420
          %927 = vmatpush.bf16.msra.mxu0 %v416
          %928 = vmatpush.bf16.msra.mxu0 %v412
          %929 = vmatpush.bf16.msra.mxu0 %v408
          %930 = vmatpush.bf16.msra.mxu0 %v404
          %931 = vmatmul.bf16.gmra.mxu0 %v874
          %v932 = vpop.f32.mrf.mxu0
          %v933 = vadd.f32 0.0, %v932
          %v934 = vpop.f32.mrf.mxu0
          %935 = vdwg.mxu0
          %v936 = vadd.f32 %v880, %v894
          %v937 = vadd.f32 %v881, %v907
          %v938 = vadd.f32 %v882, %v920
          %v939 = vadd.f32 %v883, %v933
          %v940 = vmul.f32 %v936, 0.5
          %v941 = vtanh.pop %v940
          %v942 = vmul.f32 %v941, 0.5
          %v943 = vadd.f32 %v942, 0.5
          %v944 = vmul.f32 %v937, 0.5
          %v945 = vtanh.pop %v944
          %v946 = vmul.f32 %v945, 0.5
          %v947 = vadd.f32 %v946, 0.5
          %v948 = vtanh.pop %v938
          %v949 = vmul.f32 %v939, 0.5
          %v950 = vtanh.pop %v949
          %v951 = vmul.f32 %v950, 0.5
          %v952 = vadd.f32 %v951, 0.5
          %v953 = vmul.f32 %v947, %v871
          %v954 = vmul.f32 %v943, %v948
          %v955 = vadd.f32 %v953, %v954
          %v956 = vtanh.pop %v955
          %v957 = vmul.f32 %v952, %v956
          %v958 = vpack.c.bf16 %v957, %v957
          %s959 = scalar_lea.vmem %s229, 20 [#allocation6]
          %960 = vst [vmem:[%s959] sm:$0xf] %v958
          %s961 = scalar_lea.vmem %s243, 96
          %v962 = vld [vmem:[%s961] sm:$0xff]
          %v963 = vld [vmem:[%s961 + $0x8] sm:$0xff]
          %v964 = vunpack.c.l.bf16 %v962
          %v965 = vunpack.c.h.bf16 %v962
          %v966 = vunpack.c.l.bf16 %v963
          %v967 = vunpack.c.h.bf16 %v963
          %968 = vmatpush.bf16.msra.mxu0 %v429
          %969 = vmatpush.bf16.msra.mxu0 %v425
          %970 = vmatpush.bf16.msra.mxu0 %v421
          %971 = vmatpush.bf16.msra.mxu0 %v417
          %972 = vmatpush.bf16.msra.mxu0 %v413
          %973 = vmatpush.bf16.msra.mxu0 %v409
          %974 = vmatpush.bf16.msra.mxu0 %v405
          %975 = vmatpush.bf16.msra.mxu0 %v401
          %976 = vmatmul.bf16.gmra.mxu0 %v958
          %v977 = vpop.f32.mrf.mxu0
          %v978 = vadd.f32 0.0, %v977
          %v979 = vpop.f32.mrf.mxu0
          %980 = vdwg.mxu0
          %981 = vmatpush.bf16.msra.mxu0 %v430
          %982 = vmatpush.bf16.msra.mxu0 %v426
          %983 = vmatpush.bf16.msra.mxu0 %v422
          %984 = vmatpush.bf16.msra.mxu0 %v418
          %985 = vmatpush.bf16.msra.mxu0 %v414
          %986 = vmatpush.bf16.msra.mxu0 %v410
          %987 = vmatpush.bf16.msra.mxu0 %v406
          %988 = vmatpush.bf16.msra.mxu0 %v402
          %989 = vmatmul.bf16.gmra.mxu0 %v958
          %v990 = vpop.f32.mrf.mxu0
          %v991 = vadd.f32 0.0, %v990
          %v992 = vpop.f32.mrf.mxu0
          %993 = vdwg.mxu0
          %994 = vmatpush.bf16.msra.mxu0 %v431
          %995 = vmatpush.bf16.msra.mxu0 %v427
          %996 = vmatpush.bf16.msra.mxu0 %v423
          %997 = vmatpush.bf16.msra.mxu0 %v419
          %998 = vmatpush.bf16.msra.mxu0 %v415
          %999 = vmatpush.bf16.msra.mxu0 %v411
          %1000 = vmatpush.bf16.msra.mxu0 %v407
          %1001 = vmatpush.bf16.msra.mxu0 %v403
          %1002 = vmatmul.bf16.gmra.mxu0 %v958
          %v1003 = vpop.f32.mrf.mxu0
          %v1004 = vadd.f32 0.0, %v1003
          %v1005 = vpop.f32.mrf.mxu0
          %1006 = vdwg.mxu0
          %1007 = vmatpush.bf16.msra.mxu0 %v432
          %1008 = vmatpush.bf16.msra.mxu0 %v428
          %1009 = vmatpush.bf16.msra.mxu0 %v424
          %1010 = vmatpush.bf16.msra.mxu0 %v420
          %1011 = vmatpush.bf16.msra.mxu0 %v416
          %1012 = vmatpush.bf16.msra.mxu0 %v412
          %1013 = vmatpush.bf16.msra.mxu0 %v408
          %1014 = vmatpush.bf16.msra.mxu0 %v404
          %1015 = vmatmul.bf16.gmra.mxu0 %v958
          %v1016 = vpop.f32.mrf.mxu0
          %v1017 = vadd.f32 0.0, %v1016
          %v1018 = vpop.f32.mrf.mxu0
          %1019 = vdwg.mxu0
          %v1020 = vadd.f32 %v964, %v978
          %v1021 = vadd.f32 %v965, %v991
          %v1022 = vadd.f32 %v966, %v1004
          %v1023 = vadd.f32 %v967, %v1017
          %v1024 = vmul.f32 %v1020, 0.5
          %v1025 = vtanh.pop %v1024
          %v1026 = vmul.f32 %v1025, 0.5
          %v1027 = vadd.f32 %v1026, 0.5
          %v1028 = vmul.f32 %v1021, 0.5
          %v1029 = vtanh.pop %v1028
          %v1030 = vmul.f32 %v1029, 0.5
          %v1031 = vadd.f32 %v1030, 0.5
          %v1032 = vtanh.pop %v1022
          %v1033 = vmul.f32 %v1023, 0.5
          %v1034 = vtanh.pop %v1033
          %v1035 = vmul.f32 %v1034, 0.5
          %v1036 = vadd.f32 %v1035, 0.5
          %v1037 = vmul.f32 %v1031, %v955
          %v1038 = vmul.f32 %v1027, %v1032
          %v1039 = vadd.f32 %v1037, %v1038
          %v1040 = vtanh.pop %v1039
          %v1041 = vmul.f32 %v1036, %v1040
          %v1042 = vpack.c.bf16 %v1041, %v1041
          %s1043 = scalar_lea.vmem %s229, 24 [#allocation6]
          %1044 = vst [vmem:[%s1043] sm:$0xf] %v1042
          %s1045 = scalar_lea.vmem %s243, 112
          %v1046 = vld [vmem:[%s1045] sm:$0xff]
          %v1047 = vld [vmem:[%s1045 + $0x8] sm:$0xff]
          %v1048 = vunpack.c.l.bf16 %v1046
          %v1049 = vunpack.c.h.bf16 %v1046
          %v1050 = vunpack.c.l.bf16 %v1047
          %v1051 = vunpack.c.h.bf16 %v1047
          %1052 = vmatpush.bf16.msra.mxu0 %v429
          %1053 = vmatpush.bf16.msra.mxu0 %v425
          %1054 = vmatpush.bf16.msra.mxu0 %v421
          %1055 = vmatpush.bf16.msra.mxu0 %v417
          %1056 = vmatpush.bf16.msra.mxu0 %v413
          %1057 = vmatpush.bf16.msra.mxu0 %v409
          %1058 = vmatpush.bf16.msra.mxu0 %v405
          %1059 = vmatpush.bf16.msra.mxu0 %v401
          %1060 = vmatmul.bf16.gmra.mxu0 %v1042
          %v1061 = vpop.f32.mrf.mxu0
          %v1062 = vadd.f32 0.0, %v1061
          %v1063 = vpop.f32.mrf.mxu0
          %1064 = vdwg.mxu0
          %1065 = vmatpush.bf16.msra.mxu0 %v430
          %1066 = vmatpush.bf16.msra.mxu0 %v426
          %1067 = vmatpush.bf16.msra.mxu0 %v422
          %1068 = vmatpush.bf16.msra.mxu0 %v418
          %1069 = vmatpush.bf16.msra.mxu0 %v414
          %1070 = vmatpush.bf16.msra.mxu0 %v410
          %1071 = vmatpush.bf16.msra.mxu0 %v406
          %1072 = vmatpush.bf16.msra.mxu0 %v402
          %1073 = vmatmul.bf16.gmra.mxu0 %v1042
          %v1074 = vpop.f32.mrf.mxu0
          %v1075 = vadd.f32 0.0, %v1074
          %v1076 = vpop.f32.mrf.mxu0
          %1077 = vdwg.mxu0
          %1078 = vmatpush.bf16.msra.mxu0 %v431
          %1079 = vmatpush.bf16.msra.mxu0 %v427
          %1080 = vmatpush.bf16.msra.mxu0 %v423
          %1081 = vmatpush.bf16.msra.mxu0 %v419
          %1082 = vmatpush.bf16.msra.mxu0 %v415
          %1083 = vmatpush.bf16.msra.mxu0 %v411
          %1084 = vmatpush.bf16.msra.mxu0 %v407
          %1085 = vmatpush.bf16.msra.mxu0 %v403
          %1086 = vmatmul.bf16.gmra.mxu0 %v1042
          %v1087 = vpop.f32.mrf.mxu0
          %v1088 = vadd.f32 0.0, %v1087
          %v1089 = vpop.f32.mrf.mxu0
          %1090 = vdwg.mxu0
          %1091 = vmatpush.bf16.msra.mxu0 %v432
          %1092 = vmatpush.bf16.msra.mxu0 %v428
          %1093 = vmatpush.bf16.msra.mxu0 %v424
          %1094 = vmatpush.bf16.msra.mxu0 %v420
          %1095 = vmatpush.bf16.msra.mxu0 %v416
          %1096 = vmatpush.bf16.msra.mxu0 %v412
          %1097 = vmatpush.bf16.msra.mxu0 %v408
          %1098 = vmatpush.bf16.msra.mxu0 %v404
          %1099 = vmatmul.bf16.gmra.mxu0 %v1042
          %v1100 = vpop.f32.mrf.mxu0
          %v1101 = vadd.f32 0.0, %v1100
          %v1102 = vpop.f32.mrf.mxu0
          %1103 = vdwg.mxu0
          %v1104 = vadd.f32 %v1048, %v1062
          %v1105 = vadd.f32 %v1049, %v1075
          %v1106 = vadd.f32 %v1050, %v1088
          %v1107 = vadd.f32 %v1051, %v1101
          %v1108 = vmul.f32 %v1104, 0.5
          %v1109 = vtanh.pop %v1108
          %v1110 = vmul.f32 %v1109, 0.5
          %v1111 = vadd.f32 %v1110, 0.5
          %v1112 = vmul.f32 %v1105, 0.5
          %v1113 = vtanh.pop %v1112
          %v1114 = vmul.f32 %v1113, 0.5
          %v1115 = vadd.f32 %v1114, 0.5
          %v1116 = vtanh.pop %v1106
          %v1117 = vmul.f32 %v1107, 0.5
          %v1118 = vtanh.pop %v1117
          %v1119 = vmul.f32 %v1118, 0.5
          %v1120 = vadd.f32 %v1119, 0.5
          %v1121 = vmul.f32 %v1115, %v1039
          %v1122 = vmul.f32 %v1111, %v1116
          %v1123 = vadd.f32 %v1121, %v1122
          %v1124 = vtanh.pop %v1123
          %v1125 = vmul.f32 %v1120, %v1124
          %v1126 = vpack.c.bf16 %v1125, %v1125
          %s1127 = scalar_lea.vmem %s229, 28 [#allocation6]
          %1128 = vst [vmem:[%s1127] sm:$0xf] %v1126
          %1129 = vst [vmem:[#allocation2] sm:$0xff] %v1125
          %1130 = vst [vmem:[#allocation3] sm:$0xff] %v1123
        $region40: #{audio_lstm_forward.5} parent=27 // pred_fallthru
          _
        %p1131 = scmp.eq.s32.totalorder %s20, 1
        // Predicated region
        $region41: #{audio_lstm_forward.5} parent=27 // pred_check
          %p1132 = pneg %p1131
        $region42: #{audio_lstm_forward.5} parent=27 // pred_check_branch
          %1134 = sbr.rel (%p1132) target = $region44
        $region43: #{audio_lstm_forward.5} parent=27 // pred_region
          %v1135 = vld [vmem:[#allocation2] sm:$0xff]
          %v1136 = vld [vmem:[#allocation3] sm:$0xff]
          %s1137 = scalar_lea.vmem %s243, 112
          %v1138 = vld [vmem:[%s1137] sm:$0xff]
          %v1139 = vld [vmem:[%s1137 + $0x8] sm:$0xff]
          %v1140 = vunpack.c.l.bf16 %v1138
          %v1141 = vunpack.c.h.bf16 %v1138
          %v1142 = vunpack.c.l.bf16 %v1139
          %v1143 = vunpack.c.h.bf16 %v1139
          %v1144 = vpack.c.bf16 %v1135, %v1135
          %v1177 = vunpack.c.l.b16 %v260
          %v1178 = vunpack.c.h.b16 %v260
          %v1179 = vunpack.c.l.b16 %v261
          %v1180 = vunpack.c.h.b16 %v261
          %v1181 = vunpack.c.l.b16 %v262
          %v1182 = vunpack.c.h.b16 %v262
          %v1183 = vunpack.c.l.b16 %v263
          %v1184 = vunpack.c.h.b16 %v263
          %v1185 = vunpack.c.l.b16 %v264
          %v1186 = vunpack.c.h.b16 %v264
          %v1187 = vunpack.c.l.b16 %v265
          %v1188 = vunpack.c.h.b16 %v265
          %v1189 = vunpack.c.l.b16 %v266
          %v1190 = vunpack.c.h.b16 %v266
          %v1191 = vunpack.c.l.b16 %v267
          %v1192 = vunpack.c.h.b16 %v267
          %v1193 = vunpack.c.l.b16 %v268
          %v1194 = vunpack.c.h.b16 %v268
          %v1195 = vunpack.c.l.b16 %v269
          %v1196 = vunpack.c.h.b16 %v269
          %v1197 = vunpack.c.l.b16 %v270
          %v1198 = vunpack.c.h.b16 %v270
          %v1199 = vunpack.c.l.b16 %v271
          %v1200 = vunpack.c.h.b16 %v271
          %v1201 = vunpack.c.l.b16 %v272
          %v1202 = vunpack.c.h.b16 %v272
          %v1203 = vunpack.c.l.b16 %v273
          %v1204 = vunpack.c.h.b16 %v273
          %v1205 = vunpack.c.l.b16 %v274
          %v1206 = vunpack.c.h.b16 %v274
          %v1207 = vunpack.c.l.b16 %v275
          %v1208 = vunpack.c.h.b16 %v275
          %v1209 = vunpack.c.l.b16 %v276
          %v1210 = vunpack.c.h.b16 %v276
          %v1211 = vunpack.c.l.b16 %v277
          %v1212 = vunpack.c.h.b16 %v277
          %v1213 = vunpack.c.l.b16 %v278
          %v1214 = vunpack.c.h.b16 %v278
          %v1215 = vunpack.c.l.b16 %v279
          %v1216 = vunpack.c.h.b16 %v279
          %v1217 = vunpack.c.l.b16 %v280
          %v1218 = vunpack.c.h.b16 %v280
          %v1219 = vunpack.c.l.b16 %v281
          %v1220 = vunpack.c.h.b16 %v281
          %v1221 = vunpack.c.l.b16 %v282
          %v1222 = vunpack.c.h.b16 %v282
          %v1223 = vunpack.c.l.b16 %v283
          %v1224 = vunpack.c.h.b16 %v283
          %v1225 = vunpack.c.l.b16 %v284
          %v1226 = vunpack.c.h.b16 %v284
          %v1227 = vunpack.c.l.b16 %v285
          %v1228 = vunpack.c.h.b16 %v285
          %v1229 = vunpack.c.l.b16 %v286
          %v1230 = vunpack.c.h.b16 %v286
          %v1231 = vunpack.c.l.b16 %v287
          %v1232 = vunpack.c.h.b16 %v287
          %v1233 = vunpack.c.l.b16 %v288
          %v1234 = vunpack.c.h.b16 %v288
          %v1235 = vunpack.c.l.b16 %v289
          %v1236 = vunpack.c.h.b16 %v289
          %v1237 = vunpack.c.l.b16 %v290
          %v1238 = vunpack.c.h.b16 %v290
          %v1239 = vunpack.c.l.b16 %v291
          %v1240 = vunpack.c.h.b16 %v291
          %v1241 = vpack.c.b16 %v1181, %v1177
          %v1242 = vpack.c.b16 %v1182, %v1178
          %v1243 = vpack.c.b16 %v1183, %v1179
          %v1244 = vpack.c.b16 %v1184, %v1180
          %v1245 = vpack.c.b16 %v1189, %v1185
          %v1246 = vpack.c.b16 %v1190, %v1186
          %v1247 = vpack.c.b16 %v1191, %v1187
          %v1248 = vpack.c.b16 %v1192, %v1188
          %v1249 = vpack.c.b16 %v1197, %v1193
          %v1250 = vpack.c.b16 %v1198, %v1194
          %v1251 = vpack.c.b16 %v1199, %v1195
          %v1252 = vpack.c.b16 %v1200, %v1196
          %v1253 = vpack.c.b16 %v1205, %v1201
          %v1254 = vpack.c.b16 %v1206, %v1202
          %v1255 = vpack.c.b16 %v1207, %v1203
          %v1256 = vpack.c.b16 %v1208, %v1204
          %v1257 = vpack.c.b16 %v1213, %v1209
          %v1258 = vpack.c.b16 %v1214, %v1210
          %v1259 = vpack.c.b16 %v1215, %v1211
          %v1260 = vpack.c.b16 %v1216, %v1212
          %v1261 = vpack.c.b16 %v1221, %v1217
          %v1262 = vpack.c.b16 %v1222, %v1218
          %v1263 = vpack.c.b16 %v1223, %v1219
          %v1264 = vpack.c.b16 %v1224, %v1220
          %v1265 = vpack.c.b16 %v1229, %v1225
          %v1266 = vpack.c.b16 %v1230, %v1226
          %v1267 = vpack.c.b16 %v1231, %v1227
          %v1268 = vpack.c.b16 %v1232, %v1228
          %v1269 = vpack.c.b16 %v1237, %v1233
          %v1270 = vpack.c.b16 %v1238, %v1234
          %v1271 = vpack.c.b16 %v1239, %v1235
          %v1272 = vpack.c.b16 %v1240, %v1236
          %1305 = vmatpush.bf16.msra.mxu0 %v1269
          %1306 = vmatpush.bf16.msra.mxu0 %v1265
          %1307 = vmatpush.bf16.msra.mxu0 %v1261
          %1308 = vmatpush.bf16.msra.mxu0 %v1257
          %1309 = vmatpush.bf16.msra.mxu0 %v1253
          %1310 = vmatpush.bf16.msra.mxu0 %v1249
          %1311 = vmatpush.bf16.msra.mxu0 %v1245
          %1312 = vmatpush.bf16.msra.mxu0 %v1241
          %1313 = vmatmul.bf16.gmra.mxu0 %v1144
          %v1314 = vpop.f32.mrf.mxu0
          %v1315 = vadd.f32 0.0, %v1314
          %v1316 = vpop.f32.mrf.mxu0
          %1317 = vdwg.mxu0
          %1318 = vmatpush.bf16.msra.mxu0 %v1270
          %1319 = vmatpush.bf16.msra.mxu0 %v1266
          %1320 = vmatpush.bf16.msra.mxu0 %v1262
          %1321 = vmatpush.bf16.msra.mxu0 %v1258
          %1322 = vmatpush.bf16.msra.mxu0 %v1254
          %1323 = vmatpush.bf16.msra.mxu0 %v1250
          %1324 = vmatpush.bf16.msra.mxu0 %v1246
          %1325 = vmatpush.bf16.msra.mxu0 %v1242
          %1326 = vmatmul.bf16.gmra.mxu0 %v1144
          %v1327 = vpop.f32.mrf.mxu0
          %v1328 = vadd.f32 0.0, %v1327
          %v1329 = vpop.f32.mrf.mxu0
          %1330 = vdwg.mxu0
          %1331 = vmatpush.bf16.msra.mxu0 %v1271
          %1332 = vmatpush.bf16.msra.mxu0 %v1267
          %1333 = vmatpush.bf16.msra.mxu0 %v1263
          %1334 = vmatpush.bf16.msra.mxu0 %v1259
          %1335 = vmatpush.bf16.msra.mxu0 %v1255
          %1336 = vmatpush.bf16.msra.mxu0 %v1251
          %1337 = vmatpush.bf16.msra.mxu0 %v1247
          %1338 = vmatpush.bf16.msra.mxu0 %v1243
          %1339 = vmatmul.bf16.gmra.mxu0 %v1144
          %v1340 = vpop.f32.mrf.mxu0
          %v1341 = vadd.f32 0.0, %v1340
          %v1342 = vpop.f32.mrf.mxu0
          %1343 = vdwg.mxu0
          %1344 = vmatpush.bf16.msra.mxu0 %v1272
          %1345 = vmatpush.bf16.msra.mxu0 %v1268
          %1346 = vmatpush.bf16.msra.mxu0 %v1264
          %1347 = vmatpush.bf16.msra.mxu0 %v1260
          %1348 = vmatpush.bf16.msra.mxu0 %v1256
          %1349 = vmatpush.bf16.msra.mxu0 %v1252
          %1350 = vmatpush.bf16.msra.mxu0 %v1248
          %1351 = vmatpush.bf16.msra.mxu0 %v1244
          %1352 = vmatmul.bf16.gmra.mxu0 %v1144
          %v1353 = vpop.f32.mrf.mxu0
          %v1354 = vadd.f32 0.0, %v1353
          %v1355 = vpop.f32.mrf.mxu0
          %1356 = vdwg.mxu0
          %v1357 = vadd.f32 %v1140, %v1315
          %v1358 = vadd.f32 %v1141, %v1328
          %v1359 = vadd.f32 %v1142, %v1341
          %v1360 = vadd.f32 %v1143, %v1354
          %v1361 = vmul.f32 %v1357, 0.5
          %v1362 = vtanh.pop %v1361
          %v1363 = vmul.f32 %v1362, 0.5
          %v1364 = vadd.f32 %v1363, 0.5
          %v1365 = vmul.f32 %v1358, 0.5
          %v1366 = vtanh.pop %v1365
          %v1367 = vmul.f32 %v1366, 0.5
          %v1368 = vadd.f32 %v1367, 0.5
          %v1369 = vtanh.pop %v1359
          %v1370 = vmul.f32 %v1360, 0.5
          %v1371 = vtanh.pop %v1370
          %v1372 = vmul.f32 %v1371, 0.5
          %v1373 = vadd.f32 %v1372, 0.5
          %v1374 = vmul.f32 %v1368, %v1136
          %v1375 = vmul.f32 %v1364, %v1369
          %v1376 = vadd.f32 %v1374, %v1375
          %v1377 = vtanh.pop %v1376
          %v1378 = vmul.f32 %v1373, %v1377
          %v1379 = vpack.c.bf16 %v1378, %v1378
          %s1380 = scalar_lea.vmem %s229, 28 [#allocation6]
          %1381 = vst [vmem:[%s1380] sm:$0xf] %v1379
          %s1382 = scalar_lea.vmem %s243, 96
          %v1383 = vld [vmem:[%s1382] sm:$0xff]
          %v1384 = vld [vmem:[%s1382 + $0x8] sm:$0xff]
          %v1385 = vunpack.c.l.bf16 %v1383
          %v1386 = vunpack.c.h.bf16 %v1383
          %v1387 = vunpack.c.l.bf16 %v1384
          %v1388 = vunpack.c.h.bf16 %v1384
          %1389 = vmatpush.bf16.msra.mxu0 %v1269
          %1390 = vmatpush.bf16.msra.mxu0 %v1265
          %1391 = vmatpush.bf16.msra.mxu0 %v1261
          %1392 = vmatpush.bf16.msra.mxu0 %v1257
          %1393 = vmatpush.bf16.msra.mxu0 %v1253
          %1394 = vmatpush.bf16.msra.mxu0 %v1249
          %1395 = vmatpush.bf16.msra.mxu0 %v1245
          %1396 = vmatpush.bf16.msra.mxu0 %v1241
          %1397 = vmatmul.bf16.gmra.mxu0 %v1379
          %v1398 = vpop.f32.mrf.mxu0
          %v1399 = vadd.f32 0.0, %v1398
          %v1400 = vpop.f32.mrf.mxu0
          %1401 = vdwg.mxu0
          %1402 = vmatpush.bf16.msra.mxu0 %v1270
          %1403 = vmatpush.bf16.msra.mxu0 %v1266
          %1404 = vmatpush.bf16.msra.mxu0 %v1262
          %1405 = vmatpush.bf16.msra.mxu0 %v1258
          %1406 = vmatpush.bf16.msra.mxu0 %v1254
          %1407 = vmatpush.bf16.msra.mxu0 %v1250
          %1408 = vmatpush.bf16.msra.mxu0 %v1246
          %1409 = vmatpush.bf16.msra.mxu0 %v1242
          %1410 = vmatmul.bf16.gmra.mxu0 %v1379
          %v1411 = vpop.f32.mrf.mxu0
          %v1412 = vadd.f32 0.0, %v1411
          %v1413 = vpop.f32.mrf.mxu0
          %1414 = vdwg.mxu0
          %1415 = vmatpush.bf16.msra.mxu0 %v1271
          %1416 = vmatpush.bf16.msra.mxu0 %v1267
          %1417 = vmatpush.bf16.msra.mxu0 %v1263
          %1418 = vmatpush.bf16.msra.mxu0 %v1259
          %1419 = vmatpush.bf16.msra.mxu0 %v1255
          %1420 = vmatpush.bf16.msra.mxu0 %v1251
          %1421 = vmatpush.bf16.msra.mxu0 %v1247
          %1422 = vmatpush.bf16.msra.mxu0 %v1243
          %1423 = vmatmul.bf16.gmra.mxu0 %v1379
          %v1424 = vpop.f32.mrf.mxu0
          %v1425 = vadd.f32 0.0, %v1424
          %v1426 = vpop.f32.mrf.mxu0
          %1427 = vdwg.mxu0
          %1428 = vmatpush.bf16.msra.mxu0 %v1272
          %1429 = vmatpush.bf16.msra.mxu0 %v1268
          %1430 = vmatpush.bf16.msra.mxu0 %v1264
          %1431 = vmatpush.bf16.msra.mxu0 %v1260
          %1432 = vmatpush.bf16.msra.mxu0 %v1256
          %1433 = vmatpush.bf16.msra.mxu0 %v1252
          %1434 = vmatpush.bf16.msra.mxu0 %v1248
          %1435 = vmatpush.bf16.msra.mxu0 %v1244
          %1436 = vmatmul.bf16.gmra.mxu0 %v1379
          %v1437 = vpop.f32.mrf.mxu0
          %v1438 = vadd.f32 0.0, %v1437
          %v1439 = vpop.f32.mrf.mxu0
          %1440 = vdwg.mxu0
          %v1441 = vadd.f32 %v1385, %v1399
          %v1442 = vadd.f32 %v1386, %v1412
          %v1443 = vadd.f32 %v1387, %v1425
          %v1444 = vadd.f32 %v1388, %v1438
          %v1445 = vmul.f32 %v1441, 0.5
          %v1446 = vtanh.pop %v1445
          %v1447 = vmul.f32 %v1446, 0.5
          %v1448 = vadd.f32 %v1447, 0.5
          %v1449 = vmul.f32 %v1442, 0.5
          %v1450 = vtanh.pop %v1449
          %v1451 = vmul.f32 %v1450, 0.5
          %v1452 = vadd.f32 %v1451, 0.5
          %v1453 = vtanh.pop %v1443
          %v1454 = vmul.f32 %v1444, 0.5
          %v1455 = vtanh.pop %v1454
          %v1456 = vmul.f32 %v1455, 0.5
          %v1457 = vadd.f32 %v1456, 0.5
          %v1458 = vmul.f32 %v1452, %v1376
          %v1459 = vmul.f32 %v1448, %v1453
          %v1460 = vadd.f32 %v1458, %v1459
          %v1461 = vtanh.pop %v1460
          %v1462 = vmul.f32 %v1457, %v1461
          %v1463 = vpack.c.bf16 %v1462, %v1462
          %s1464 = scalar_lea.vmem %s229, 24 [#allocation6]
          %1465 = vst [vmem:[%s1464] sm:$0xf] %v1463
          %s1466 = scalar_lea.vmem %s243, 80
          %v1467 = vld [vmem:[%s1466] sm:$0xff]
          %v1468 = vld [vmem:[%s1466 + $0x8] sm:$0xff]
          %v1469 = vunpack.c.l.bf16 %v1467
          %v1470 = vunpack.c.h.bf16 %v1467
          %v1471 = vunpack.c.l.bf16 %v1468
          %v1472 = vunpack.c.h.bf16 %v1468
          %1473 = vmatpush.bf16.msra.mxu0 %v1269
          %1474 = vmatpush.bf16.msra.mxu0 %v1265
          %1475 = vmatpush.bf16.msra.mxu0 %v1261
          %1476 = vmatpush.bf16.msra.mxu0 %v1257
          %1477 = vmatpush.bf16.msra.mxu0 %v1253
          %1478 = vmatpush.bf16.msra.mxu0 %v1249
          %1479 = vmatpush.bf16.msra.mxu0 %v1245
          %1480 = vmatpush.bf16.msra.mxu0 %v1241
          %1481 = vmatmul.bf16.gmra.mxu0 %v1463
          %v1482 = vpop.f32.mrf.mxu0
          %v1483 = vadd.f32 0.0, %v1482
          %v1484 = vpop.f32.mrf.mxu0
          %1485 = vdwg.mxu0
          %1486 = vmatpush.bf16.msra.mxu0 %v1270
          %1487 = vmatpush.bf16.msra.mxu0 %v1266
          %1488 = vmatpush.bf16.msra.mxu0 %v1262
          %1489 = vmatpush.bf16.msra.mxu0 %v1258
          %1490 = vmatpush.bf16.msra.mxu0 %v1254
          %1491 = vmatpush.bf16.msra.mxu0 %v1250
          %1492 = vmatpush.bf16.msra.mxu0 %v1246
          %1493 = vmatpush.bf16.msra.mxu0 %v1242
          %1494 = vmatmul.bf16.gmra.mxu0 %v1463
          %v1495 = vpop.f32.mrf.mxu0
          %v1496 = vadd.f32 0.0, %v1495
          %v1497 = vpop.f32.mrf.mxu0
          %1498 = vdwg.mxu0
          %1499 = vmatpush.bf16.msra.mxu0 %v1271
          %1500 = vmatpush.bf16.msra.mxu0 %v1267
          %1501 = vmatpush.bf16.msra.mxu0 %v1263
          %1502 = vmatpush.bf16.msra.mxu0 %v1259
          %1503 = vmatpush.bf16.msra.mxu0 %v1255
          %1504 = vmatpush.bf16.msra.mxu0 %v1251
          %1505 = vmatpush.bf16.msra.mxu0 %v1247
          %1506 = vmatpush.bf16.msra.mxu0 %v1243
          %1507 = vmatmul.bf16.gmra.mxu0 %v1463
          %v1508 = vpop.f32.mrf.mxu0
          %v1509 = vadd.f32 0.0, %v1508
          %v1510 = vpop.f32.mrf.mxu0
          %1511 = vdwg.mxu0
          %1512 = vmatpush.bf16.msra.mxu0 %v1272
          %1513 = vmatpush.bf16.msra.mxu0 %v1268
          %1514 = vmatpush.bf16.msra.mxu0 %v1264
          %1515 = vmatpush.bf16.msra.mxu0 %v1260
          %1516 = vmatpush.bf16.msra.mxu0 %v1256
          %1517 = vmatpush.bf16.msra.mxu0 %v1252
          %1518 = vmatpush.bf16.msra.mxu0 %v1248
          %1519 = vmatpush.bf16.msra.mxu0 %v1244
          %1520 = vmatmul.bf16.gmra.mxu0 %v1463
          %v1521 = vpop.f32.mrf.mxu0
          %v1522 = vadd.f32 0.0, %v1521
          %v1523 = vpop.f32.mrf.mxu0
          %1524 = vdwg.mxu0
          %v1525 = vadd.f32 %v1469, %v1483
          %v1526 = vadd.f32 %v1470, %v1496
          %v1527 = vadd.f32 %v1471, %v1509
          %v1528 = vadd.f32 %v1472, %v1522
          %v1529 = vmul.f32 %v1525, 0.5
          %v1530 = vtanh.pop %v1529
          %v1531 = vmul.f32 %v1530, 0.5
          %v1532 = vadd.f32 %v1531, 0.5
          %v1533 = vmul.f32 %v1526, 0.5
          %v1534 = vtanh.pop %v1533
          %v1535 = vmul.f32 %v1534, 0.5
          %v1536 = vadd.f32 %v1535, 0.5
          %v1537 = vtanh.pop %v1527
          %v1538 = vmul.f32 %v1528, 0.5
          %v1539 = vtanh.pop %v1538
          %v1540 = vmul.f32 %v1539, 0.5
          %v1541 = vadd.f32 %v1540, 0.5
          %v1542 = vmul.f32 %v1536, %v1460
          %v1543 = vmul.f32 %v1532, %v1537
          %v1544 = vadd.f32 %v1542, %v1543
          %v1545 = vtanh.pop %v1544
          %v1546 = vmul.f32 %v1541, %v1545
          %v1547 = vpack.c.bf16 %v1546, %v1546
          %s1548 = scalar_lea.vmem %s229, 20 [#allocation6]
          %1549 = vst [vmem:[%s1548] sm:$0xf] %v1547
          %s1550 = scalar_lea.vmem %s243, 64
          %v1551 = vld [vmem:[%s1550] sm:$0xff]
          %v1552 = vld [vmem:[%s1550 + $0x8] sm:$0xff]
          %v1553 = vunpack.c.l.bf16 %v1551
          %v1554 = vunpack.c.h.bf16 %v1551
          %v1555 = vunpack.c.l.bf16 %v1552
          %v1556 = vunpack.c.h.bf16 %v1552
          %1557 = vmatpush.bf16.msra.mxu0 %v1269
          %1558 = vmatpush.bf16.msra.mxu0 %v1265
          %1559 = vmatpush.bf16.msra.mxu0 %v1261
          %1560 = vmatpush.bf16.msra.mxu0 %v1257
          %1561 = vmatpush.bf16.msra.mxu0 %v1253
          %1562 = vmatpush.bf16.msra.mxu0 %v1249
          %1563 = vmatpush.bf16.msra.mxu0 %v1245
          %1564 = vmatpush.bf16.msra.mxu0 %v1241
          %1565 = vmatmul.bf16.gmra.mxu0 %v1547
          %v1566 = vpop.f32.mrf.mxu0
          %v1567 = vadd.f32 0.0, %v1566
          %v1568 = vpop.f32.mrf.mxu0
          %1569 = vdwg.mxu0
          %1570 = vmatpush.bf16.msra.mxu0 %v1270
          %1571 = vmatpush.bf16.msra.mxu0 %v1266
          %1572 = vmatpush.bf16.msra.mxu0 %v1262
          %1573 = vmatpush.bf16.msra.mxu0 %v1258
          %1574 = vmatpush.bf16.msra.mxu0 %v1254
          %1575 = vmatpush.bf16.msra.mxu0 %v1250
          %1576 = vmatpush.bf16.msra.mxu0 %v1246
          %1577 = vmatpush.bf16.msra.mxu0 %v1242
          %1578 = vmatmul.bf16.gmra.mxu0 %v1547
          %v1579 = vpop.f32.mrf.mxu0
          %v1580 = vadd.f32 0.0, %v1579
          %v1581 = vpop.f32.mrf.mxu0
          %1582 = vdwg.mxu0
          %1583 = vmatpush.bf16.msra.mxu0 %v1271
          %1584 = vmatpush.bf16.msra.mxu0 %v1267
          %1585 = vmatpush.bf16.msra.mxu0 %v1263
          %1586 = vmatpush.bf16.msra.mxu0 %v1259
          %1587 = vmatpush.bf16.msra.mxu0 %v1255
          %1588 = vmatpush.bf16.msra.mxu0 %v1251
          %1589 = vmatpush.bf16.msra.mxu0 %v1247
          %1590 = vmatpush.bf16.msra.mxu0 %v1243
          %1591 = vmatmul.bf16.gmra.mxu0 %v1547
          %v1592 = vpop.f32.mrf.mxu0
          %v1593 = vadd.f32 0.0, %v1592
          %v1594 = vpop.f32.mrf.mxu0
          %1595 = vdwg.mxu0
          %1596 = vmatpush.bf16.msra.mxu0 %v1272
          %1597 = vmatpush.bf16.msra.mxu0 %v1268
          %1598 = vmatpush.bf16.msra.mxu0 %v1264
          %1599 = vmatpush.bf16.msra.mxu0 %v1260
          %1600 = vmatpush.bf16.msra.mxu0 %v1256
          %1601 = vmatpush.bf16.msra.mxu0 %v1252
          %1602 = vmatpush.bf16.msra.mxu0 %v1248
          %1603 = vmatpush.bf16.msra.mxu0 %v1244
          %1604 = vmatmul.bf16.gmra.mxu0 %v1547
          %v1605 = vpop.f32.mrf.mxu0
          %v1606 = vadd.f32 0.0, %v1605
          %v1607 = vpop.f32.mrf.mxu0
          %1608 = vdwg.mxu0
          %v1609 = vadd.f32 %v1553, %v1567
          %v1610 = vadd.f32 %v1554, %v1580
          %v1611 = vadd.f32 %v1555, %v1593
          %v1612 = vadd.f32 %v1556, %v1606
          %v1613 = vmul.f32 %v1609, 0.5
          %v1614 = vtanh.pop %v1613
          %v1615 = vmul.f32 %v1614, 0.5
          %v1616 = vadd.f32 %v1615, 0.5
          %v1617 = vmul.f32 %v1610, 0.5
          %v1618 = vtanh.pop %v1617
          %v1619 = vmul.f32 %v1618, 0.5
          %v1620 = vadd.f32 %v1619, 0.5
          %v1621 = vtanh.pop %v1611
          %v1622 = vmul.f32 %v1612, 0.5
          %v1623 = vtanh.pop %v1622
          %v1624 = vmul.f32 %v1623, 0.5
          %v1625 = vadd.f32 %v1624, 0.5
          %v1626 = vmul.f32 %v1620, %v1544
          %v1627 = vmul.f32 %v1616, %v1621
          %v1628 = vadd.f32 %v1626, %v1627
          %v1629 = vtanh.pop %v1628
          %v1630 = vmul.f32 %v1625, %v1629
          %v1631 = vpack.c.bf16 %v1630, %v1630
          %s1632 = scalar_lea.vmem %s229, 16 [#allocation6]
          %1633 = vst [vmem:[%s1632] sm:$0xf] %v1631
          %s1634 = scalar_lea.vmem %s243, 48
          %v1635 = vld [vmem:[%s1634] sm:$0xff]
          %v1636 = vld [vmem:[%s1634 + $0x8] sm:$0xff]
          %v1637 = vunpack.c.l.bf16 %v1635
          %v1638 = vunpack.c.h.bf16 %v1635
          %v1639 = vunpack.c.l.bf16 %v1636
          %v1640 = vunpack.c.h.bf16 %v1636
          %1641 = vmatpush.bf16.msra.mxu0 %v1269
          %1642 = vmatpush.bf16.msra.mxu0 %v1265
          %1643 = vmatpush.bf16.msra.mxu0 %v1261
          %1644 = vmatpush.bf16.msra.mxu0 %v1257
          %1645 = vmatpush.bf16.msra.mxu0 %v1253
          %1646 = vmatpush.bf16.msra.mxu0 %v1249
          %1647 = vmatpush.bf16.msra.mxu0 %v1245
          %1648 = vmatpush.bf16.msra.mxu0 %v1241
          %1649 = vmatmul.bf16.gmra.mxu0 %v1631
          %v1650 = vpop.f32.mrf.mxu0
          %v1651 = vadd.f32 0.0, %v1650
          %v1652 = vpop.f32.mrf.mxu0
          %1653 = vdwg.mxu0
          %1654 = vmatpush.bf16.msra.mxu0 %v1270
          %1655 = vmatpush.bf16.msra.mxu0 %v1266
          %1656 = vmatpush.bf16.msra.mxu0 %v1262
          %1657 = vmatpush.bf16.msra.mxu0 %v1258
          %1658 = vmatpush.bf16.msra.mxu0 %v1254
          %1659 = vmatpush.bf16.msra.mxu0 %v1250
          %1660 = vmatpush.bf16.msra.mxu0 %v1246
          %1661 = vmatpush.bf16.msra.mxu0 %v1242
          %1662 = vmatmul.bf16.gmra.mxu0 %v1631
          %v1663 = vpop.f32.mrf.mxu0
          %v1664 = vadd.f32 0.0, %v1663
          %v1665 = vpop.f32.mrf.mxu0
          %1666 = vdwg.mxu0
          %1667 = vmatpush.bf16.msra.mxu0 %v1271
          %1668 = vmatpush.bf16.msra.mxu0 %v1267
          %1669 = vmatpush.bf16.msra.mxu0 %v1263
          %1670 = vmatpush.bf16.msra.mxu0 %v1259
          %1671 = vmatpush.bf16.msra.mxu0 %v1255
          %1672 = vmatpush.bf16.msra.mxu0 %v1251
          %1673 = vmatpush.bf16.msra.mxu0 %v1247
          %1674 = vmatpush.bf16.msra.mxu0 %v1243
          %1675 = vmatmul.bf16.gmra.mxu0 %v1631
          %v1676 = vpop.f32.mrf.mxu0
          %v1677 = vadd.f32 0.0, %v1676
          %v1678 = vpop.f32.mrf.mxu0
          %1679 = vdwg.mxu0
          %1680 = vmatpush.bf16.msra.mxu0 %v1272
          %1681 = vmatpush.bf16.msra.mxu0 %v1268
          %1682 = vmatpush.bf16.msra.mxu0 %v1264
          %1683 = vmatpush.bf16.msra.mxu0 %v1260
          %1684 = vmatpush.bf16.msra.mxu0 %v1256
          %1685 = vmatpush.bf16.msra.mxu0 %v1252
          %1686 = vmatpush.bf16.msra.mxu0 %v1248
          %1687 = vmatpush.bf16.msra.mxu0 %v1244
          %1688 = vmatmul.bf16.gmra.mxu0 %v1631
          %v1689 = vpop.f32.mrf.mxu0
          %v1690 = vadd.f32 0.0, %v1689
          %v1691 = vpop.f32.mrf.mxu0
          %1692 = vdwg.mxu0
          %v1693 = vadd.f32 %v1637, %v1651
          %v1694 = vadd.f32 %v1638, %v1664
          %v1695 = vadd.f32 %v1639, %v1677
          %v1696 = vadd.f32 %v1640, %v1690
          %v1697 = vmul.f32 %v1693, 0.5
          %v1698 = vtanh.pop %v1697
          %v1699 = vmul.f32 %v1698, 0.5
          %v1700 = vadd.f32 %v1699, 0.5
          %v1701 = vmul.f32 %v1694, 0.5
          %v1702 = vtanh.pop %v1701
          %v1703 = vmul.f32 %v1702, 0.5
          %v1704 = vadd.f32 %v1703, 0.5
          %v1705 = vtanh.pop %v1695
          %v1706 = vmul.f32 %v1696, 0.5
          %v1707 = vtanh.pop %v1706
          %v1708 = vmul.f32 %v1707, 0.5
          %v1709 = vadd.f32 %v1708, 0.5
          %v1710 = vmul.f32 %v1704, %v1628
          %v1711 = vmul.f32 %v1700, %v1705
          %v1712 = vadd.f32 %v1710, %v1711
          %v1713 = vtanh.pop %v1712
          %v1714 = vmul.f32 %v1709, %v1713
          %v1715 = vpack.c.bf16 %v1714, %v1714
          %s1716 = scalar_lea.vmem %s229, 12 [#allocation6]
          %1717 = vst [vmem:[%s1716] sm:$0xf] %v1715
          %s1718 = scalar_lea.vmem %s243, 32
          %v1719 = vld [vmem:[%s1718] sm:$0xff]
          %v1720 = vld [vmem:[%s1718 + $0x8] sm:$0xff]
          %v1721 = vunpack.c.l.bf16 %v1719
          %v1722 = vunpack.c.h.bf16 %v1719
          %v1723 = vunpack.c.l.bf16 %v1720
          %v1724 = vunpack.c.h.bf16 %v1720
          %1725 = vmatpush.bf16.msra.mxu0 %v1269
          %1726 = vmatpush.bf16.msra.mxu0 %v1265
          %1727 = vmatpush.bf16.msra.mxu0 %v1261
          %1728 = vmatpush.bf16.msra.mxu0 %v1257
          %1729 = vmatpush.bf16.msra.mxu0 %v1253
          %1730 = vmatpush.bf16.msra.mxu0 %v1249
          %1731 = vmatpush.bf16.msra.mxu0 %v1245
          %1732 = vmatpush.bf16.msra.mxu0 %v1241
          %1733 = vmatmul.bf16.gmra.mxu0 %v1715
          %v1734 = vpop.f32.mrf.mxu0
          %v1735 = vadd.f32 0.0, %v1734
          %v1736 = vpop.f32.mrf.mxu0
          %1737 = vdwg.mxu0
          %1738 = vmatpush.bf16.msra.mxu0 %v1270
          %1739 = vmatpush.bf16.msra.mxu0 %v1266
          %1740 = vmatpush.bf16.msra.mxu0 %v1262
          %1741 = vmatpush.bf16.msra.mxu0 %v1258
          %1742 = vmatpush.bf16.msra.mxu0 %v1254
          %1743 = vmatpush.bf16.msra.mxu0 %v1250
          %1744 = vmatpush.bf16.msra.mxu0 %v1246
          %1745 = vmatpush.bf16.msra.mxu0 %v1242
          %1746 = vmatmul.bf16.gmra.mxu0 %v1715
          %v1747 = vpop.f32.mrf.mxu0
          %v1748 = vadd.f32 0.0, %v1747
          %v1749 = vpop.f32.mrf.mxu0
          %1750 = vdwg.mxu0
          %1751 = vmatpush.bf16.msra.mxu0 %v1271
          %1752 = vmatpush.bf16.msra.mxu0 %v1267
          %1753 = vmatpush.bf16.msra.mxu0 %v1263
          %1754 = vmatpush.bf16.msra.mxu0 %v1259
          %1755 = vmatpush.bf16.msra.mxu0 %v1255
          %1756 = vmatpush.bf16.msra.mxu0 %v1251
          %1757 = vmatpush.bf16.msra.mxu0 %v1247
          %1758 = vmatpush.bf16.msra.mxu0 %v1243
          %1759 = vmatmul.bf16.gmra.mxu0 %v1715
          %v1760 = vpop.f32.mrf.mxu0
          %v1761 = vadd.f32 0.0, %v1760
          %v1762 = vpop.f32.mrf.mxu0
          %1763 = vdwg.mxu0
          %1764 = vmatpush.bf16.msra.mxu0 %v1272
          %1765 = vmatpush.bf16.msra.mxu0 %v1268
          %1766 = vmatpush.bf16.msra.mxu0 %v1264
          %1767 = vmatpush.bf16.msra.mxu0 %v1260
          %1768 = vmatpush.bf16.msra.mxu0 %v1256
          %1769 = vmatpush.bf16.msra.mxu0 %v1252
          %1770 = vmatpush.bf16.msra.mxu0 %v1248
          %1771 = vmatpush.bf16.msra.mxu0 %v1244
          %1772 = vmatmul.bf16.gmra.mxu0 %v1715
          %v1773 = vpop.f32.mrf.mxu0
          %v1774 = vadd.f32 0.0, %v1773
          %v1775 = vpop.f32.mrf.mxu0
          %1776 = vdwg.mxu0
          %v1777 = vadd.f32 %v1721, %v1735
          %v1778 = vadd.f32 %v1722, %v1748
          %v1779 = vadd.f32 %v1723, %v1761
          %v1780 = vadd.f32 %v1724, %v1774
          %v1781 = vmul.f32 %v1777, 0.5
          %v1782 = vtanh.pop %v1781
          %v1783 = vmul.f32 %v1782, 0.5
          %v1784 = vadd.f32 %v1783, 0.5
          %v1785 = vmul.f32 %v1778, 0.5
          %v1786 = vtanh.pop %v1785
          %v1787 = vmul.f32 %v1786, 0.5
          %v1788 = vadd.f32 %v1787, 0.5
          %v1789 = vtanh.pop %v1779
          %v1790 = vmul.f32 %v1780, 0.5
          %v1791 = vtanh.pop %v1790
          %v1792 = vmul.f32 %v1791, 0.5
          %v1793 = vadd.f32 %v1792, 0.5
          %v1794 = vmul.f32 %v1788, %v1712
          %v1795 = vmul.f32 %v1784, %v1789
          %v1796 = vadd.f32 %v1794, %v1795
          %v1797 = vtanh.pop %v1796
          %v1798 = vmul.f32 %v1793, %v1797
          %v1799 = vpack.c.bf16 %v1798, %v1798
          %s1800 = scalar_lea.vmem %s229, 8 [#allocation6]
          %1801 = vst [vmem:[%s1800] sm:$0xf] %v1799
          %s1802 = scalar_lea.vmem %s243, 16
          %v1803 = vld [vmem:[%s1802] sm:$0xff]
          %v1804 = vld [vmem:[%s1802 + $0x8] sm:$0xff]
          %v1805 = vunpack.c.l.bf16 %v1803
          %v1806 = vunpack.c.h.bf16 %v1803
          %v1807 = vunpack.c.l.bf16 %v1804
          %v1808 = vunpack.c.h.bf16 %v1804
          %1809 = vmatpush.bf16.msra.mxu0 %v1269
          %1810 = vmatpush.bf16.msra.mxu0 %v1265
          %1811 = vmatpush.bf16.msra.mxu0 %v1261
          %1812 = vmatpush.bf16.msra.mxu0 %v1257
          %1813 = vmatpush.bf16.msra.mxu0 %v1253
          %1814 = vmatpush.bf16.msra.mxu0 %v1249
          %1815 = vmatpush.bf16.msra.mxu0 %v1245
          %1816 = vmatpush.bf16.msra.mxu0 %v1241
          %1817 = vmatmul.bf16.gmra.mxu0 %v1799
          %v1818 = vpop.f32.mrf.mxu0
          %v1819 = vadd.f32 0.0, %v1818
          %v1820 = vpop.f32.mrf.mxu0
          %1821 = vdwg.mxu0
          %1822 = vmatpush.bf16.msra.mxu0 %v1270
          %1823 = vmatpush.bf16.msra.mxu0 %v1266
          %1824 = vmatpush.bf16.msra.mxu0 %v1262
          %1825 = vmatpush.bf16.msra.mxu0 %v1258
          %1826 = vmatpush.bf16.msra.mxu0 %v1254
          %1827 = vmatpush.bf16.msra.mxu0 %v1250
          %1828 = vmatpush.bf16.msra.mxu0 %v1246
          %1829 = vmatpush.bf16.msra.mxu0 %v1242
          %1830 = vmatmul.bf16.gmra.mxu0 %v1799
          %v1831 = vpop.f32.mrf.mxu0
          %v1832 = vadd.f32 0.0, %v1831
          %v1833 = vpop.f32.mrf.mxu0
          %1834 = vdwg.mxu0
          %1835 = vmatpush.bf16.msra.mxu0 %v1271
          %1836 = vmatpush.bf16.msra.mxu0 %v1267
          %1837 = vmatpush.bf16.msra.mxu0 %v1263
          %1838 = vmatpush.bf16.msra.mxu0 %v1259
          %1839 = vmatpush.bf16.msra.mxu0 %v1255
          %1840 = vmatpush.bf16.msra.mxu0 %v1251
          %1841 = vmatpush.bf16.msra.mxu0 %v1247
          %1842 = vmatpush.bf16.msra.mxu0 %v1243
          %1843 = vmatmul.bf16.gmra.mxu0 %v1799
          %v1844 = vpop.f32.mrf.mxu0
          %v1845 = vadd.f32 0.0, %v1844
          %v1846 = vpop.f32.mrf.mxu0
          %1847 = vdwg.mxu0
          %1848 = vmatpush.bf16.msra.mxu0 %v1272
          %1849 = vmatpush.bf16.msra.mxu0 %v1268
          %1850 = vmatpush.bf16.msra.mxu0 %v1264
          %1851 = vmatpush.bf16.msra.mxu0 %v1260
          %1852 = vmatpush.bf16.msra.mxu0 %v1256
          %1853 = vmatpush.bf16.msra.mxu0 %v1252
          %1854 = vmatpush.bf16.msra.mxu0 %v1248
          %1855 = vmatpush.bf16.msra.mxu0 %v1244
          %1856 = vmatmul.bf16.gmra.mxu0 %v1799
          %v1857 = vpop.f32.mrf.mxu0
          %v1858 = vadd.f32 0.0, %v1857
          %v1859 = vpop.f32.mrf.mxu0
          %1860 = vdwg.mxu0
          %v1861 = vadd.f32 %v1805, %v1819
          %v1862 = vadd.f32 %v1806, %v1832
          %v1863 = vadd.f32 %v1807, %v1845
          %v1864 = vadd.f32 %v1808, %v1858
          %v1865 = vmul.f32 %v1861, 0.5
          %v1866 = vtanh.pop %v1865
          %v1867 = vmul.f32 %v1866, 0.5
          %v1868 = vadd.f32 %v1867, 0.5
          %v1869 = vmul.f32 %v1862, 0.5
          %v1870 = vtanh.pop %v1869
          %v1871 = vmul.f32 %v1870, 0.5
          %v1872 = vadd.f32 %v1871, 0.5
          %v1873 = vtanh.pop %v1863
          %v1874 = vmul.f32 %v1864, 0.5
          %v1875 = vtanh.pop %v1874
          %v1876 = vmul.f32 %v1875, 0.5
          %v1877 = vadd.f32 %v1876, 0.5
          %v1878 = vmul.f32 %v1872, %v1796
          %v1879 = vmul.f32 %v1868, %v1873
          %v1880 = vadd.f32 %v1878, %v1879
          %v1881 = vtanh.pop %v1880
          %v1882 = vmul.f32 %v1877, %v1881
          %v1883 = vpack.c.bf16 %v1882, %v1882
          %s1884 = scalar_lea.vmem %s229, 4 [#allocation6]
          %1885 = vst [vmem:[%s1884] sm:$0xf] %v1883
          %v1886 = vld [vmem:[%s243] sm:$0xff]
          %v1887 = vld [vmem:[%s243 + $0x8] sm:$0xff]
          %v1888 = vunpack.c.l.bf16 %v1886
          %v1889 = vunpack.c.h.bf16 %v1886
          %v1890 = vunpack.c.l.bf16 %v1887
          %v1891 = vunpack.c.h.bf16 %v1887
          %1892 = vmatpush.bf16.msra.mxu0 %v1269
          %1893 = vmatpush.bf16.msra.mxu0 %v1265
          %1894 = vmatpush.bf16.msra.mxu0 %v1261
          %1895 = vmatpush.bf16.msra.mxu0 %v1257
          %1896 = vmatpush.bf16.msra.mxu0 %v1253
          %1897 = vmatpush.bf16.msra.mxu0 %v1249
          %1898 = vmatpush.bf16.msra.mxu0 %v1245
          %1899 = vmatpush.bf16.msra.mxu0 %v1241
          %1900 = vmatmul.bf16.gmra.mxu0 %v1883
          %v1901 = vpop.f32.mrf.mxu0
          %v1902 = vadd.f32 0.0, %v1901
          %v1903 = vpop.f32.mrf.mxu0
          %1904 = vdwg.mxu0
          %1905 = vmatpush.bf16.msra.mxu0 %v1270
          %1906 = vmatpush.bf16.msra.mxu0 %v1266
          %1907 = vmatpush.bf16.msra.mxu0 %v1262
          %1908 = vmatpush.bf16.msra.mxu0 %v1258
          %1909 = vmatpush.bf16.msra.mxu0 %v1254
          %1910 = vmatpush.bf16.msra.mxu0 %v1250
          %1911 = vmatpush.bf16.msra.mxu0 %v1246
          %1912 = vmatpush.bf16.msra.mxu0 %v1242
          %1913 = vmatmul.bf16.gmra.mxu0 %v1883
          %v1914 = vpop.f32.mrf.mxu0
          %v1915 = vadd.f32 0.0, %v1914
          %v1916 = vpop.f32.mrf.mxu0
          %1917 = vdwg.mxu0
          %1918 = vmatpush.bf16.msra.mxu0 %v1271
          %1919 = vmatpush.bf16.msra.mxu0 %v1267
          %1920 = vmatpush.bf16.msra.mxu0 %v1263
          %1921 = vmatpush.bf16.msra.mxu0 %v1259
          %1922 = vmatpush.bf16.msra.mxu0 %v1255
          %1923 = vmatpush.bf16.msra.mxu0 %v1251
          %1924 = vmatpush.bf16.msra.mxu0 %v1247
          %1925 = vmatpush.bf16.msra.mxu0 %v1243
          %1926 = vmatmul.bf16.gmra.mxu0 %v1883
          %v1927 = vpop.f32.mrf.mxu0
          %v1928 = vadd.f32 0.0, %v1927
          %v1929 = vpop.f32.mrf.mxu0
          %1930 = vdwg.mxu0
          %1931 = vmatpush.bf16.msra.mxu0 %v1272
          %1932 = vmatpush.bf16.msra.mxu0 %v1268
          %1933 = vmatpush.bf16.msra.mxu0 %v1264
          %1934 = vmatpush.bf16.msra.mxu0 %v1260
          %1935 = vmatpush.bf16.msra.mxu0 %v1256
          %1936 = vmatpush.bf16.msra.mxu0 %v1252
          %1937 = vmatpush.bf16.msra.mxu0 %v1248
          %1938 = vmatpush.bf16.msra.mxu0 %v1244
          %1939 = vmatmul.bf16.gmra.mxu0 %v1883
          %v1940 = vpop.f32.mrf.mxu0
          %v1941 = vadd.f32 0.0, %v1940
          %v1942 = vpop.f32.mrf.mxu0
          %1943 = vdwg.mxu0
          %v1944 = vadd.f32 %v1888, %v1902
          %v1945 = vadd.f32 %v1889, %v1915
          %v1946 = vadd.f32 %v1890, %v1928
          %v1947 = vadd.f32 %v1891, %v1941
          %v1948 = vmul.f32 %v1944, 0.5
          %v1949 = vtanh.pop %v1948
          %v1950 = vmul.f32 %v1949, 0.5
          %v1951 = vadd.f32 %v1950, 0.5
          %v1952 = vmul.f32 %v1945, 0.5
          %v1953 = vtanh.pop %v1952
          %v1954 = vmul.f32 %v1953, 0.5
          %v1955 = vadd.f32 %v1954, 0.5
          %v1956 = vtanh.pop %v1946
          %v1957 = vmul.f32 %v1947, 0.5
          %v1958 = vtanh.pop %v1957
          %v1959 = vmul.f32 %v1958, 0.5
          %v1960 = vadd.f32 %v1959, 0.5
          %v1961 = vmul.f32 %v1955, %v1880
          %v1962 = vmul.f32 %v1951, %v1956
          %v1963 = vadd.f32 %v1961, %v1962
          %v1964 = vtanh.pop %v1963
          %v1965 = vmul.f32 %v1960, %v1964
          %v1966 = vpack.c.bf16 %v1965, %v1965
          %1967 = vst [vmem:[%s229] sm:$0xf] %v1966
          %1968 = vst [vmem:[#allocation2] sm:$0xff] %v1965
          %1969 = vst [vmem:[#allocation3] sm:$0xff] %v1963
        $region44: #{audio_lstm_forward.5} parent=27 // pred_fallthru
          _
        %s1970 = sand.u32 %s108, 1
        %s1971 = sand.u32 %s108, 1
        %s1972 = smul.addr %s1971, 32
        %s1973 = scalar_lea.vmem [#allocation6], %s1972
        // Predicated region
        $region45: #{audio_lstm_forward.5} parent=27 // pred_check
          %p1974 = pneg %p118
        $region46: #{audio_lstm_forward.5} parent=27 // pred_check_branch
          %1976 = sbr.rel (%p1974) target = $region48
        $region47: #{audio_lstm_forward.5} parent=27 // pred_region
          %s1977 = smul.u32 %s21, 2
          %s1978 = ssub.s32 0, %s1977
          %s1979 = smul.u32 %s20, %s1978
          %s1980 = sadd.s32 %s21, %s1979
          %s1981 = smul.u32 8, %s1980
          %s1982 = smul.addr %s1981, 2
          %s1983 = sadd.s32 %s20, %s1982
          %s1984 = smul.addr %s1983, 4
          %s1985 = scalar_lea.vmem %s2, %s1984
          // Predicated region
          $region49: #{audio_lstm_forward.5} parent=47 // pred_check
            _
          $region50: #{audio_lstm_forward.5} parent=47 // pred_check_branch
            %1987 = sbr.rel (0) target = $region52
          $region51: #{audio_lstm_forward.5} parent=47 // pred_region
            // Predicated region
            $region53: #{audio_lstm_forward.5} parent=51 // pred_check
              _
            $region54: #{audio_lstm_forward.5} parent=51 // pred_check_branch
              %1989 = sbr.rel target = $region56
            $region55: #{audio_lstm_forward.5} parent=51 // pred_region
              // Predicated region
              $region68: #{audio_lstm_forward.5} parent=55 // pred_check
                _
              $region69: #{audio_lstm_forward.5} parent=55 // pred_check_branch
                %2019 = sbr.rel (0) target = $region71
              $region70: #{audio_lstm_forward.5} parent=55 // pred_region
                loop: start=0, step=1, limit=1
                $region72: #{audio_lstm_forward.5} parent=70 // loop_pre_header
                  _
                $region73: #{audio_lstm_forward.5} parent=70 // loop_header
                  %s2021 = sphi 0, %s2025
                  %p2022 = scmp.ge.s32.totalorder %s2021, 1
                  %s2026 = sphi %s1973, %s1973
                  %s2027 = sphi %s1985, %s1985
                $region74: #{audio_lstm_forward.5} parent=70 // loop_header_branch
                  %2024 = sbr.rel (%p2022) target = $region78
                $region75: #{audio_lstm_forward.5} parent=70 // loop_body
                  _
                $region76: #{audio_lstm_forward.5} parent=70 // loop_footer
                  %s2025 = sadd.s32 1, %s2021
                $region77: #{audio_lstm_forward.5} parent=70 // loop_footer_branch
                  %2020 = sbr.rel target = $region73
                $region78: #{audio_lstm_forward.5} parent=70 // loop_exit
                  _
                %s2029 = ssub.s32 16, 1
                loop: start=0, step=1, limit=1
                $region79: #{audio_lstm_forward.5} parent=70 // loop_pre_header
                  _
                $region80: #{audio_lstm_forward.5} parent=70 // loop_header
                  %s2031 = sphi 0, %s2035
                  %p2032 = scmp.ge.s32.totalorder %s2031, 1
                  %s2036 = sphi %s1973, %s1973
                  %s2037 = sphi %s1985, %s1985
                $region81: #{audio_lstm_forward.5} parent=70 // loop_header_branch
                  %2034 = sbr.rel (%p2032) target = $region85
                $region82: #{audio_lstm_forward.5} parent=70 // loop_body
                  %v2038 = vld [vmem:[%s2036] sm:%s2029]
                  %2039 = vst [vmem:[%s2037] sm:%s2029] %v2038
                  %v2040 = vld [vmem:[%s2036 + $0x4] sm:%s2029]
                  %2041 = vst [vmem:[%s2037 + $0x8] sm:%s2029] %v2040
                  %v2042 = vld [vmem:[%s2036 + $0x8] sm:%s2029]
                  %2043 = vst [vmem:[%s2037 + $0x10] sm:%s2029] %v2042
                  %v2044 = vld [vmem:[%s2036 + $0xc] sm:%s2029]
                  %2045 = vst [vmem:[%s2037 + $0x18] sm:%s2029] %v2044
                  %v2046 = vld [vmem:[%s2036 + $0x10] sm:%s2029]
                  %2047 = vst [vmem:[%s2037 + $0x20] sm:%s2029] %v2046
                  %v2048 = vld [vmem:[%s2036 + $0x14] sm:%s2029]
                  %2049 = vst [vmem:[%s2037 + $0x28] sm:%s2029] %v2048
                  %v2050 = vld [vmem:[%s2036 + $0x18] sm:%s2029]
                  %2051 = vst [vmem:[%s2037 + $0x30] sm:%s2029] %v2050
                  %v2052 = vld [vmem:[%s2036 + $0x1c] sm:%s2029]
                  %2053 = vst [vmem:[%s2037 + $0x38] sm:%s2029] %v2052
                $region83: #{audio_lstm_forward.5} parent=70 // loop_footer
                  %s2035 = sadd.s32 1, %s2031
                $region84: #{audio_lstm_forward.5} parent=70 // loop_footer_branch
                  %2030 = sbr.rel target = $region80
                $region85: #{audio_lstm_forward.5} parent=70 // loop_exit
                  _
              $region71: #{audio_lstm_forward.5} parent=55 // pred_fallthru
                _
            $region56: #{audio_lstm_forward.5} parent=51 // pred_fallthru
              _
            // Predicated region
            $region57: #{audio_lstm_forward.5} parent=51 // pred_check
              _
            $region58: #{audio_lstm_forward.5} parent=51 // pred_check_branch
              %1991 = sbr.rel (0) target = $region60
            $region59: #{audio_lstm_forward.5} parent=51 // pred_region
              %s1993 = ssub.s32 16, 1
              loop: start=0, step=1, limit=1
              $region61: #{audio_lstm_forward.5} parent=59 // loop_pre_header
                _
              $region62: #{audio_lstm_forward.5} parent=59 // loop_header
                %s1995 = sphi 0, %s1999
                %p1996 = scmp.ge.s32.totalorder %s1995, 1
                %s2000 = sphi %s1973, %s1973
                %s2001 = sphi %s1985, %s1985
              $region63: #{audio_lstm_forward.5} parent=59 // loop_header_branch
                %1998 = sbr.rel (%p1996) target = $region67
              $region64: #{audio_lstm_forward.5} parent=59 // loop_body
                %v2002 = vld [vmem:[%s2000] sm:%s1993]
                %2003 = vst [vmem:[%s2001] sm:%s1993] %v2002
                %v2004 = vld [vmem:[%s2000 + $0x4] sm:%s1993]
                %2005 = vst [vmem:[%s2001 + $0x8] sm:%s1993] %v2004
                %v2006 = vld [vmem:[%s2000 + $0x8] sm:%s1993]
                %2007 = vst [vmem:[%s2001 + $0x10] sm:%s1993] %v2006
                %v2008 = vld [vmem:[%s2000 + $0xc] sm:%s1993]
                %2009 = vst [vmem:[%s2001 + $0x18] sm:%s1993] %v2008
                %v2010 = vld [vmem:[%s2000 + $0x10] sm:%s1993]
                %2011 = vst [vmem:[%s2001 + $0x20] sm:%s1993] %v2010
                %v2012 = vld [vmem:[%s2000 + $0x14] sm:%s1993]
                %2013 = vst [vmem:[%s2001 + $0x28] sm:%s1993] %v2012
                %v2014 = vld [vmem:[%s2000 + $0x18] sm:%s1993]
                %2015 = vst [vmem:[%s2001 + $0x30] sm:%s1993] %v2014
                %v2016 = vld [vmem:[%s2000 + $0x1c] sm:%s1993]
                %2017 = vst [vmem:[%s2001 + $0x38] sm:%s1993] %v2016
              $region65: #{audio_lstm_forward.5} parent=59 // loop_footer
                %s1999 = sadd.s32 1, %s1995
              $region66: #{audio_lstm_forward.5} parent=59 // loop_footer_branch
                %1994 = sbr.rel target = $region62
              $region67: #{audio_lstm_forward.5} parent=59 // loop_exit
                _
            $region60: #{audio_lstm_forward.5} parent=51 // pred_fallthru
              _
          $region52: #{audio_lstm_forward.5} parent=47 // pred_fallthru
            _
          %2054 = vnop
        $region48: #{audio_lstm_forward.5} parent=27 // pred_fallthru
          _
      $region28: #{audio_lstm_forward.5} parent=5 // pred_fallthru
        _
      %p2055 = scmp.le.s32.totalorder 2, %s11
      // Predicated region
      $region86: #{audio_lstm_forward.5} parent=5 // pred_check
        %p2056 = pneg %p2055
      $region87: #{audio_lstm_forward.5} parent=5 // pred_check_branch
        %2058 = sbr.rel (%p2056) target = $region89
      $region88: #{audio_lstm_forward.5} parent=5 // pred_region
        %s2059 = ssub.s32 %s11, 2
        // Predicated region
        $region90: #{audio_lstm_forward.5} parent=88 // pred_check
          %p2060 = pneg %p124
        $region91: #{audio_lstm_forward.5} parent=88 // pred_check_branch
          %2062 = sbr.rel (%p2060) target = $region93
        $region92: #{audio_lstm_forward.5} parent=88 // pred_region
          %s2063 = sand.u32 %s109, 1
          %s2064 = sand.u32 %s109, 1
          %s2065 = smul.addr %s2064, 32
          %s2066 = scalar_lea.vmem [#allocation6], %s2065
        $region93: #{audio_lstm_forward.5} parent=88 // pred_fallthru
          _
      $region89: #{audio_lstm_forward.5} parent=5 // pred_fallthru
        _
    $region6: #{audio_lstm_forward.5} parent=1 // loop_footer
      %s15 = sadd.s32 1, %s11
    $region7: #{audio_lstm_forward.5} parent=1 // loop_footer_branch
      %10 = sbr.rel target = $region3
    $region8: #{audio_lstm_forward.5} parent=1 // loop_exit
      _
    %2067 = vsyncpa [#allocation5], 1
    %s2068 = scalar_lea.sflag [#allocation5], 1
    %2069 = vsyncpa %s2068, 1

</llo_original>
